<compile_context>
chip_gen: v5e
topology: v5e:2x2
jax: 0.10.0
libtpu: 0.0.40
codegen_flags: <defaults>
</compile_context>

<pallas_src>
import functools
import math

import numpy as np
import jax
import jax.numpy as jnp
from jax.experimental import pallas as pl
from jax.experimental.pallas import tpu as pltpu


def _round_up(v, m):
    return -(-v // m) * m


def _pick_tile(m_rows, tile_m):
    # Keep >=2 grid steps when the level is big enough (v7x megacore), cap the
    # per-step tile at tile_m, keep the sublane dim a multiple of 16 (bf16 tiles).
    half = _round_up(-(-m_rows // 2), 16)
    tm = max(16, min(tile_m, half))
    return _round_up(tm, 16)


# --------------------------------------------------------------------------
# Pallas kernel: fused 1x1x1 conv (matmul) + YOLO-3D decode (full-tile, masked)
# --------------------------------------------------------------------------
def _detect_kernel(x_ref, w_ref, p_ref, g_ref, raw_ref, dec_ref, *, nz, ny, nx):
    tm = x_ref.shape[0]

    # Per-channel parameter rows, packed as one (8, N_pad) f32 tile:
    #   0: bias    1: lin scale (2*stride @xyz, 1 @obj)   2: const offset (-0.5*stride @xyz)
    #   3: gz mask*stride  4: gx mask*stride  5: gy mask*stride
    #   6: anchor*stride (@whd, 0 elsewhere)  7: class-channel mask
    p = p_ref[...]
    bias, scale_lin, off_c = p[0:1], p[1:2], p[2:3]
    gz_m, gx_m, gy_m = p[3:4], p[4:5], p[5:6]
    anch, cls_m = p[6:7], p[7:8]

    # 1x1x1 conv over channels == MXU matmul (bf16 in, f32 accumulate)
    out = jnp.dot(x_ref[...], w_ref[...],
                  preferred_element_type=jnp.float32) + bias      # (tm, N_pad) f32
    raw_ref[...] = out.astype(raw_ref.dtype)                      # pre-decode tensor x[i]

    # Per-voxel grid coordinates from the flat row index (row order: b, z, y, x).
    row0 = pl.program_id(0) * tm
    rows = (row0 + jax.lax.broadcasted_iota(jnp.int32, (tm, 1), 0)).astype(jnp.float32)
    s_sz, yx_sz, x_sz = float(nz * ny * nx), float(ny * nx), float(nx)
    r = rows - jnp.floor(rows / s_sz) * s_sz        # within-batch flat index
    gz = jnp.floor(r / yx_sz)
    r = r - gz * yx_sz
    gy = jnp.floor(r / x_sz)
    gx = r - gy * x_sz

    # Full-tile decode: one EUP sigmoid pass + pure VPU masked math.
    s = jax.nn.sigmoid(out)
    lin = s * scale_lin + (off_c + gz * gz_m + gx * gx_m + gy * gy_m)   # xyz & obj
    s2 = s + s
    box = jnp.where(anch > 0.0, (s2 * s2) * anch, lin)                  # whd vs rest
    # (columns with anch == 0 and all pad columns fall through to `lin`, which is 0 there)

    # Per-anchor softmax over the class channels:
    #   shared row-wide max shift (identical per group), masked exp, group sums
    #   via a (N_pad, N_pad) 0/1 indicator matmul on the MXU.
    is_cls = cls_m > 0.0
    m_row = jnp.max(jnp.where(is_cls, out, -jnp.inf), axis=-1, keepdims=True)
    e = jnp.exp(jnp.where(is_cls, out - m_row, -jnp.inf))               # 0 off-class
    denom = jnp.dot(e, g_ref[...], preferred_element_type=jnp.float32)
    cls = e * pl.reciprocal(denom + (1.0 - cls_m), approx=True)

    dec_ref[...] = jnp.where(is_cls, cls, box).astype(dec_ref.dtype)


def detect_layer_pallas(x_flat, w_pad, params, gmat, *, nz, ny, nx, tile_m=512):
    """One detection level. x_flat: (M, Cin) bf16. Returns (raw, dec), (M_pad, N_pad) bf16."""
    M, cin = x_flat.shape
    n_pad = w_pad.shape[1]
    tm = _pick_tile(M, tile_m)
    mp = _round_up(M, tm)
    if mp != M:
        x_flat = jnp.pad(x_flat, ((0, mp - M), (0, 0)))

    kernel = functools.partial(_detect_kernel, nz=nz, ny=ny, nx=nx)
    raw, dec = pl.pallas_call(
        kernel,
        out_shape=(jax.ShapeDtypeStruct((mp, n_pad), jnp.bfloat16),
                   jax.ShapeDtypeStruct((mp, n_pad), jnp.bfloat16)),
        grid_spec=pltpu.PrefetchScalarGridSpec(
            num_scalar_prefetch=0,
            grid=(mp // tm,),
            in_specs=[
                pl.BlockSpec((tm, cin), lambda i: (i, 0)),       # activations (bf16)
                pl.BlockSpec((cin, n_pad), lambda i: (0, 0)),    # padded conv weight (bf16)
                pl.BlockSpec((8, n_pad), lambda i: (0, 0)),      # per-channel params (f32)
                pl.BlockSpec((n_pad, n_pad), lambda i: (0, 0)),  # softmax group indicator
            ],
            out_specs=(
                pl.BlockSpec((tm, n_pad), lambda i: (i, 0)),
                pl.BlockSpec((tm, n_pad), lambda i: (i, 0)),
            ),
        ),
        compiler_params=pltpu.CompilerParams(dimension_semantics=("parallel",)),
    )(x_flat, w_pad, params, gmat)
    return raw, dec


# --------------------------------------------------------------------------
# Per-channel constant construction (numpy, folded at trace time)
# --------------------------------------------------------------------------
def _make_channel_params_np(na, no, N, n_pad, anchors_scaled, stride):
    c = np.arange(n_pad)
    a_idx = c // no
    j = c % no
    valid = c < N
    is_xyz = valid & (j < 3)
    is_whd = valid & (j >= 3) & (j < 6)
    is_obj = valid & (j == 6)
    is_cls = valid & (j >= 7)

    scale_lin = np.where(is_xyz, 2.0 * stride, 0.0) + np.where(is_obj, 1.0, 0.0)
    off_const = np.where(is_xyz, -0.5 * stride, 0.0)
    gz_m = np.where(valid & (j == 0), stride, 0.0)
    gx_m = np.where(valid & (j == 1), stride, 0.0)
    gy_m = np.where(valid & (j == 2), stride, 0.0)
    anch_c = np.zeros(n_pad, np.float32)
    whd_cols = np.nonzero(is_whd)[0]
    anch_c[whd_cols] = anchors_scaled[a_idx[whd_cols], j[whd_cols] - 3]
    mask_cls = is_cls.astype(np.float32)
    return np.stack([scale_lin, off_const, gz_m, gx_m, gy_m, anch_c, mask_cls],
                    axis=0).astype(np.float32)        # (7, n_pad)


def _make_group_matrix_np(na, no, N, n_pad):
    c = np.arange(n_pad)
    a_idx = c // no
    j = c % no
    is_cls = (c < N) & (j >= 7)
    return (is_cls[:, None] & is_cls[None, :]
            & (a_idx[:, None] == a_idx[None, :])).astype(np.float32)   # (n_pad, n_pad)


# --------------------------------------------------------------------------
# Detect module (JAX/Pallas version, eval-mode forward)
# --------------------------------------------------------------------------
class DetectPallas:
    def __init__(self, nc, anchors, ch, strides, key, tile_m=512):
        self.nc = nc
        self.no = nc + 7
        self.nl = len(anchors)
        self.na = len(anchors[0]) // 3
        self.tile_m = tile_m
        self.N = self.na * self.no
        self.N_pad = max(128, _round_up(self.N, 128))

        anchors_np = np.asarray(anchors, np.float32).reshape(self.nl, -1, 3)
        self.anchors = jnp.asarray(anchors_np)
        self.strides = [float(s) for s in strides]
        self.gmat = jnp.asarray(_make_group_matrix_np(self.na, self.no, self.N, self.N_pad))

        self.weights, self.biases = [], []      # f32 originals (for the reference)
        self.w_pad, self.params = [], []        # kernel-side padded bf16 / packed f32
        for i, c in enumerate(ch):
            key, kw, kb = jax.random.split(key, 3)
            bound = 1.0 / math.sqrt(c)          # PyTorch Conv3d default init (kernel=1)
            w = jax.random.uniform(kw, (self.N, c), jnp.float32, -bound, bound)
            b = jax.random.uniform(kb, (self.N,), jnp.float32, -bound, bound)
            self.weights.append(w)
            self.biases.append(b)

            w_pad = jnp.zeros((c, self.N_pad), jnp.bfloat16)
            w_pad = w_pad.at[:, :self.N].set(w.T.astype(jnp.bfloat16))
            self.w_pad.append(w_pad)

            rows = _make_channel_params_np(self.na, self.no, self.N, self.N_pad,
                                           anchors_np[i] * self.strides[i],
                                           self.strides[i])
            bias_row = jnp.zeros((1, self.N_pad), jnp.float32).at[0, :self.N].set(b)
            self.params.append(jnp.concatenate([bias_row, jnp.asarray(rows)], axis=0))

    def __call__(self, xs):
        """xs: list of NCDHW arrays (bs, ch[i], nz, ny, nx). Eval-mode forward."""
        # TODO(synk): feeding an already channels-last upstream layout (and an
        # anchor-major output) would remove the remaining HBM layout shuffles.
        z, x_out = [], []
        for i in range(self.nl):
            x = xs[i]
            bs, cin, nz, ny, nx = x.shape
            M = bs * nz * ny * nx

            x_flat = jnp.transpose(x, (0, 2, 3, 4, 1)).reshape(M, cin).astype(jnp.bfloat16)
            raw, dec = detect_layer_pallas(x_flat, self.w_pad[i], self.params[i],
                                           self.gmat, nz=nz, ny=ny, nx=nx,
                                           tile_m=self.tile_m)
            raw = raw[:M, :self.N].astype(jnp.float32)
            dec = dec[:M, :self.N].astype(jnp.float32)

            # back to PyTorch layout (bs, na, nz, ny, nx, no)
            raw6 = raw.reshape(bs, nz, ny, nx, self.na, self.no).transpose(0, 4, 1, 2, 3, 5)
            dec6 = dec.reshape(bs, nz, ny, nx, self.na, self.no).transpose(0, 4, 1, 2, 3, 5)
            x_out.append(raw6)
            z.append(dec6.reshape(bs, -1, self.no))
        return jnp.concatenate(z, axis=1), x_out


# --------------------------------------------------------------------------
# Pure-JAX reference (mirrors the kernel's intentional bf16 input quantization)
# --------------------------------------------------------------------------
def ref_forward(det, xs):
    z, xo = [], []
    for i in range(det.nl):
        x = xs[i].astype(jnp.bfloat16).astype(jnp.float32)
        bs, cin, nz, ny, nx = x.shape
        w = det.weights[i].astype(jnp.bfloat16).astype(jnp.float32)
        b = det.biases[i]
        y = jnp.einsum('bcdhw,nc->bndhw', x, w) + b[None, :, None, None, None]
        y6 = y.reshape(bs, det.na, det.no, nz, ny, nx).transpose(0, 1, 3, 4, 5, 2)
        xo.append(y6)
        zv, yv, xv = jnp.meshgrid(jnp.arange(nz), jnp.arange(ny), jnp.arange(nx),
                                  indexing='ij')
        grid = jnp.stack((zv, xv, yv), -1).astype(jnp.float32)[None, None]
        anchor_grid = (det.anchors[i] * det.strides[i]).reshape(1, det.na, 1, 1, 1, 3)
        xyz = (jax.nn.sigmoid(y6[..., 0:3]) * 2.0 - 0.5 + grid) * det.strides[i]
        wh = (jax.nn.sigmoid(y6[..., 3:6]) * 2.0) ** 2 * anchor_grid
        obj = jax.nn.sigmoid(y6[..., 6:7])
        cls = jax.nn.softmax(y6[..., 7:], axis=-1)
        dec = jnp.concatenate([xyz, wh, obj, cls], axis=-1)
        z.append(dec.reshape(bs, -1, det.no))
    return jnp.concatenate(z, 1), xo


# --------------------------------------------------------------------------
if __name__ == "__main__":
    key = jax.random.PRNGKey(0)

    nc = 3                                   # small class count -> no = 10
    anchors = ((10, 13, 8, 16, 30, 12, 33, 23, 20),
               (30, 61, 24, 62, 45, 40, 59, 119, 60))   # nl=2, na=3
    ch = (16, 32)
    strides = (8.0, 16.0)

    key, kinit, kx0, kx1 = jax.random.split(key, 4)
    det = DetectPallas(nc=nc, anchors=anchors, ch=ch, strides=strides, key=kinit)

    xs = [
        jax.random.normal(kx0, (2, 16, 8, 8, 8), jnp.float32),   # NCDHW
        jax.random.normal(kx1, (2, 32, 4, 4, 4), jnp.float32),
    ]

    z_cat, x_list = det(xs)
    jax.block_until_ready(z_cat)
    for xi in x_list:
        jax.block_until_ready(xi)

    # correctness check against pure-JAX reference (bf16 I/O aware tolerances)
    z_ref, x_ref = ref_forward(det, xs)
    assert z_cat.shape == z_ref.shape
    assert jnp.allclose(z_cat, z_ref, rtol=2e-2, atol=2e-2)
    for a, b in zip(x_list, x_ref):
        assert a.shape == b.shape
        assert jnp.allclose(a, b, rtol=2e-2, atol=2e-2)

    print("KERNEL_OK")
</pallas_src>

<mosaic_0001>
module attributes {stable_mosaic.version = 11 : i64} {
  func.func @_detect_kernel(%arg0: i32, %arg1: memref<512x16xbf16, #tpu.memory_space<vmem>>, %arg2: memref<16x128xbf16, #tpu.memory_space<vmem>>, %arg3: memref<8x128xf32, #tpu.memory_space<vmem>>, %arg4: memref<128x128xf32, #tpu.memory_space<vmem>>, %arg5: memref<512x128xbf16, #tpu.memory_space<vmem>>, %arg6: memref<512x128xbf16, #tpu.memory_space<vmem>>) attributes {dimension_semantics = [#tpu.dimension_semantics<parallel>], iteration_bounds = array<i64: 2>, scalar_prefetch = 0 : i64, scratch_operands = 0 : i64, tpu.core_type = #tpu.core_type<tc>, window_params = [{transform_indices = @transform_0, window_bounds = array<i64: 512, 16>}, {pipeline_mode = #tpu.pipeline_mode<synchronous>, transform_indices = @transform_1, window_bounds = array<i64: 16, 128>}, {pipeline_mode = #tpu.pipeline_mode<synchronous>, transform_indices = @transform_2, window_bounds = array<i64: 8, 128>}, {pipeline_mode = #tpu.pipeline_mode<synchronous>, transform_indices = @transform_3, window_bounds = array<i64: 128, 128>}, {transform_indices = @transform_4, window_bounds = array<i64: 512, 128>}, {transform_indices = @transform_5, window_bounds = array<i64: 512, 128>}]} {
    %c0 = arith.constant 0 : index
    %c0_0 = arith.constant 0 : index
    %0 = vector.load %arg3[%c0, %c0_0] : memref<8x128xf32, #tpu.memory_space<vmem>>, vector<8x128xf32>
    %1 = vector.extract_strided_slice %0 {offsets = [0, 0], sizes = [1, 128], strides = [1, 1]} : vector<8x128xf32> to vector<1x128xf32>
    %2 = vector.extract_strided_slice %0 {offsets = [1, 0], sizes = [1, 128], strides = [1, 1]} : vector<8x128xf32> to vector<1x128xf32>
    %3 = vector.extract_strided_slice %0 {offsets = [2, 0], sizes = [1, 128], strides = [1, 1]} : vector<8x128xf32> to vector<1x128xf32>
    %4 = vector.extract_strided_slice %0 {offsets = [3, 0], sizes = [1, 128], strides = [1, 1]} : vector<8x128xf32> to vector<1x128xf32>
    %5 = vector.extract_strided_slice %0 {offsets = [4, 0], sizes = [1, 128], strides = [1, 1]} : vector<8x128xf32> to vector<1x128xf32>
    %6 = vector.extract_strided_slice %0 {offsets = [5, 0], sizes = [1, 128], strides = [1, 1]} : vector<8x128xf32> to vector<1x128xf32>
    %7 = vector.extract_strided_slice %0 {offsets = [6, 0], sizes = [1, 128], strides = [1, 1]} : vector<8x128xf32> to vector<1x128xf32>
    %8 = vector.extract_strided_slice %0 {offsets = [7, 0], sizes = [1, 128], strides = [1, 1]} : vector<8x128xf32> to vector<1x128xf32>
    %c0_1 = arith.constant 0 : index
    %c0_2 = arith.constant 0 : index
    %9 = vector.load %arg1[%c0_1, %c0_2] : memref<512x16xbf16, #tpu.memory_space<vmem>>, vector<512x16xbf16>
    %c0_3 = arith.constant 0 : index
    %c0_4 = arith.constant 0 : index
    %10 = vector.load %arg2[%c0_3, %c0_4] : memref<16x128xbf16, #tpu.memory_space<vmem>>, vector<16x128xbf16>
    %cst = arith.constant dense<0.000000e+00> : vector<512x128xf32>
    %11 = tpu.matmul %9, %10, %cst {dimension_numbers = #tpu.dot_dimension_numbers<[1], [0], [0], [1], [0, 0, 1, 1], [], []>} : vector<512x16xbf16>, vector<16x128xbf16>, vector<512x128xf32> -> vector<512x128xf32>
    %12 = vector.broadcast %1 : vector<1x128xf32> to vector<512x128xf32>
    %13 = arith.addf %11, %12 : vector<512x128xf32>
    %14 = arith.truncf %13 : vector<512x128xf32> to vector<512x128xbf16>
    %c0_5 = arith.constant 0 : index
    %c0_6 = arith.constant 0 : index
    %15 = vector.load %arg5[%c0_5, %c0_6] : memref<512x128xbf16, #tpu.memory_space<vmem>>, vector<512x128xbf16>
    tpu.vector_store %arg5[%c0_5, %c0_6], %14 {strides = array<i32>} : memref<512x128xbf16, #tpu.memory_space<vmem>>, vector<512x128xbf16>,
    %c512_i32 = arith.constant 512 : i32
    %16 = arith.muli %arg0, %c512_i32 : i32
    %17 = tpu.iota {dimensions = array<i32: 0>} : vector<512x1xi32>
    %18 = vector.broadcast %16 : i32 to vector<512x1xi32>
    %19 = arith.addi %18, %17 : vector<512x1xi32>
    %20 = arith.sitofp %19 : vector<512x1xi32> to vector<512x1xf32>
    %cst_7 = arith.constant 5.120000e+02 : f32
    %21 = vector.broadcast %cst_7 : f32 to vector<512x1xf32>
    %22 = arith.divf %20, %21 : vector<512x1xf32>
    %23 = math.floor %22 : vector<512x1xf32>
    %cst_8 = arith.constant 5.120000e+02 : f32
    %24 = vector.broadcast %cst_8 : f32 to vector<512x1xf32>
    %25 = arith.mulf %23, %24 : vector<512x1xf32>
    %26 = arith.subf %20, %25 : vector<512x1xf32>
    %cst_9 = arith.constant 6.400000e+01 : f32
    %27 = vector.broadcast %cst_9 : f32 to vector<512x1xf32>
    %28 = arith.divf %26, %27 : vector<512x1xf32>
    %29 = math.floor %28 : vector<512x1xf32>
    %cst_10 = arith.constant 6.400000e+01 : f32
    %30 = vector.broadcast %cst_10 : f32 to vector<512x1xf32>
    %31 = arith.mulf %29, %30 : vector<512x1xf32>
    %32 = arith.subf %26, %31 : vector<512x1xf32>
    %cst_11 = arith.constant 8.000000e+00 : f32
    %33 = vector.broadcast %cst_11 : f32 to vector<512x1xf32>
    %34 = arith.divf %32, %33 : vector<512x1xf32>
    %35 = math.floor %34 : vector<512x1xf32>
    %cst_12 = arith.constant 8.000000e+00 : f32
    %36 = vector.broadcast %cst_12 : f32 to vector<512x1xf32>
    %37 = arith.mulf %35, %36 : vector<512x1xf32>
    %38 = arith.subf %32, %37 : vector<512x1xf32>
    %39 = arith.negf %13 : vector<512x128xf32>
    %40 = math.exp %39 : vector<512x128xf32>
    %cst_13 = arith.constant 1.000000e+00 : f32
    %41 = vector.broadcast %cst_13 : f32 to vector<512x128xf32>
    %42 = arith.addf %41, %40 : vector<512x128xf32>
    %43 = arith.divf %41, %42 : vector<512x128xf32>
    %44 = vector.broadcast %2 : vector<1x128xf32> to vector<512x128xf32>
    %45 = arith.mulf %43, %44 : vector<512x128xf32>
    %46 = vector.broadcast %29 : vector<512x1xf32> to vector<512x128xf32>
    %47 = vector.broadcast %4 : vector<1x128xf32> to vector<512x128xf32>
    %48 = arith.mulf %46, %47 : vector<512x128xf32>
    %49 = vector.broadcast %3 : vector<1x128xf32> to vector<512x128xf32>
    %50 = arith.addf %49, %48 : vector<512x128xf32>
    %51 = vector.broadcast %38 : vector<512x1xf32> to vector<512x128xf32>
    %52 = vector.broadcast %5 : vector<1x128xf32> to vector<512x128xf32>
    %53 = arith.mulf %51, %52 : vector<512x128xf32>
    %54 = arith.addf %50, %53 : vector<512x128xf32>
    %55 = vector.broadcast %35 : vector<512x1xf32> to vector<512x128xf32>
    %56 = vector.broadcast %6 : vector<1x128xf32> to vector<512x128xf32>
    %57 = arith.mulf %55, %56 : vector<512x128xf32>
    %58 = arith.addf %54, %57 : vector<512x128xf32>
    %59 = arith.addf %45, %58 : vector<512x128xf32>
    %60 = arith.addf %43, %43 : vector<512x128xf32>
    %cst_14 = arith.constant 0.000000e+00 : f32
    %61 = vector.broadcast %cst_14 : f32 to vector<1x128xf32>
    %62 = arith.cmpf ogt, %7, %61 : vector<1x128xf32>
    %63 = arith.mulf %60, %60 : vector<512x128xf32>
    %64 = vector.broadcast %7 : vector<1x128xf32> to vector<512x128xf32>
    %65 = arith.mulf %63, %64 : vector<512x128xf32>
    %66 = vector.shape_cast %62 : vector<1x128xi1> to vector<1x128xi1>
    %67 = vector.broadcast %66 : vector<1x128xi1> to vector<512x128xi1>
    %68 = arith.select %67, %65, %59 : vector<512x128xi1>, vector<512x128xf32>
    %cst_15 = arith.constant 0.000000e+00 : f32
    %69 = vector.broadcast %cst_15 : f32 to vector<1x128xf32>
    %70 = arith.cmpf ogt, %8, %69 : vector<1x128xf32>
    %cst_16 = arith.constant 0xFF800000 : f32
    %71 = vector.shape_cast %70 : vector<1x128xi1> to vector<1x128xi1>
    %72 = vector.broadcast %71 : vector<1x128xi1> to vector<512x128xi1>
    %73 = vector.broadcast %cst_16 : f32 to vector<512x128xf32>
    %74 = arith.select %72, %13, %73 : vector<512x128xi1>, vector<512x128xf32>
    %cst_17 = arith.constant dense<0xFF800000> : vector<512xf32>
    %75 = vector.multi_reduction <maximumf>, %74, %cst_17 [1] : vector<512x128xf32> to vector<512xf32>
    %76 = vector.shape_cast %75 : vector<512xf32> to vector<512x1xf32>
    %77 = vector.broadcast %76 : vector<512x1xf32> to vector<512x128xf32>
    %78 = arith.subf %13, %77 : vector<512x128xf32>
    %cst_18 = arith.constant 0xFF800000 : f32
    %79 = vector.shape_cast %70 : vector<1x128xi1> to vector<1x128xi1>
    %80 = vector.broadcast %79 : vector<1x128xi1> to vector<512x128xi1>
    %81 = vector.broadcast %cst_18 : f32 to vector<512x128xf32>
    %82 = arith.select %80, %78, %81 : vector<512x128xi1>, vector<512x128xf32>
    %83 = math.exp %82 : vector<512x128xf32>
    %c0_19 = arith.constant 0 : index
    %c0_20 = arith.constant 0 : index
    %84 = vector.load %arg4[%c0_19, %c0_20] : memref<128x128xf32, #tpu.memory_space<vmem>>, vector<128x128xf32>
    %cst_21 = arith.constant dense<0.000000e+00> : vector<512x128xf32>
    %85 = tpu.matmul %83, %84, %cst_21 {dimension_numbers = #tpu.dot_dimension_numbers<[1], [0], [0], [1], [0, 0, 1, 1], [], []>} : vector<512x128xf32>, vector<128x128xf32>, vector<512x128xf32> -> vector<512x128xf32>
    %cst_22 = arith.constant 1.000000e+00 : f32
    %86 = vector.broadcast %cst_22 : f32 to vector<1x128xf32>
    %87 = arith.subf %86, %8 : vector<1x128xf32>
    %88 = vector.broadcast %87 : vector<1x128xf32> to vector<512x128xf32>
    %89 = arith.addf %85, %88 : vector<512x128xf32>
    %90 = tpu.reciprocal %89 {approx = true} : vector<512x128xf32> -> vector<512x128xf32>
    %91 = arith.mulf %83, %90 : vector<512x128xf32>
    %92 = vector.shape_cast %70 : vector<1x128xi1> to vector<1x128xi1>
    %93 = vector.broadcast %92 : vector<1x128xi1> to vector<512x128xi1>
    %94 = arith.select %93, %91, %68 : vector<512x128xi1>, vector<512x128xf32>
    %95 = arith.truncf %94 : vector<512x128xf32> to vector<512x128xbf16>
    %c0_23 = arith.constant 0 : index
    %c0_24 = arith.constant 0 : index
    %96 = vector.load %arg6[%c0_23, %c0_24] : memref<512x128xbf16, #tpu.memory_space<vmem>>, vector<512x128xbf16>
    tpu.vector_store %arg6[%c0_23, %c0_24], %95 {strides = array<i32>} : memref<512x128xbf16, #tpu.memory_space<vmem>>, vector<512x128xbf16>,
    return
  }
  func.func @transform_0(%arg0: i32) -> (i32, i32) {
    %c0_i32 = arith.constant 0 : i32
    %c0_i32_0 = arith.constant 0 : i32
    return %arg0, %c0_i32 : i32, i32
  }
  func.func @transform_1(%arg0: i32) -> (i32, i32) {
    %c0_i32 = arith.constant 0 : i32
    %c0_i32_0 = arith.constant 0 : i32
    %c0_i32_1 = arith.constant 0 : i32
    return %c0_i32, %c0_i32_0 : i32, i32
  }
  func.func @transform_2(%arg0: i32) -> (i32, i32) {
    %c0_i32 = arith.constant 0 : i32
    %c0_i32_0 = arith.constant 0 : i32
    %c0_i32_1 = arith.constant 0 : i32
    return %c0_i32, %c0_i32_0 : i32, i32
  }
  func.func @transform_3(%arg0: i32) -> (i32, i32) {
    %c0_i32 = arith.constant 0 : i32
    %c0_i32_0 = arith.constant 0 : i32
    %c0_i32_1 = arith.constant 0 : i32
    return %c0_i32, %c0_i32_0 : i32, i32
  }
  func.func @transform_4(%arg0: i32) -> (i32, i32) {
    %c0_i32 = arith.constant 0 : i32
    %c0_i32_0 = arith.constant 0 : i32
    return %arg0, %c0_i32 : i32, i32
  }
  func.func @transform_5(%arg0: i32) -> (i32, i32) {
    %c0_i32 = arith.constant 0 : i32
    %c0_i32_0 = arith.constant 0 : i32
    return %arg0, %c0_i32 : i32, i32
  }
}

</mosaic_0001>

<llo_original>
// kernel: tpu_custom_call.1
$region0: #{tpu_custom_call.1}
  #allocation0 [shape = 'u32[]', space=smem, size = 0x4, offset = 0x4, fixed_abs, tag = 'smem constant byte address 0x4 - core index']
  #allocation1 [shape = 'u32[72,128]{1,0:T(1,128)}', space=vmem, size = 0x9000, scoped, tag = 'internal scratch']
  %s0 = inlined_call_operand.vmem [shape: bf16[1024,16], index: 0, kind: input, shape index: {}]
  %s1 = inlined_call_operand.vmem [shape: bf16[16,128], index: 1, kind: input, shape index: {}]
  %s2 = inlined_call_operand.vmem [shape: f32[8,128], index: 2, kind: input, shape index: {}]
  %s3 = inlined_call_operand.vmem [shape: f32[128,128], index: 3, kind: input, shape index: {}]
  %s4 = inlined_call_operand.hbm [shape: bf16[1024,128], index: 4, kind: output, shape index: {0}]
  %s5 = inlined_call_operand.hbm [shape: bf16[1024,128], index: 5, kind: output, shape index: {1}]
  %6 = xla_tuple %s4, %s5
  %s7 = sld [smem:[#allocation0]]
  $region57: #{tpu_custom_call.1} parent=0
    _
  %s9 = ssub.s32 1, %s7
  %s10 = scalar_select 0, %s9, %s7
  $region1: #{tpu_custom_call.1} parent=0
    #allocation2 [shape = 'u8[262144]{0}', space=vmem, size = 0x40000, scoped, tag = 'output window, operand 0']
    #allocation3 [shape = 's32[2]{0}', space=sflag, size = 0x8, scoped, tag = 'scoped memory for tpu_custom_call.1']
    #allocation4 [shape = 'u8[262144]{0}', space=vmem, size = 0x40000, scoped, tag = 'output window, operand 1']
    #allocation5 [shape = 's32[2]{0}', space=sflag, size = 0x8, scoped, tag = 'scoped memory for tpu_custom_call.1']
    %11 = vsyncpa [#allocation3], 0
    %s12 = scalar_lea.sflag [#allocation3], 1
    %13 = vsyncpa %s12, 0
    %14 = vsyncpa [#allocation5], 0
    %s15 = scalar_lea.sflag [#allocation5], 1
    %16 = vsyncpa %s15, 0
    loop: start=0, step=1, limit=4
    $region2: #{tpu_custom_call.1} parent=1 // loop_pre_header
      _
    $region3: #{tpu_custom_call.1} parent=1 // loop_header
      %s18 = sphi 0, %s22
      %p19 = scmp.ge.s32.totalorder %s18, 4
      %s28 = sphi 0, %s30
      %s31 = sphi 0, %s28
      %s32 = sphi 0, %s31
      %s48 = sphi 0, %s32
      %s52 = sphi 0, %s52
      %s54 = sphi 0, %s52
      %s55 = sphi 0, %s54
      %s69 = sphi 0, %s55
      %s73 = sphi 0, %s73
      %s75 = sphi 0, %s73
      %s76 = sphi 0, %s75
      %s90 = sphi 0, %s76
      %s94 = sphi 0, %s94
      %s96 = sphi 0, %s94
      %s97 = sphi 0, %s96
      %s111 = sphi 0, %s97
      %s117 = sphi 0, %s119
      %s120 = sphi 0, %s117
      %s121 = sphi 0, %s120
      %s137 = sphi 0, %s121
      %s143 = sphi 0, %s145
      %s146 = sphi 0, %s143
      %s147 = sphi 0, %s146
      %s163 = sphi 0, %s147
    $region4: #{tpu_custom_call.1} parent=1 // loop_header_branch
      %21 = sbr.rel (%p19) target = $region8
    $region5: #{tpu_custom_call.1} parent=1 // loop_body
      %s23 = ssub.s32 %s18, 1
      %s24 = ssub.s32 %s18, 2
      %s25 = sadd.s32 %s18, 1
      %s26 = ssub.s32 %s18, %s25
      %p27 = scmp.eq.s32.totalorder %s26, 0
      %s29 = sadd.s32 %s28, 1
      %s30 = scalar_select %p27, %s28, %s29
      %p33 = pneg %p27
      %p34 = scmp.eq.s32.totalorder %s18, 1
      %p35 = por %p33, %p34
      %p36 = scmp.ne.s32.totalorder %s28, %s31
      %p37 = scmp.eq.s32.totalorder %s18, 0
      %p38 = por %p36, %p37
      %p39 = scmp.ne.s32.totalorder %s28, %s31
      %p40 = scmp.eq.s32.totalorder %s23, 1
      %p41 = por %p39, %p40
      %p42 = scmp.ne.s32.totalorder %s31, %s32
      %p43 = scmp.eq.s32.totalorder %s23, 0
      %p44 = por %p42, %p43
      %p45 = scmp.ne.s32.totalorder %s31, %s32
      %p46 = scmp.eq.s32.totalorder %s24, 1
      %p47 = por %p45, %p46
      %p49 = scmp.ne.s32.totalorder %s32, %s48
      %p50 = scmp.eq.s32.totalorder %s24, 0
      %p51 = por %p49, %p50
      %s53 = sadd.s32 %s52, 1
      %p56 = scmp.eq.s32.totalorder %s18, 1
      %p57 = scmp.ne.s32.totalorder %s52, %s54
      %p58 = scmp.eq.s32.totalorder %s18, 0
      %p59 = por %p57, %p58
      %p60 = scmp.ne.s32.totalorder %s52, %s54
      %p61 = scmp.eq.s32.totalorder %s23, 1
      %p62 = por %p60, %p61
      %p63 = scmp.ne.s32.totalorder %s54, %s55
      %p64 = scmp.eq.s32.totalorder %s23, 0
      %p65 = por %p63, %p64
      %p66 = scmp.ne.s32.totalorder %s54, %s55
      %p67 = scmp.eq.s32.totalorder %s24, 1
      %p68 = por %p66, %p67
      %p70 = scmp.ne.s32.totalorder %s55, %s69
      %p71 = scmp.eq.s32.totalorder %s24, 0
      %p72 = por %p70, %p71
      %s74 = sadd.s32 %s73, 1
      %p77 = scmp.eq.s32.totalorder %s18, 1
      %p78 = scmp.ne.s32.totalorder %s73, %s75
      %p79 = scmp.eq.s32.totalorder %s18, 0
      %p80 = por %p78, %p79
      %p81 = scmp.ne.s32.totalorder %s73, %s75
      %p82 = scmp.eq.s32.totalorder %s23, 1
      %p83 = por %p81, %p82
      %p84 = scmp.ne.s32.totalorder %s75, %s76
      %p85 = scmp.eq.s32.totalorder %s23, 0
      %p86 = por %p84, %p85
      %p87 = scmp.ne.s32.totalorder %s75, %s76
      %p88 = scmp.eq.s32.totalorder %s24, 1
      %p89 = por %p87, %p88
      %p91 = scmp.ne.s32.totalorder %s76, %s90
      %p92 = scmp.eq.s32.totalorder %s24, 0
      %p93 = por %p91, %p92
      %s95 = sadd.s32 %s94, 1
      %p98 = scmp.eq.s32.totalorder %s18, 1
      %p99 = scmp.ne.s32.totalorder %s94, %s96
      %p100 = scmp.eq.s32.totalorder %s18, 0
      %p101 = por %p99, %p100
      %p102 = scmp.ne.s32.totalorder %s94, %s96
      %p103 = scmp.eq.s32.totalorder %s23, 1
      %p104 = por %p102, %p103
      %p105 = scmp.ne.s32.totalorder %s96, %s97
      %p106 = scmp.eq.s32.totalorder %s23, 0
      %p107 = por %p105, %p106
      %p108 = scmp.ne.s32.totalorder %s96, %s97
      %p109 = scmp.eq.s32.totalorder %s24, 1
      %p110 = por %p108, %p109
      %p112 = scmp.ne.s32.totalorder %s97, %s111
      %p113 = scmp.eq.s32.totalorder %s24, 0
      %p114 = por %p112, %p113
      %s115 = ssub.s32 %s18, %s25
      %p116 = scmp.eq.s32.totalorder %s115, 0
      %s118 = sadd.s32 %s117, 1
      %s119 = scalar_select %p116, %s117, %s118
      %p122 = pneg %p116
      %p123 = scmp.eq.s32.totalorder %s18, 1
      %p124 = por %p122, %p123
      %p125 = scmp.ne.s32.totalorder %s117, %s120
      %p126 = scmp.eq.s32.totalorder %s18, 0
      %p127 = por %p125, %p126
      %p128 = scmp.ne.s32.totalorder %s117, %s120
      %p129 = scmp.eq.s32.totalorder %s23, 1
      %p130 = por %p128, %p129
      %p131 = scmp.ne.s32.totalorder %s120, %s121
      %p132 = scmp.eq.s32.totalorder %s23, 0
      %p133 = por %p131, %p132
      %p134 = scmp.ne.s32.totalorder %s120, %s121
      %p135 = scmp.eq.s32.totalorder %s24, 1
      %p136 = por %p134, %p135
      %p138 = scmp.ne.s32.totalorder %s121, %s137
      %p139 = scmp.eq.s32.totalorder %s24, 0
      %p140 = por %p138, %p139
      %s141 = ssub.s32 %s18, %s25
      %p142 = scmp.eq.s32.totalorder %s141, 0
      %s144 = sadd.s32 %s143, 1
      %s145 = scalar_select %p142, %s143, %s144
      %p148 = pneg %p142
      %p149 = scmp.eq.s32.totalorder %s18, 1
      %p150 = por %p148, %p149
      %p151 = scmp.ne.s32.totalorder %s143, %s146
      %p152 = scmp.eq.s32.totalorder %s18, 0
      %p153 = por %p151, %p152
      %p154 = scmp.ne.s32.totalorder %s143, %s146
      %p155 = scmp.eq.s32.totalorder %s23, 1
      %p156 = por %p154, %p155
      %p157 = scmp.ne.s32.totalorder %s146, %s147
      %p158 = scmp.eq.s32.totalorder %s23, 0
      %p159 = por %p157, %p158
      %p160 = scmp.ne.s32.totalorder %s146, %s147
      %p161 = scmp.eq.s32.totalorder %s24, 1
      %p162 = por %p160, %p161
      %p164 = scmp.ne.s32.totalorder %s147, %s163
      %p165 = scmp.eq.s32.totalorder %s24, 0
      %p166 = por %p164, %p165
      %p167 = scmp.le.s32.totalorder 1, %s18
      %p168 = scmp.lt.s32.totalorder %s18, 3
      %p169 = pnand %p167, %p168
      %p170 = pneg %p169
      // Predicated region
      $region9: #{tpu_custom_call.1} parent=5 // pred_check
        _
      $region10: #{tpu_custom_call.1} parent=5 // pred_check_branch
        %172 = sbr.rel (%p169) target = $region12
      $region11: #{tpu_custom_call.1} parent=5 // pred_region
        %s173 = ssub.s32 %s18, 1
        // Predicated region
        $region13: #{tpu_custom_call.1} parent=11 // pred_check
          %p174 = pneg %p65
        $region14: #{tpu_custom_call.1} parent=11 // pred_check_branch
          %176 = sbr.rel (%p174) target = $region16
        $region15: #{tpu_custom_call.1} parent=11 // pred_region
          _
        $region16: #{tpu_custom_call.1} parent=11 // pred_fallthru
          _
        // Predicated region
        $region17: #{tpu_custom_call.1} parent=11 // pred_check
          %p177 = pneg %p86
        $region18: #{tpu_custom_call.1} parent=11 // pred_check_branch
          %179 = sbr.rel (%p177) target = $region20
        $region19: #{tpu_custom_call.1} parent=11 // pred_region
          _
        $region20: #{tpu_custom_call.1} parent=11 // pred_fallthru
          _
        // Predicated region
        $region21: #{tpu_custom_call.1} parent=11 // pred_check
          %p180 = pneg %p107
        $region22: #{tpu_custom_call.1} parent=11 // pred_check_branch
          %182 = sbr.rel (%p180) target = $region24
        $region23: #{tpu_custom_call.1} parent=11 // pred_region
          _
        $region24: #{tpu_custom_call.1} parent=11 // pred_fallthru
          _
      $region12: #{tpu_custom_call.1} parent=5 // pred_fallthru
        _
      %p183 = scmp.lt.s32.totalorder %s18, 2
      // Predicated region
      $region25: #{tpu_custom_call.1} parent=5 // pred_check
        %p184 = pneg %p183
      $region26: #{tpu_custom_call.1} parent=5 // pred_check_branch
        %186 = sbr.rel (%p184) target = $region28
      $region27: #{tpu_custom_call.1} parent=5 // pred_region
        // Predicated region
        $region29: #{tpu_custom_call.1} parent=27 // pred_check
          %p187 = pneg %p38
        $region30: #{tpu_custom_call.1} parent=27 // pred_check_branch
          %189 = sbr.rel (%p187) target = $region32
        $region31: #{tpu_custom_call.1} parent=27 // pred_region
          %s190 = smul.u32 64, %s18
          %p191 = scmp.lt.s32.totalorder %s190, 127
          %s192 = scalar_select %p191, %s190, 127
          %s193 = smul.addr %s192, 4
          %s194 = scalar_lea.vmem %s0, %s193
          %s195 = smul.u32 64, %s18
        $region32: #{tpu_custom_call.1} parent=27 // pred_fallthru
          _
      $region28: #{tpu_custom_call.1} parent=5 // pred_fallthru
        _
      %p196 = scmp.le.s32.totalorder 1, %s18
      %p197 = scmp.lt.s32.totalorder %s18, 3
      %p198 = pnand %p196, %p197
      %p199 = pneg %p198
      // Predicated region
      $region33: #{tpu_custom_call.1} parent=5 // pred_check
        _
      $region34: #{tpu_custom_call.1} parent=5 // pred_check_branch
        %201 = sbr.rel (%p198) target = $region36
      $region35: #{tpu_custom_call.1} parent=5 // pred_region
        %s202 = ssub.s32 %s18, 1
        %s203 = smul.u32 64, %s23
        %p204 = scmp.lt.s32.totalorder %s203, 127
        %s205 = scalar_select %p204, %s203, 127
        %s206 = smul.addr %s205, 4
        %s207 = scalar_lea.vmem %s0, %s206
        %p208 = pneg %p44
        %p209 = pneg %p41
        %p210 = pneg %p65
        %p211 = pneg %p62
        %p212 = pneg %p86
        %p213 = pneg %p83
        %p214 = pneg %p107
        %p215 = pneg %p104
        %p216 = pneg %p133
        %p217 = pneg %p130
        %s218 = sand.u32 %s120, 1
        %s219 = scalar_lea.sflag [#allocation3], %s218
        %s220 = sand.u32 %s120, 1
        %s221 = smul.addr %s220, 256
        %s222 = scalar_lea.vmem [#allocation2], %s221
        %p223 = pneg %p159
        %p224 = pneg %p156
        %s225 = sand.u32 %s146, 1
        %s226 = scalar_lea.sflag [#allocation5], %s225
        %s227 = sand.u32 %s146, 1
        %s228 = smul.addr %s227, 256
        %s229 = scalar_lea.vmem [#allocation4], %s228
        %s230 = smul.u32 64, %s23
        %p231 = scmp.lt.s32.totalorder %s230, 127
        %s232 = scalar_select %p231, %s230, 127
        %s233 = smul.addr %s232, 4
        %s234 = scalar_lea.vmem %s0, %s233
        %s235 = smul.u32 64, %s23
        %s236 = smul.u32 64, %s23
        %s237 = smul.u32 64, %s23
        %v239 = vld [vmem:[%s2] sm:$0xff]
        %v240 = vld [vmem:[%s234] sm:$0xf]
        %v241 = vld [vmem:[%s234 + $0x4] sm:$0xf]
        %v242 = vld [vmem:[%s234 + $0x8] sm:$0xf]
        %v243 = vld [vmem:[%s234 + $0xc] sm:$0xf]
        %v244 = vld [vmem:[%s234 + $0x10] sm:$0xf]
        %v245 = vld [vmem:[%s234 + $0x14] sm:$0xf]
        %v246 = vld [vmem:[%s234 + $0x18] sm:$0xf]
        %v247 = vld [vmem:[%s234 + $0x1c] sm:$0xf]
        %v248 = vld [vmem:[%s234 + $0x20] sm:$0xf]
        %v249 = vld [vmem:[%s234 + $0x24] sm:$0xf]
        %v250 = vld [vmem:[%s234 + $0x28] sm:$0xf]
        %v251 = vld [vmem:[%s234 + $0x2c] sm:$0xf]
        %v252 = vld [vmem:[%s234 + $0x30] sm:$0xf]
        %v253 = vld [vmem:[%s234 + $0x34] sm:$0xf]
        %v254 = vld [vmem:[%s234 + $0x38] sm:$0xf]
        %v255 = vld [vmem:[%s234 + $0x3c] sm:$0xf]
        %v256 = vld [vmem:[%s234 + $0x40] sm:$0xf]
        %v257 = vld [vmem:[%s234 + $0x44] sm:$0xf]
        %v258 = vld [vmem:[%s234 + $0x48] sm:$0xf]
        %v259 = vld [vmem:[%s234 + $0x4c] sm:$0xf]
        %v260 = vld [vmem:[%s234 + $0x50] sm:$0xf]
        %v261 = vld [vmem:[%s234 + $0x54] sm:$0xf]
        %v262 = vld [vmem:[%s234 + $0x58] sm:$0xf]
        %v263 = vld [vmem:[%s234 + $0x5c] sm:$0xf]
        %v264 = vld [vmem:[%s234 + $0x60] sm:$0xf]
        %v265 = vld [vmem:[%s234 + $0x64] sm:$0xf]
        %v266 = vld [vmem:[%s234 + $0x68] sm:$0xf]
        %v267 = vld [vmem:[%s234 + $0x6c] sm:$0xf]
        %v268 = vld [vmem:[%s234 + $0x70] sm:$0xf]
        %v269 = vld [vmem:[%s234 + $0x74] sm:$0xf]
        %v270 = vld [vmem:[%s234 + $0x78] sm:$0xf]
        %v271 = vld [vmem:[%s234 + $0x7c] sm:$0xf]
        %v272 = vld [vmem:[%s234 + $0x80] sm:$0xf]
        %v273 = vld [vmem:[%s234 + $0x84] sm:$0xf]
        %v274 = vld [vmem:[%s234 + $0x88] sm:$0xf]
        %v275 = vld [vmem:[%s234 + $0x8c] sm:$0xf]
        %v276 = vld [vmem:[%s234 + $0x90] sm:$0xf]
        %v277 = vld [vmem:[%s234 + $0x94] sm:$0xf]
        %v278 = vld [vmem:[%s234 + $0x98] sm:$0xf]
        %v279 = vld [vmem:[%s234 + $0x9c] sm:$0xf]
        %v280 = vld [vmem:[%s234 + $0xa0] sm:$0xf]
        %v281 = vld [vmem:[%s234 + $0xa4] sm:$0xf]
        %v282 = vld [vmem:[%s234 + $0xa8] sm:$0xf]
        %v283 = vld [vmem:[%s234 + $0xac] sm:$0xf]
        %v284 = vld [vmem:[%s234 + $0xb0] sm:$0xf]
        %v285 = vld [vmem:[%s234 + $0xb4] sm:$0xf]
        %v286 = vld [vmem:[%s234 + $0xb8] sm:$0xf]
        %v287 = vld [vmem:[%s234 + $0xbc] sm:$0xf]
        %v288 = vld [vmem:[%s234 + $0xc0] sm:$0xf]
        %v289 = vld [vmem:[%s234 + $0xc4] sm:$0xf]
        %v290 = vld [vmem:[%s234 + $0xc8] sm:$0xf]
        %v291 = vld [vmem:[%s234 + $0xcc] sm:$0xf]
        %v292 = vld [vmem:[%s234 + $0xd0] sm:$0xf]
        %v293 = vld [vmem:[%s234 + $0xd4] sm:$0xf]
        %v294 = vld [vmem:[%s234 + $0xd8] sm:$0xf]
        %v295 = vld [vmem:[%s234 + $0xdc] sm:$0xf]
        %v296 = vld [vmem:[%s234 + $0xe0] sm:$0xf]
        %v297 = vld [vmem:[%s234 + $0xe4] sm:$0xf]
        %v298 = vld [vmem:[%s234 + $0xe8] sm:$0xf]
        %v299 = vld [vmem:[%s234 + $0xec] sm:$0xf]
        %v300 = vld [vmem:[%s234 + $0xf0] sm:$0xf]
        %v301 = vld [vmem:[%s234 + $0xf4] sm:$0xf]
        %v302 = vld [vmem:[%s234 + $0xf8] sm:$0xf]
        %v303 = vld [vmem:[%s234 + $0xfc] sm:$0xf]
        %v304 = vld [vmem:[%s1] sm:$0xf]
        %v305 = vld [vmem:[%s1 + $0x4] sm:$0xf]
        %v306 = vperm.slane %v239, 0
        %v371 = vunpack.c.l.b16 %v240
        %v372 = vunpack.c.l.b16 %v241
        %v373 = vunpack.c.l.b16 %v242
        %v374 = vunpack.c.l.b16 %v243
        %v375 = vunpack.c.l.b16 %v244
        %v376 = vunpack.c.l.b16 %v245
        %v377 = vunpack.c.l.b16 %v246
        %v378 = vunpack.c.l.b16 %v247
        %v379 = vunpack.c.l.b16 %v248
        %v380 = vunpack.c.l.b16 %v249
        %v381 = vunpack.c.l.b16 %v250
        %v382 = vunpack.c.l.b16 %v251
        %v383 = vunpack.c.l.b16 %v252
        %v384 = vunpack.c.l.b16 %v253
        %v385 = vunpack.c.l.b16 %v254
        %v386 = vunpack.c.l.b16 %v255
        %v387 = vunpack.c.l.b16 %v256
        %v388 = vunpack.c.l.b16 %v257
        %v389 = vunpack.c.l.b16 %v258
        %v390 = vunpack.c.l.b16 %v259
        %v391 = vunpack.c.l.b16 %v260
        %v392 = vunpack.c.l.b16 %v261
        %v393 = vunpack.c.l.b16 %v262
        %v394 = vunpack.c.l.b16 %v263
        %v395 = vunpack.c.l.b16 %v264
        %v396 = vunpack.c.l.b16 %v265
        %v397 = vunpack.c.l.b16 %v266
        %v398 = vunpack.c.l.b16 %v267
        %v399 = vunpack.c.l.b16 %v268
        %v400 = vunpack.c.l.b16 %v269
        %v401 = vunpack.c.l.b16 %v270
        %v402 = vunpack.c.l.b16 %v271
        %v403 = vunpack.c.l.b16 %v272
        %v404 = vunpack.c.l.b16 %v273
        %v405 = vunpack.c.l.b16 %v274
        %v406 = vunpack.c.l.b16 %v275
        %v407 = vunpack.c.l.b16 %v276
        %v408 = vunpack.c.l.b16 %v277
        %v409 = vunpack.c.l.b16 %v278
        %v410 = vunpack.c.l.b16 %v279
        %v411 = vunpack.c.l.b16 %v280
        %v412 = vunpack.c.l.b16 %v281
        %v413 = vunpack.c.l.b16 %v282
        %v414 = vunpack.c.l.b16 %v283
        %v415 = vunpack.c.l.b16 %v284
        %v416 = vunpack.c.l.b16 %v285
        %v417 = vunpack.c.l.b16 %v286
        %v418 = vunpack.c.l.b16 %v287
        %v419 = vunpack.c.l.b16 %v288
        %v420 = vunpack.c.l.b16 %v289
        %v421 = vunpack.c.l.b16 %v290
        %v422 = vunpack.c.l.b16 %v291
        %v423 = vunpack.c.l.b16 %v292
        %v424 = vunpack.c.l.b16 %v293
        %v425 = vunpack.c.l.b16 %v294
        %v426 = vunpack.c.l.b16 %v295
        %v427 = vunpack.c.l.b16 %v296
        %v428 = vunpack.c.l.b16 %v297
        %v429 = vunpack.c.l.b16 %v298
        %v430 = vunpack.c.l.b16 %v299
        %v431 = vunpack.c.l.b16 %v300
        %v432 = vunpack.c.l.b16 %v301
        %v433 = vunpack.c.l.b16 %v302
        %v434 = vunpack.c.l.b16 %v303
        %v435 = vpack.c.b16 %v372, %v371
        %v436 = vpack.c.b16 %v374, %v373
        %v437 = vpack.c.b16 %v376, %v375
        %v438 = vpack.c.b16 %v378, %v377
        %v439 = vpack.c.b16 %v380, %v379
        %v440 = vpack.c.b16 %v382, %v381
        %v441 = vpack.c.b16 %v384, %v383
        %v442 = vpack.c.b16 %v386, %v385
        %v443 = vpack.c.b16 %v388, %v387
        %v444 = vpack.c.b16 %v390, %v389
        %v445 = vpack.c.b16 %v392, %v391
        %v446 = vpack.c.b16 %v394, %v393
        %v447 = vpack.c.b16 %v396, %v395
        %v448 = vpack.c.b16 %v398, %v397
        %v449 = vpack.c.b16 %v400, %v399
        %v450 = vpack.c.b16 %v402, %v401
        %v451 = vpack.c.b16 %v404, %v403
        %v452 = vpack.c.b16 %v406, %v405
        %v453 = vpack.c.b16 %v408, %v407
        %v454 = vpack.c.b16 %v410, %v409
        %v455 = vpack.c.b16 %v412, %v411
        %v456 = vpack.c.b16 %v414, %v413
        %v457 = vpack.c.b16 %v416, %v415
        %v458 = vpack.c.b16 %v418, %v417
        %v459 = vpack.c.b16 %v420, %v419
        %v460 = vpack.c.b16 %v422, %v421
        %v461 = vpack.c.b16 %v424, %v423
        %v462 = vpack.c.b16 %v426, %v425
        %v463 = vpack.c.b16 %v428, %v427
        %v464 = vpack.c.b16 %v430, %v429
        %v465 = vpack.c.b16 %v432, %v431
        %v466 = vpack.c.b16 %v434, %v433
        %v469 = vunpack.c.l.b16 %v304
        %v470 = vunpack.c.l.b16 %v305
        %v471 = vpack.c.b16 %v470, %v469
        %vm473 = vcmask 130048
        %v475 = vsel %vm473, %v435, 0
        %v478 = vsel %vm473, %v436, 0
        %v481 = vsel %vm473, %v437, 0
        %v484 = vsel %vm473, %v438, 0
        %v487 = vsel %vm473, %v439, 0
        %v490 = vsel %vm473, %v440, 0
        %v493 = vsel %vm473, %v441, 0
        %v496 = vsel %vm473, %v442, 0
        %v499 = vsel %vm473, %v443, 0
        %v502 = vsel %vm473, %v444, 0
        %v505 = vsel %vm473, %v445, 0
        %v508 = vsel %vm473, %v446, 0
        %v511 = vsel %vm473, %v447, 0
        %v514 = vsel %vm473, %v448, 0
        %v517 = vsel %vm473, %v449, 0
        %v520 = vsel %vm473, %v450, 0
        %v523 = vsel %vm473, %v451, 0
        %v526 = vsel %vm473, %v452, 0
        %v529 = vsel %vm473, %v453, 0
        %v532 = vsel %vm473, %v454, 0
        %v535 = vsel %vm473, %v455, 0
        %v538 = vsel %vm473, %v456, 0
        %v541 = vsel %vm473, %v457, 0
        %v544 = vsel %vm473, %v458, 0
        %v547 = vsel %vm473, %v459, 0
        %v550 = vsel %vm473, %v460, 0
        %v553 = vsel %vm473, %v461, 0
        %v556 = vsel %vm473, %v462, 0
        %v559 = vsel %vm473, %v463, 0
        %v562 = vsel %vm473, %v464, 0
        %v565 = vsel %vm473, %v465, 0
        %v568 = vsel %vm473, %v466, 0
        %570 = vmatpush.bf16.msra.mxu0 0
        %571 = vmatpush.bf16.msra.mxu0 0
        %572 = vmatpush.bf16.msra.mxu0 0
        %573 = vmatpush.bf16.msra.mxu0 0
        %574 = vmatpush.bf16.msra.mxu0 0
        %575 = vmatpush.bf16.msra.mxu0 0
        %576 = vmatpush.bf16.msra.mxu0 0
        %577 = vmatpush.bf16.msra.mxu0 %v471
        %578 = vmatmul.bf16.gmra.mxu0 %v475
        %v579 = vpop.f32.mrf.mxu0
        %v580 = vadd.f32 %v306, %v579
        %v581 = vpop.f32.mrf.mxu0
        %v582 = vadd.f32 %v306, %v581
        %583 = vmatmul.bf16.gmra.mxu0 %v478
        %v584 = vpop.f32.mrf.mxu0
        %v585 = vadd.f32 %v306, %v584
        %v586 = vpop.f32.mrf.mxu0
        %v587 = vadd.f32 %v306, %v586
        %588 = vmatmul.bf16.gmra.mxu0 %v481
        %v589 = vpop.f32.mrf.mxu0
        %v590 = vadd.f32 %v306, %v589
        %v591 = vpop.f32.mrf.mxu0
        %v592 = vadd.f32 %v306, %v591
        %593 = vmatmul.bf16.gmra.mxu0 %v484
        %v594 = vpop.f32.mrf.mxu0
        %v595 = vadd.f32 %v306, %v594
        %v596 = vpop.f32.mrf.mxu0
        %v597 = vadd.f32 %v306, %v596
        %598 = vmatmul.bf16.gmra.mxu0 %v487
        %v599 = vpop.f32.mrf.mxu0
        %v600 = vadd.f32 %v306, %v599
        %v601 = vpop.f32.mrf.mxu0
        %v602 = vadd.f32 %v306, %v601
        %603 = vmatmul.bf16.gmra.mxu0 %v490
        %v604 = vpop.f32.mrf.mxu0
        %v605 = vadd.f32 %v306, %v604
        %v606 = vpop.f32.mrf.mxu0
        %v607 = vadd.f32 %v306, %v606
        %608 = vmatmul.bf16.gmra.mxu0 %v493
        %v609 = vpop.f32.mrf.mxu0
        %v610 = vadd.f32 %v306, %v609
        %v611 = vpop.f32.mrf.mxu0
        %v612 = vadd.f32 %v306, %v611
        %613 = vmatmul.bf16.gmra.mxu0 %v496
        %v614 = vpop.f32.mrf.mxu0
        %v615 = vadd.f32 %v306, %v614
        %v616 = vpop.f32.mrf.mxu0
        %v617 = vadd.f32 %v306, %v616
        %618 = vmatmul.bf16.gmra.mxu0 %v499
        %v619 = vpop.f32.mrf.mxu0
        %v620 = vadd.f32 %v306, %v619
        %v621 = vpop.f32.mrf.mxu0
        %v622 = vadd.f32 %v306, %v621
        %623 = vmatmul.bf16.gmra.mxu0 %v502
        %v624 = vpop.f32.mrf.mxu0
        %v625 = vadd.f32 %v306, %v624
        %v626 = vpop.f32.mrf.mxu0
        %v627 = vadd.f32 %v306, %v626
        %628 = vmatmul.bf16.gmra.mxu0 %v505
        %v629 = vpop.f32.mrf.mxu0
        %v630 = vadd.f32 %v306, %v629
        %v631 = vpop.f32.mrf.mxu0
        %v632 = vadd.f32 %v306, %v631
        %633 = vmatmul.bf16.gmra.mxu0 %v508
        %v634 = vpop.f32.mrf.mxu0
        %v635 = vadd.f32 %v306, %v634
        %v636 = vpop.f32.mrf.mxu0
        %v637 = vadd.f32 %v306, %v636
        %638 = vmatmul.bf16.gmra.mxu0 %v511
        %v639 = vpop.f32.mrf.mxu0
        %v640 = vadd.f32 %v306, %v639
        %v641 = vpop.f32.mrf.mxu0
        %v642 = vadd.f32 %v306, %v641
        %643 = vmatmul.bf16.gmra.mxu0 %v514
        %v644 = vpop.f32.mrf.mxu0
        %v645 = vadd.f32 %v306, %v644
        %v646 = vpop.f32.mrf.mxu0
        %v647 = vadd.f32 %v306, %v646
        %648 = vmatmul.bf16.gmra.mxu0 %v517
        %v649 = vpop.f32.mrf.mxu0
        %v650 = vadd.f32 %v306, %v649
        %v651 = vpop.f32.mrf.mxu0
        %v652 = vadd.f32 %v306, %v651
        %653 = vmatmul.bf16.gmra.mxu0 %v520
        %v654 = vpop.f32.mrf.mxu0
        %v655 = vadd.f32 %v306, %v654
        %v656 = vpop.f32.mrf.mxu0
        %v657 = vadd.f32 %v306, %v656
        %658 = vmatmul.bf16.gmra.mxu0 %v523
        %v659 = vpop.f32.mrf.mxu0
        %v660 = vadd.f32 %v306, %v659
        %v661 = vpop.f32.mrf.mxu0
        %v662 = vadd.f32 %v306, %v661
        %663 = vmatmul.bf16.gmra.mxu0 %v526
        %v664 = vpop.f32.mrf.mxu0
        %v665 = vadd.f32 %v306, %v664
        %v666 = vpop.f32.mrf.mxu0
        %v667 = vadd.f32 %v306, %v666
        %668 = vmatmul.bf16.gmra.mxu0 %v529
        %v669 = vpop.f32.mrf.mxu0
        %v670 = vadd.f32 %v306, %v669
        %v671 = vpop.f32.mrf.mxu0
        %v672 = vadd.f32 %v306, %v671
        %673 = vmatmul.bf16.gmra.mxu0 %v532
        %v674 = vpop.f32.mrf.mxu0
        %v675 = vadd.f32 %v306, %v674
        %v676 = vpop.f32.mrf.mxu0
        %v677 = vadd.f32 %v306, %v676
        %678 = vmatmul.bf16.gmra.mxu0 %v535
        %v679 = vpop.f32.mrf.mxu0
        %v680 = vadd.f32 %v306, %v679
        %v681 = vpop.f32.mrf.mxu0
        %v682 = vadd.f32 %v306, %v681
        %683 = vmatmul.bf16.gmra.mxu0 %v538
        %v684 = vpop.f32.mrf.mxu0
        %v685 = vadd.f32 %v306, %v684
        %v686 = vpop.f32.mrf.mxu0
        %v687 = vadd.f32 %v306, %v686
        %688 = vmatmul.bf16.gmra.mxu0 %v541
        %v689 = vpop.f32.mrf.mxu0
        %v690 = vadd.f32 %v306, %v689
        %v691 = vpop.f32.mrf.mxu0
        %v692 = vadd.f32 %v306, %v691
        %693 = vmatmul.bf16.gmra.mxu0 %v544
        %v694 = vpop.f32.mrf.mxu0
        %v695 = vadd.f32 %v306, %v694
        %v696 = vpop.f32.mrf.mxu0
        %v697 = vadd.f32 %v306, %v696
        %698 = vmatmul.bf16.gmra.mxu0 %v547
        %v699 = vpop.f32.mrf.mxu0
        %v700 = vadd.f32 %v306, %v699
        %v701 = vpop.f32.mrf.mxu0
        %v702 = vadd.f32 %v306, %v701
        %703 = vmatmul.bf16.gmra.mxu0 %v550
        %v704 = vpop.f32.mrf.mxu0
        %v705 = vadd.f32 %v306, %v704
        %v706 = vpop.f32.mrf.mxu0
        %v707 = vadd.f32 %v306, %v706
        %708 = vmatmul.bf16.gmra.mxu0 %v553
        %v709 = vpop.f32.mrf.mxu0
        %v710 = vadd.f32 %v306, %v709
        %v711 = vpop.f32.mrf.mxu0
        %v712 = vadd.f32 %v306, %v711
        %713 = vmatmul.bf16.gmra.mxu0 %v556
        %v714 = vpop.f32.mrf.mxu0
        %v715 = vadd.f32 %v306, %v714
        %v716 = vpop.f32.mrf.mxu0
        %v717 = vadd.f32 %v306, %v716
        %718 = vmatmul.bf16.gmra.mxu0 %v559
        %v719 = vpop.f32.mrf.mxu0
        %v720 = vadd.f32 %v306, %v719
        %v721 = vpop.f32.mrf.mxu0
        %v722 = vadd.f32 %v306, %v721
        %723 = vmatmul.bf16.gmra.mxu0 %v562
        %v724 = vpop.f32.mrf.mxu0
        %v725 = vadd.f32 %v306, %v724
        %v726 = vpop.f32.mrf.mxu0
        %v727 = vadd.f32 %v306, %v726
        %728 = vmatmul.bf16.gmra.mxu0 %v565
        %v729 = vpop.f32.mrf.mxu0
        %v730 = vadd.f32 %v306, %v729
        %v731 = vpop.f32.mrf.mxu0
        %v732 = vadd.f32 %v306, %v731
        %733 = vmatmul.bf16.gmra.mxu0 %v568
        %v734 = vpop.f32.mrf.mxu0
        %v735 = vadd.f32 %v306, %v734
        %v736 = vpop.f32.mrf.mxu0
        %v737 = vadd.f32 %v306, %v736
        %738 = vdwg.mxu0
        %v739 = vpack.c.bf16 %v580, %v580
        %v740 = vpack.c.bf16 %v582, %v582
        %v741 = vpack.c.bf16 %v585, %v585
        %v742 = vpack.c.bf16 %v587, %v587
        %v743 = vpack.c.bf16 %v590, %v590
        %v744 = vpack.c.bf16 %v592, %v592
        %v745 = vpack.c.bf16 %v595, %v595
        %v746 = vpack.c.bf16 %v597, %v597
        %v747 = vpack.c.bf16 %v600, %v600
        %v748 = vpack.c.bf16 %v602, %v602
        %v749 = vpack.c.bf16 %v605, %v605
        %v750 = vpack.c.bf16 %v607, %v607
        %v751 = vpack.c.bf16 %v610, %v610
        %v752 = vpack.c.bf16 %v612, %v612
        %v753 = vpack.c.bf16 %v615, %v615
        %v754 = vpack.c.bf16 %v617, %v617
        %v755 = vpack.c.bf16 %v620, %v620
        %v756 = vpack.c.bf16 %v622, %v622
        %v757 = vpack.c.bf16 %v625, %v625
        %v758 = vpack.c.bf16 %v627, %v627
        %v759 = vpack.c.bf16 %v630, %v630
        %v760 = vpack.c.bf16 %v632, %v632
        %v761 = vpack.c.bf16 %v635, %v635
        %v762 = vpack.c.bf16 %v637, %v637
        %v763 = vpack.c.bf16 %v640, %v640
        %v764 = vpack.c.bf16 %v642, %v642
        %v765 = vpack.c.bf16 %v645, %v645
        %v766 = vpack.c.bf16 %v647, %v647
        %v767 = vpack.c.bf16 %v650, %v650
        %v768 = vpack.c.bf16 %v652, %v652
        %v769 = vpack.c.bf16 %v655, %v655
        %v770 = vpack.c.bf16 %v657, %v657
        %v771 = vpack.c.bf16 %v660, %v660
        %v772 = vpack.c.bf16 %v662, %v662
        %v773 = vpack.c.bf16 %v665, %v665
        %v774 = vpack.c.bf16 %v667, %v667
        %v775 = vpack.c.bf16 %v670, %v670
        %v776 = vpack.c.bf16 %v672, %v672
        %v777 = vpack.c.bf16 %v675, %v675
        %v778 = vpack.c.bf16 %v677, %v677
        %v779 = vpack.c.bf16 %v680, %v680
        %v780 = vpack.c.bf16 %v682, %v682
        %v781 = vpack.c.bf16 %v685, %v685
        %v782 = vpack.c.bf16 %v687, %v687
        %v783 = vpack.c.bf16 %v690, %v690
        %v784 = vpack.c.bf16 %v692, %v692
        %v785 = vpack.c.bf16 %v695, %v695
        %v786 = vpack.c.bf16 %v697, %v697
        %v787 = vpack.c.bf16 %v700, %v700
        %v788 = vpack.c.bf16 %v702, %v702
        %v789 = vpack.c.bf16 %v705, %v705
        %v790 = vpack.c.bf16 %v707, %v707
        %v791 = vpack.c.bf16 %v710, %v710
        %v792 = vpack.c.bf16 %v712, %v712
        %v793 = vpack.c.bf16 %v715, %v715
        %v794 = vpack.c.bf16 %v717, %v717
        %v795 = vpack.c.bf16 %v720, %v720
        %v796 = vpack.c.bf16 %v722, %v722
        %v797 = vpack.c.bf16 %v725, %v725
        %v798 = vpack.c.bf16 %v727, %v727
        %v799 = vpack.c.bf16 %v730, %v730
        %v800 = vpack.c.bf16 %v732, %v732
        %v801 = vpack.c.bf16 %v735, %v735
        %v802 = vpack.c.bf16 %v737, %v737
        %803 = vst [vmem:[%s222] sm:$0xf] %v739
        %804 = vst [vmem:[%s222 + $0x4] sm:$0xf] %v740
        %805 = vst [vmem:[%s222 + $0x8] sm:$0xf] %v741
        %806 = vst [vmem:[%s222 + $0xc] sm:$0xf] %v742
        %807 = vst [vmem:[%s222 + $0x10] sm:$0xf] %v743
        %808 = vst [vmem:[%s222 + $0x14] sm:$0xf] %v744
        %809 = vst [vmem:[%s222 + $0x18] sm:$0xf] %v745
        %810 = vst [vmem:[%s222 + $0x1c] sm:$0xf] %v746
        %811 = vst [vmem:[%s222 + $0x20] sm:$0xf] %v747
        %812 = vst [vmem:[%s222 + $0x24] sm:$0xf] %v748
        %813 = vst [vmem:[%s222 + $0x28] sm:$0xf] %v749
        %814 = vst [vmem:[%s222 + $0x2c] sm:$0xf] %v750
        %815 = vst [vmem:[%s222 + $0x30] sm:$0xf] %v751
        %816 = vst [vmem:[%s222 + $0x34] sm:$0xf] %v752
        %817 = vst [vmem:[%s222 + $0x38] sm:$0xf] %v753
        %818 = vst [vmem:[%s222 + $0x3c] sm:$0xf] %v754
        %819 = vst [vmem:[%s222 + $0x40] sm:$0xf] %v755
        %820 = vst [vmem:[%s222 + $0x44] sm:$0xf] %v756
        %821 = vst [vmem:[%s222 + $0x48] sm:$0xf] %v757
        %822 = vst [vmem:[%s222 + $0x4c] sm:$0xf] %v758
        %823 = vst [vmem:[%s222 + $0x50] sm:$0xf] %v759
        %824 = vst [vmem:[%s222 + $0x54] sm:$0xf] %v760
        %825 = vst [vmem:[%s222 + $0x58] sm:$0xf] %v761
        %826 = vst [vmem:[%s222 + $0x5c] sm:$0xf] %v762
        %827 = vst [vmem:[%s222 + $0x60] sm:$0xf] %v763
        %828 = vst [vmem:[%s222 + $0x64] sm:$0xf] %v764
        %829 = vst [vmem:[%s222 + $0x68] sm:$0xf] %v765
        %830 = vst [vmem:[%s222 + $0x6c] sm:$0xf] %v766
        %831 = vst [vmem:[%s222 + $0x70] sm:$0xf] %v767
        %832 = vst [vmem:[%s222 + $0x74] sm:$0xf] %v768
        %833 = vst [vmem:[%s222 + $0x78] sm:$0xf] %v769
        %834 = vst [vmem:[%s222 + $0x7c] sm:$0xf] %v770
        %835 = vst [vmem:[%s222 + $0x80] sm:$0xf] %v771
        %836 = vst [vmem:[%s222 + $0x84] sm:$0xf] %v772
        %837 = vst [vmem:[%s222 + $0x88] sm:$0xf] %v773
        %838 = vst [vmem:[%s222 + $0x8c] sm:$0xf] %v774
        %839 = vst [vmem:[%s222 + $0x90] sm:$0xf] %v775
        %840 = vst [vmem:[%s222 + $0x94] sm:$0xf] %v776
        %841 = vst [vmem:[%s222 + $0x98] sm:$0xf] %v777
        %842 = vst [vmem:[%s222 + $0x9c] sm:$0xf] %v778
        %843 = vst [vmem:[%s222 + $0xa0] sm:$0xf] %v779
        %844 = vst [vmem:[%s222 + $0xa4] sm:$0xf] %v780
        %845 = vst [vmem:[%s222 + $0xa8] sm:$0xf] %v781
        %846 = vst [vmem:[%s222 + $0xac] sm:$0xf] %v782
        %847 = vst [vmem:[%s222 + $0xb0] sm:$0xf] %v783
        %848 = vst [vmem:[%s222 + $0xb4] sm:$0xf] %v784
        %849 = vst [vmem:[%s222 + $0xb8] sm:$0xf] %v785
        %850 = vst [vmem:[%s222 + $0xbc] sm:$0xf] %v786
        %851 = vst [vmem:[%s222 + $0xc0] sm:$0xf] %v787
        %852 = vst [vmem:[%s222 + $0xc4] sm:$0xf] %v788
        %853 = vst [vmem:[%s222 + $0xc8] sm:$0xf] %v789
        %854 = vst [vmem:[%s222 + $0xcc] sm:$0xf] %v790
        %855 = vst [vmem:[%s222 + $0xd0] sm:$0xf] %v791
        %856 = vst [vmem:[%s222 + $0xd4] sm:$0xf] %v792
        %857 = vst [vmem:[%s222 + $0xd8] sm:$0xf] %v793
        %858 = vst [vmem:[%s222 + $0xdc] sm:$0xf] %v794
        %859 = vst [vmem:[%s222 + $0xe0] sm:$0xf] %v795
        %860 = vst [vmem:[%s222 + $0xe4] sm:$0xf] %v796
        %861 = vst [vmem:[%s222 + $0xe8] sm:$0xf] %v797
        %862 = vst [vmem:[%s222 + $0xec] sm:$0xf] %v798
        %863 = vst [vmem:[%s222 + $0xf0] sm:$0xf] %v799
        %864 = vst [vmem:[%s222 + $0xf4] sm:$0xf] %v800
        %865 = vst [vmem:[%s222 + $0xf8] sm:$0xf] %v801
        %866 = vst [vmem:[%s222 + $0xfc] sm:$0xf] %v802
        %s867 = smul.u32 %s23, 512
        %v868 = vlaneseq
        %v869 = vshrl.u32 %v868, 7
        %v870 = vadd.s32 %v869, 8
        %v871 = vadd.s32 %v869, 16
        %v872 = vadd.s32 %v869, 24
        %v873 = vadd.s32 %v869, 32
        %v874 = vadd.s32 %v869, 40
        %v875 = vadd.s32 %v869, 48
        %v876 = vadd.s32 %v869, 56
        %v877 = vadd.s32 %v869, 64
        %v878 = vadd.s32 %v869, 72
        %v879 = vadd.s32 %v869, 80
        %v880 = vadd.s32 %v869, 88
        %v881 = vadd.s32 %v869, 96
        %v882 = vadd.s32 %v869, 104
        %v883 = vadd.s32 %v869, 112
        %v884 = vadd.s32 %v869, 120
        %v885 = vadd.s32 %v869, 128
        %v886 = vadd.s32 %v869, 136
        %v887 = vadd.s32 %v869, 144
        %v888 = vadd.s32 %v869, 152
        %v889 = vadd.s32 %v869, 160
        %v890 = vadd.s32 %v869, 168
        %v891 = vadd.s32 %v869, 176
        %v892 = vadd.s32 %v869, 184
        %v893 = vadd.s32 %v869, 192
        %v894 = vadd.s32 %v869, 200
        %v895 = vadd.s32 %v869, 208
        %v896 = vadd.s32 %v869, 216
        %v897 = vadd.s32 %v869, 224
        %v898 = vadd.s32 %v869, 232
        %v899 = vadd.s32 %v869, 240
        %v900 = vadd.s32 %v869, 248
        %v901 = vadd.s32 %v869, 256
        %v902 = vadd.s32 %v869, 264
        %v903 = vadd.s32 %v869, 272
        %v904 = vadd.s32 %v869, 280
        %v905 = vadd.s32 %v869, 288
        %v906 = vadd.s32 %v869, 296
        %v907 = vadd.s32 %v869, 304
        %v908 = vadd.s32 %v869, 312
        %v909 = vadd.s32 %v869, 320
        %v910 = vadd.s32 %v869, 328
        %v911 = vadd.s32 %v869, 336
        %v912 = vadd.s32 %v869, 344
        %v913 = vadd.s32 %v869, 352
        %v914 = vadd.s32 %v869, 360
        %v915 = vadd.s32 %v869, 368
        %v916 = vadd.s32 %v869, 376
        %v917 = vadd.s32 %v869, 384
        %v918 = vadd.s32 %v869, 392
        %v919 = vadd.s32 %v869, 400
        %v920 = vadd.s32 %v869, 408
        %v921 = vadd.s32 %v869, 416
        %v922 = vadd.s32 %v869, 424
        %v923 = vadd.s32 %v869, 432
        %v924 = vadd.s32 %v869, 440
        %v925 = vadd.s32 %v869, 448
        %v926 = vadd.s32 %v869, 456
        %v927 = vadd.s32 %v869, 464
        %v928 = vadd.s32 %v869, 472
        %v929 = vadd.s32 %v869, 480
        %v930 = vadd.s32 %v869, 488
        %v931 = vadd.s32 %v869, 496
        %v932 = vadd.s32 %v869, 504
        %v933 = vstv %s867
        %v934 = vadd.s32 %v933, %v869
        %v935 = vadd.s32 %v933, %v870
        %v936 = vadd.s32 %v933, %v871
        %v937 = vadd.s32 %v933, %v872
        %v938 = vadd.s32 %v933, %v873
        %v939 = vadd.s32 %v933, %v874
        %v940 = vadd.s32 %v933, %v875
        %v941 = vadd.s32 %v933, %v876
        %v942 = vadd.s32 %v933, %v877
        %v943 = vadd.s32 %v933, %v878
        %v944 = vadd.s32 %v933, %v879
        %v945 = vadd.s32 %v933, %v880
        %v946 = vadd.s32 %v933, %v881
        %v947 = vadd.s32 %v933, %v882
        %v948 = vadd.s32 %v933, %v883
        %v949 = vadd.s32 %v933, %v884
        %v950 = vadd.s32 %v933, %v885
        %v951 = vadd.s32 %v933, %v886
        %v952 = vadd.s32 %v933, %v887
        %v953 = vadd.s32 %v933, %v888
        %v954 = vadd.s32 %v933, %v889
        %v955 = vadd.s32 %v933, %v890
        %v956 = vadd.s32 %v933, %v891
        %v957 = vadd.s32 %v933, %v892
        %v958 = vadd.s32 %v933, %v893
        %v959 = vadd.s32 %v933, %v894
        %v960 = vadd.s32 %v933, %v895
        %v961 = vadd.s32 %v933, %v896
        %v962 = vadd.s32 %v933, %v897
        %v963 = vadd.s32 %v933, %v898
        %v964 = vadd.s32 %v933, %v899
        %v965 = vadd.s32 %v933, %v900
        %v966 = vadd.s32 %v933, %v901
        %v967 = vadd.s32 %v933, %v902
        %v968 = vadd.s32 %v933, %v903
        %v969 = vadd.s32 %v933, %v904
        %v970 = vadd.s32 %v933, %v905
        %v971 = vadd.s32 %v933, %v906
        %v972 = vadd.s32 %v933, %v907
        %v973 = vadd.s32 %v933, %v908
        %v974 = vadd.s32 %v933, %v909
        %v975 = vadd.s32 %v933, %v910
        %v976 = vadd.s32 %v933, %v911
        %v977 = vadd.s32 %v933, %v912
        %v978 = vadd.s32 %v933, %v913
        %v979 = vadd.s32 %v933, %v914
        %v980 = vadd.s32 %v933, %v915
        %v981 = vadd.s32 %v933, %v916
        %v982 = vadd.s32 %v933, %v917
        %v983 = vadd.s32 %v933, %v918
        %v984 = vadd.s32 %v933, %v919
        %v985 = vadd.s32 %v933, %v920
        %v986 = vadd.s32 %v933, %v921
        %v987 = vadd.s32 %v933, %v922
        %v988 = vadd.s32 %v933, %v923
        %v989 = vadd.s32 %v933, %v924
        %v990 = vadd.s32 %v933, %v925
        %v991 = vadd.s32 %v933, %v926
        %v992 = vadd.s32 %v933, %v927
        %v993 = vadd.s32 %v933, %v928
        %v994 = vadd.s32 %v933, %v929
        %v995 = vadd.s32 %v933, %v930
        %v996 = vadd.s32 %v933, %v931
        %v997 = vadd.s32 %v933, %v932
        %v998 = vcvt.s32.f32 %v934
        %v999 = vcvt.s32.f32 %v935
        %v1000 = vcvt.s32.f32 %v936
        %v1001 = vcvt.s32.f32 %v937
        %v1002 = vcvt.s32.f32 %v938
        %v1003 = vcvt.s32.f32 %v939
        %v1004 = vcvt.s32.f32 %v940
        %v1005 = vcvt.s32.f32 %v941
        %v1006 = vcvt.s32.f32 %v942
        %v1007 = vcvt.s32.f32 %v943
        %v1008 = vcvt.s32.f32 %v944
        %v1009 = vcvt.s32.f32 %v945
        %v1010 = vcvt.s32.f32 %v946
        %v1011 = vcvt.s32.f32 %v947
        %v1012 = vcvt.s32.f32 %v948
        %v1013 = vcvt.s32.f32 %v949
        %v1014 = vcvt.s32.f32 %v950
        %v1015 = vcvt.s32.f32 %v951
        %v1016 = vcvt.s32.f32 %v952
        %v1017 = vcvt.s32.f32 %v953
        %v1018 = vcvt.s32.f32 %v954
        %v1019 = vcvt.s32.f32 %v955
        %v1020 = vcvt.s32.f32 %v956
        %v1021 = vcvt.s32.f32 %v957
        %v1022 = vcvt.s32.f32 %v958
        %v1023 = vcvt.s32.f32 %v959
        %v1024 = vcvt.s32.f32 %v960
        %v1025 = vcvt.s32.f32 %v961
        %v1026 = vcvt.s32.f32 %v962
        %v1027 = vcvt.s32.f32 %v963
        %v1028 = vcvt.s32.f32 %v964
        %v1029 = vcvt.s32.f32 %v965
        %v1030 = vcvt.s32.f32 %v966
        %v1031 = vcvt.s32.f32 %v967
        %v1032 = vcvt.s32.f32 %v968
        %v1033 = vcvt.s32.f32 %v969
        %v1034 = vcvt.s32.f32 %v970
        %v1035 = vcvt.s32.f32 %v971
        %v1036 = vcvt.s32.f32 %v972
        %v1037 = vcvt.s32.f32 %v973
        %v1038 = vcvt.s32.f32 %v974
        %v1039 = vcvt.s32.f32 %v975
        %v1040 = vcvt.s32.f32 %v976
        %v1041 = vcvt.s32.f32 %v977
        %v1042 = vcvt.s32.f32 %v978
        %v1043 = vcvt.s32.f32 %v979
        %v1044 = vcvt.s32.f32 %v980
        %v1045 = vcvt.s32.f32 %v981
        %v1046 = vcvt.s32.f32 %v982
        %v1047 = vcvt.s32.f32 %v983
        %v1048 = vcvt.s32.f32 %v984
        %v1049 = vcvt.s32.f32 %v985
        %v1050 = vcvt.s32.f32 %v986
        %v1051 = vcvt.s32.f32 %v987
        %v1052 = vcvt.s32.f32 %v988
        %v1053 = vcvt.s32.f32 %v989
        %v1054 = vcvt.s32.f32 %v990
        %v1055 = vcvt.s32.f32 %v991
        %v1056 = vcvt.s32.f32 %v992
        %v1057 = vcvt.s32.f32 %v993
        %v1058 = vcvt.s32.f32 %v994
        %v1059 = vcvt.s32.f32 %v995
        %v1060 = vcvt.s32.f32 %v996
        %v1061 = vcvt.s32.f32 %v997
        %v1062 = vrcp.pop 512.0
        %v1063 = vmul.f32 512.0, %v1062
        %v1064 = vsub.f32 1.0, %v1063
        %v1065 = vmul.f32 %v1062, %v1064
        %v1066 = vadd.f32 %v1062, %v1065
        %vm1067 = vweird.f32 %v1062
        %v1068 = vsel %vm1067, %v1062, %v1066
        %v1069 = vmul.f32 %v998, %v1068
        %v1070 = vmul.f32 %v999, %v1068
        %v1071 = vmul.f32 %v1000, %v1068
        %v1072 = vmul.f32 %v1001, %v1068
        %v1073 = vmul.f32 %v1002, %v1068
        %v1074 = vmul.f32 %v1003, %v1068
        %v1075 = vmul.f32 %v1004, %v1068
        %v1076 = vmul.f32 %v1005, %v1068
        %v1077 = vmul.f32 %v1006, %v1068
        %v1078 = vmul.f32 %v1007, %v1068
        %v1079 = vmul.f32 %v1008, %v1068
        %v1080 = vmul.f32 %v1009, %v1068
        %v1081 = vmul.f32 %v1010, %v1068
        %v1082 = vmul.f32 %v1011, %v1068
        %v1083 = vmul.f32 %v1012, %v1068
        %v1084 = vmul.f32 %v1013, %v1068
        %v1085 = vmul.f32 %v1014, %v1068
        %v1086 = vmul.f32 %v1015, %v1068
        %v1087 = vmul.f32 %v1016, %v1068
        %v1088 = vmul.f32 %v1017, %v1068
        %v1089 = vmul.f32 %v1018, %v1068
        %v1090 = vmul.f32 %v1019, %v1068
        %v1091 = vmul.f32 %v1020, %v1068
        %v1092 = vmul.f32 %v1021, %v1068
        %v1093 = vmul.f32 %v1022, %v1068
        %v1094 = vmul.f32 %v1023, %v1068
        %v1095 = vmul.f32 %v1024, %v1068
        %v1096 = vmul.f32 %v1025, %v1068
        %v1097 = vmul.f32 %v1026, %v1068
        %v1098 = vmul.f32 %v1027, %v1068
        %v1099 = vmul.f32 %v1028, %v1068
        %v1100 = vmul.f32 %v1029, %v1068
        %v1101 = vmul.f32 %v1030, %v1068
        %v1102 = vmul.f32 %v1031, %v1068
        %v1103 = vmul.f32 %v1032, %v1068
        %v1104 = vmul.f32 %v1033, %v1068
        %v1105 = vmul.f32 %v1034, %v1068
        %v1106 = vmul.f32 %v1035, %v1068
        %v1107 = vmul.f32 %v1036, %v1068
        %v1108 = vmul.f32 %v1037, %v1068
        %v1109 = vmul.f32 %v1038, %v1068
        %v1110 = vmul.f32 %v1039, %v1068
        %v1111 = vmul.f32 %v1040, %v1068
        %v1112 = vmul.f32 %v1041, %v1068
        %v1113 = vmul.f32 %v1042, %v1068
        %v1114 = vmul.f32 %v1043, %v1068
        %v1115 = vmul.f32 %v1044, %v1068
        %v1116 = vmul.f32 %v1045, %v1068
        %v1117 = vmul.f32 %v1046, %v1068
        %v1118 = vmul.f32 %v1047, %v1068
        %v1119 = vmul.f32 %v1048, %v1068
        %v1120 = vmul.f32 %v1049, %v1068
        %v1121 = vmul.f32 %v1050, %v1068
        %v1122 = vmul.f32 %v1051, %v1068
        %v1123 = vmul.f32 %v1052, %v1068
        %v1124 = vmul.f32 %v1053, %v1068
        %v1125 = vmul.f32 %v1054, %v1068
        %v1126 = vmul.f32 %v1055, %v1068
        %v1127 = vmul.f32 %v1056, %v1068
        %v1128 = vmul.f32 %v1057, %v1068
        %v1129 = vmul.f32 %v1058, %v1068
        %v1130 = vmul.f32 %v1059, %v1068
        %v1131 = vmul.f32 %v1060, %v1068
        %v1132 = vmul.f32 %v1061, %v1068
        %v1133 = vfloor.f32 %v1069
        %v1134 = vfloor.f32 %v1070
        %v1135 = vfloor.f32 %v1071
        %v1136 = vfloor.f32 %v1072
        %v1137 = vfloor.f32 %v1073
        %v1138 = vfloor.f32 %v1074
        %v1139 = vfloor.f32 %v1075
        %v1140 = vfloor.f32 %v1076
        %v1141 = vfloor.f32 %v1077
        %v1142 = vfloor.f32 %v1078
        %v1143 = vfloor.f32 %v1079
        %v1144 = vfloor.f32 %v1080
        %v1145 = vfloor.f32 %v1081
        %v1146 = vfloor.f32 %v1082
        %v1147 = vfloor.f32 %v1083
        %v1148 = vfloor.f32 %v1084
        %v1149 = vfloor.f32 %v1085
        %v1150 = vfloor.f32 %v1086
        %v1151 = vfloor.f32 %v1087
        %v1152 = vfloor.f32 %v1088
        %v1153 = vfloor.f32 %v1089
        %v1154 = vfloor.f32 %v1090
        %v1155 = vfloor.f32 %v1091
        %v1156 = vfloor.f32 %v1092
        %v1157 = vfloor.f32 %v1093
        %v1158 = vfloor.f32 %v1094
        %v1159 = vfloor.f32 %v1095
        %v1160 = vfloor.f32 %v1096
        %v1161 = vfloor.f32 %v1097
        %v1162 = vfloor.f32 %v1098
        %v1163 = vfloor.f32 %v1099
        %v1164 = vfloor.f32 %v1100
        %v1165 = vfloor.f32 %v1101
        %v1166 = vfloor.f32 %v1102
        %v1167 = vfloor.f32 %v1103
        %v1168 = vfloor.f32 %v1104
        %v1169 = vfloor.f32 %v1105
        %v1170 = vfloor.f32 %v1106
        %v1171 = vfloor.f32 %v1107
        %v1172 = vfloor.f32 %v1108
        %v1173 = vfloor.f32 %v1109
        %v1174 = vfloor.f32 %v1110
        %v1175 = vfloor.f32 %v1111
        %v1176 = vfloor.f32 %v1112
        %v1177 = vfloor.f32 %v1113
        %v1178 = vfloor.f32 %v1114
        %v1179 = vfloor.f32 %v1115
        %v1180 = vfloor.f32 %v1116
        %v1181 = vfloor.f32 %v1117
        %v1182 = vfloor.f32 %v1118
        %v1183 = vfloor.f32 %v1119
        %v1184 = vfloor.f32 %v1120
        %v1185 = vfloor.f32 %v1121
        %v1186 = vfloor.f32 %v1122
        %v1187 = vfloor.f32 %v1123
        %v1188 = vfloor.f32 %v1124
        %v1189 = vfloor.f32 %v1125
        %v1190 = vfloor.f32 %v1126
        %v1191 = vfloor.f32 %v1127
        %v1192 = vfloor.f32 %v1128
        %v1193 = vfloor.f32 %v1129
        %v1194 = vfloor.f32 %v1130
        %v1195 = vfloor.f32 %v1131
        %v1196 = vfloor.f32 %v1132
        %v1197 = vmul.f32 %v1133, 512.0
        %v1198 = vmul.f32 %v1134, 512.0
        %v1199 = vmul.f32 %v1135, 512.0
        %v1200 = vmul.f32 %v1136, 512.0
        %v1201 = vmul.f32 %v1137, 512.0
        %v1202 = vmul.f32 %v1138, 512.0
        %v1203 = vmul.f32 %v1139, 512.0
        %v1204 = vmul.f32 %v1140, 512.0
        %v1205 = vmul.f32 %v1141, 512.0
        %v1206 = vmul.f32 %v1142, 512.0
        %v1207 = vmul.f32 %v1143, 512.0
        %v1208 = vmul.f32 %v1144, 512.0
        %v1209 = vmul.f32 %v1145, 512.0
        %v1210 = vmul.f32 %v1146, 512.0
        %v1211 = vmul.f32 %v1147, 512.0
        %v1212 = vmul.f32 %v1148, 512.0
        %v1213 = vmul.f32 %v1149, 512.0
        %v1214 = vmul.f32 %v1150, 512.0
        %v1215 = vmul.f32 %v1151, 512.0
        %v1216 = vmul.f32 %v1152, 512.0
        %v1217 = vmul.f32 %v1153, 512.0
        %v1218 = vmul.f32 %v1154, 512.0
        %v1219 = vmul.f32 %v1155, 512.0
        %v1220 = vmul.f32 %v1156, 512.0
        %v1221 = vmul.f32 %v1157, 512.0
        %v1222 = vmul.f32 %v1158, 512.0
        %v1223 = vmul.f32 %v1159, 512.0
        %v1224 = vmul.f32 %v1160, 512.0
        %v1225 = vmul.f32 %v1161, 512.0
        %v1226 = vmul.f32 %v1162, 512.0
        %v1227 = vmul.f32 %v1163, 512.0
        %v1228 = vmul.f32 %v1164, 512.0
        %v1229 = vmul.f32 %v1165, 512.0
        %v1230 = vmul.f32 %v1166, 512.0
        %v1231 = vmul.f32 %v1167, 512.0
        %v1232 = vmul.f32 %v1168, 512.0
        %v1233 = vmul.f32 %v1169, 512.0
        %v1234 = vmul.f32 %v1170, 512.0
        %v1235 = vmul.f32 %v1171, 512.0
        %v1236 = vmul.f32 %v1172, 512.0
        %v1237 = vmul.f32 %v1173, 512.0
        %v1238 = vmul.f32 %v1174, 512.0
        %v1239 = vmul.f32 %v1175, 512.0
        %v1240 = vmul.f32 %v1176, 512.0
        %v1241 = vmul.f32 %v1177, 512.0
        %v1242 = vmul.f32 %v1178, 512.0
        %v1243 = vmul.f32 %v1179, 512.0
        %v1244 = vmul.f32 %v1180, 512.0
        %v1245 = vmul.f32 %v1181, 512.0
        %v1246 = vmul.f32 %v1182, 512.0
        %v1247 = vmul.f32 %v1183, 512.0
        %v1248 = vmul.f32 %v1184, 512.0
        %v1249 = vmul.f32 %v1185, 512.0
        %v1250 = vmul.f32 %v1186, 512.0
        %v1251 = vmul.f32 %v1187, 512.0
        %v1252 = vmul.f32 %v1188, 512.0
        %v1253 = vmul.f32 %v1189, 512.0
        %v1254 = vmul.f32 %v1190, 512.0
        %v1255 = vmul.f32 %v1191, 512.0
        %v1256 = vmul.f32 %v1192, 512.0
        %v1257 = vmul.f32 %v1193, 512.0
        %v1258 = vmul.f32 %v1194, 512.0
        %v1259 = vmul.f32 %v1195, 512.0
        %v1260 = vmul.f32 %v1196, 512.0
        %v1261 = vsub.f32 %v998, %v1197
        %v1262 = vsub.f32 %v999, %v1198
        %v1263 = vsub.f32 %v1000, %v1199
        %v1264 = vsub.f32 %v1001, %v1200
        %v1265 = vsub.f32 %v1002, %v1201
        %v1266 = vsub.f32 %v1003, %v1202
        %v1267 = vsub.f32 %v1004, %v1203
        %v1268 = vsub.f32 %v1005, %v1204
        %v1269 = vsub.f32 %v1006, %v1205
        %v1270 = vsub.f32 %v1007, %v1206
        %v1271 = vsub.f32 %v1008, %v1207
        %v1272 = vsub.f32 %v1009, %v1208
        %v1273 = vsub.f32 %v1010, %v1209
        %v1274 = vsub.f32 %v1011, %v1210
        %v1275 = vsub.f32 %v1012, %v1211
        %v1276 = vsub.f32 %v1013, %v1212
        %v1277 = vsub.f32 %v1014, %v1213
        %v1278 = vsub.f32 %v1015, %v1214
        %v1279 = vsub.f32 %v1016, %v1215
        %v1280 = vsub.f32 %v1017, %v1216
        %v1281 = vsub.f32 %v1018, %v1217
        %v1282 = vsub.f32 %v1019, %v1218
        %v1283 = vsub.f32 %v1020, %v1219
        %v1284 = vsub.f32 %v1021, %v1220
        %v1285 = vsub.f32 %v1022, %v1221
        %v1286 = vsub.f32 %v1023, %v1222
        %v1287 = vsub.f32 %v1024, %v1223
        %v1288 = vsub.f32 %v1025, %v1224
        %v1289 = vsub.f32 %v1026, %v1225
        %v1290 = vsub.f32 %v1027, %v1226
        %v1291 = vsub.f32 %v1028, %v1227
        %v1292 = vsub.f32 %v1029, %v1228
        %v1293 = vsub.f32 %v1030, %v1229
        %v1294 = vsub.f32 %v1031, %v1230
        %v1295 = vsub.f32 %v1032, %v1231
        %v1296 = vsub.f32 %v1033, %v1232
        %v1297 = vsub.f32 %v1034, %v1233
        %v1298 = vsub.f32 %v1035, %v1234
        %v1299 = vsub.f32 %v1036, %v1235
        %v1300 = vsub.f32 %v1037, %v1236
        %v1301 = vsub.f32 %v1038, %v1237
        %v1302 = vsub.f32 %v1039, %v1238
        %v1303 = vsub.f32 %v1040, %v1239
        %v1304 = vsub.f32 %v1041, %v1240
        %v1305 = vsub.f32 %v1042, %v1241
        %v1306 = vsub.f32 %v1043, %v1242
        %v1307 = vsub.f32 %v1044, %v1243
        %v1308 = vsub.f32 %v1045, %v1244
        %v1309 = vsub.f32 %v1046, %v1245
        %v1310 = vsub.f32 %v1047, %v1246
        %v1311 = vsub.f32 %v1048, %v1247
        %v1312 = vsub.f32 %v1049, %v1248
        %v1313 = vsub.f32 %v1050, %v1249
        %v1314 = vsub.f32 %v1051, %v1250
        %v1315 = vsub.f32 %v1052, %v1251
        %v1316 = vsub.f32 %v1053, %v1252
        %v1317 = vsub.f32 %v1054, %v1253
        %v1318 = vsub.f32 %v1055, %v1254
        %v1319 = vsub.f32 %v1056, %v1255
        %v1320 = vsub.f32 %v1057, %v1256
        %v1321 = vsub.f32 %v1058, %v1257
        %v1322 = vsub.f32 %v1059, %v1258
        %v1323 = vsub.f32 %v1060, %v1259
        %v1324 = vsub.f32 %v1061, %v1260
        %v1325 = vrcp.pop 64.0
        %v1326 = vmul.f32 64.0, %v1325
        %v1327 = vsub.f32 1.0, %v1326
        %v1328 = vmul.f32 %v1325, %v1327
        %v1329 = vadd.f32 %v1325, %v1328
        %vm1330 = vweird.f32 %v1325
        %v1331 = vsel %vm1330, %v1325, %v1329
        %v1332 = vmul.f32 %v1261, %v1331
        %v1333 = vmul.f32 %v1262, %v1331
        %v1334 = vmul.f32 %v1263, %v1331
        %v1335 = vmul.f32 %v1264, %v1331
        %v1336 = vmul.f32 %v1265, %v1331
        %v1337 = vmul.f32 %v1266, %v1331
        %v1338 = vmul.f32 %v1267, %v1331
        %v1339 = vmul.f32 %v1268, %v1331
        %v1340 = vmul.f32 %v1269, %v1331
        %v1341 = vmul.f32 %v1270, %v1331
        %v1342 = vmul.f32 %v1271, %v1331
        %v1343 = vmul.f32 %v1272, %v1331
        %v1344 = vmul.f32 %v1273, %v1331
        %v1345 = vmul.f32 %v1274, %v1331
        %v1346 = vmul.f32 %v1275, %v1331
        %v1347 = vmul.f32 %v1276, %v1331
        %v1348 = vmul.f32 %v1277, %v1331
        %v1349 = vmul.f32 %v1278, %v1331
        %v1350 = vmul.f32 %v1279, %v1331
        %v1351 = vmul.f32 %v1280, %v1331
        %v1352 = vmul.f32 %v1281, %v1331
        %v1353 = vmul.f32 %v1282, %v1331
        %v1354 = vmul.f32 %v1283, %v1331
        %v1355 = vmul.f32 %v1284, %v1331
        %v1356 = vmul.f32 %v1285, %v1331
        %v1357 = vmul.f32 %v1286, %v1331
        %v1358 = vmul.f32 %v1287, %v1331
        %v1359 = vmul.f32 %v1288, %v1331
        %v1360 = vmul.f32 %v1289, %v1331
        %v1361 = vmul.f32 %v1290, %v1331
        %v1362 = vmul.f32 %v1291, %v1331
        %v1363 = vmul.f32 %v1292, %v1331
        %v1364 = vmul.f32 %v1293, %v1331
        %v1365 = vmul.f32 %v1294, %v1331
        %v1366 = vmul.f32 %v1295, %v1331
        %v1367 = vmul.f32 %v1296, %v1331
        %v1368 = vmul.f32 %v1297, %v1331
        %v1369 = vmul.f32 %v1298, %v1331
        %v1370 = vmul.f32 %v1299, %v1331
        %v1371 = vmul.f32 %v1300, %v1331
        %v1372 = vmul.f32 %v1301, %v1331
        %v1373 = vmul.f32 %v1302, %v1331
        %v1374 = vmul.f32 %v1303, %v1331
        %v1375 = vmul.f32 %v1304, %v1331
        %v1376 = vmul.f32 %v1305, %v1331
        %v1377 = vmul.f32 %v1306, %v1331
        %v1378 = vmul.f32 %v1307, %v1331
        %v1379 = vmul.f32 %v1308, %v1331
        %v1380 = vmul.f32 %v1309, %v1331
        %v1381 = vmul.f32 %v1310, %v1331
        %v1382 = vmul.f32 %v1311, %v1331
        %v1383 = vmul.f32 %v1312, %v1331
        %v1384 = vmul.f32 %v1313, %v1331
        %v1385 = vmul.f32 %v1314, %v1331
        %v1386 = vmul.f32 %v1315, %v1331
        %v1387 = vmul.f32 %v1316, %v1331
        %v1388 = vmul.f32 %v1317, %v1331
        %v1389 = vmul.f32 %v1318, %v1331
        %v1390 = vmul.f32 %v1319, %v1331
        %v1391 = vmul.f32 %v1320, %v1331
        %v1392 = vmul.f32 %v1321, %v1331
        %v1393 = vmul.f32 %v1322, %v1331
        %v1394 = vmul.f32 %v1323, %v1331
        %v1395 = vmul.f32 %v1324, %v1331
        %v1396 = vfloor.f32 %v1332
        %v1397 = vfloor.f32 %v1333
        %v1398 = vfloor.f32 %v1334
        %v1399 = vfloor.f32 %v1335
        %v1400 = vfloor.f32 %v1336
        %v1401 = vfloor.f32 %v1337
        %v1402 = vfloor.f32 %v1338
        %v1403 = vfloor.f32 %v1339
        %v1404 = vfloor.f32 %v1340
        %v1405 = vfloor.f32 %v1341
        %v1406 = vfloor.f32 %v1342
        %v1407 = vfloor.f32 %v1343
        %v1408 = vfloor.f32 %v1344
        %v1409 = vfloor.f32 %v1345
        %v1410 = vfloor.f32 %v1346
        %v1411 = vfloor.f32 %v1347
        %v1412 = vfloor.f32 %v1348
        %v1413 = vfloor.f32 %v1349
        %v1414 = vfloor.f32 %v1350
        %v1415 = vfloor.f32 %v1351
        %v1416 = vfloor.f32 %v1352
        %v1417 = vfloor.f32 %v1353
        %v1418 = vfloor.f32 %v1354
        %v1419 = vfloor.f32 %v1355
        %v1420 = vfloor.f32 %v1356
        %v1421 = vfloor.f32 %v1357
        %v1422 = vfloor.f32 %v1358
        %v1423 = vfloor.f32 %v1359
        %v1424 = vfloor.f32 %v1360
        %v1425 = vfloor.f32 %v1361
        %v1426 = vfloor.f32 %v1362
        %v1427 = vfloor.f32 %v1363
        %v1428 = vfloor.f32 %v1364
        %v1429 = vfloor.f32 %v1365
        %v1430 = vfloor.f32 %v1366
        %v1431 = vfloor.f32 %v1367
        %v1432 = vfloor.f32 %v1368
        %v1433 = vfloor.f32 %v1369
        %v1434 = vfloor.f32 %v1370
        %v1435 = vfloor.f32 %v1371
        %v1436 = vfloor.f32 %v1372
        %v1437 = vfloor.f32 %v1373
        %v1438 = vfloor.f32 %v1374
        %v1439 = vfloor.f32 %v1375
        %v1440 = vfloor.f32 %v1376
        %v1441 = vfloor.f32 %v1377
        %v1442 = vfloor.f32 %v1378
        %v1443 = vfloor.f32 %v1379
        %v1444 = vfloor.f32 %v1380
        %v1445 = vfloor.f32 %v1381
        %v1446 = vfloor.f32 %v1382
        %v1447 = vfloor.f32 %v1383
        %v1448 = vfloor.f32 %v1384
        %v1449 = vfloor.f32 %v1385
        %v1450 = vfloor.f32 %v1386
        %v1451 = vfloor.f32 %v1387
        %v1452 = vfloor.f32 %v1388
        %v1453 = vfloor.f32 %v1389
        %v1454 = vfloor.f32 %v1390
        %v1455 = vfloor.f32 %v1391
        %v1456 = vfloor.f32 %v1392
        %v1457 = vfloor.f32 %v1393
        %v1458 = vfloor.f32 %v1394
        %v1459 = vfloor.f32 %v1395
        %v1460 = vmul.f32 %v1396, 64.0
        %v1461 = vmul.f32 %v1397, 64.0
        %v1462 = vmul.f32 %v1398, 64.0
        %v1463 = vmul.f32 %v1399, 64.0
        %v1464 = vmul.f32 %v1400, 64.0
        %v1465 = vmul.f32 %v1401, 64.0
        %v1466 = vmul.f32 %v1402, 64.0
        %v1467 = vmul.f32 %v1403, 64.0
        %v1468 = vmul.f32 %v1404, 64.0
        %v1469 = vmul.f32 %v1405, 64.0
        %v1470 = vmul.f32 %v1406, 64.0
        %v1471 = vmul.f32 %v1407, 64.0
        %v1472 = vmul.f32 %v1408, 64.0
        %v1473 = vmul.f32 %v1409, 64.0
        %v1474 = vmul.f32 %v1410, 64.0
        %v1475 = vmul.f32 %v1411, 64.0
        %v1476 = vmul.f32 %v1412, 64.0
        %v1477 = vmul.f32 %v1413, 64.0
        %v1478 = vmul.f32 %v1414, 64.0
        %v1479 = vmul.f32 %v1415, 64.0
        %v1480 = vmul.f32 %v1416, 64.0
        %v1481 = vmul.f32 %v1417, 64.0
        %v1482 = vmul.f32 %v1418, 64.0
        %v1483 = vmul.f32 %v1419, 64.0
        %v1484 = vmul.f32 %v1420, 64.0
        %v1485 = vmul.f32 %v1421, 64.0
        %v1486 = vmul.f32 %v1422, 64.0
        %v1487 = vmul.f32 %v1423, 64.0
        %v1488 = vmul.f32 %v1424, 64.0
        %v1489 = vmul.f32 %v1425, 64.0
        %v1490 = vmul.f32 %v1426, 64.0
        %v1491 = vmul.f32 %v1427, 64.0
        %v1492 = vmul.f32 %v1428, 64.0
        %v1493 = vmul.f32 %v1429, 64.0
        %v1494 = vmul.f32 %v1430, 64.0
        %v1495 = vmul.f32 %v1431, 64.0
        %v1496 = vmul.f32 %v1432, 64.0
        %v1497 = vmul.f32 %v1433, 64.0
        %v1498 = vmul.f32 %v1434, 64.0
        %v1499 = vmul.f32 %v1435, 64.0
        %v1500 = vmul.f32 %v1436, 64.0
        %v1501 = vmul.f32 %v1437, 64.0
        %v1502 = vmul.f32 %v1438, 64.0
        %v1503 = vmul.f32 %v1439, 64.0
        %v1504 = vmul.f32 %v1440, 64.0
        %v1505 = vmul.f32 %v1441, 64.0
        %v1506 = vmul.f32 %v1442, 64.0
        %v1507 = vmul.f32 %v1443, 64.0
        %v1508 = vmul.f32 %v1444, 64.0
        %v1509 = vmul.f32 %v1445, 64.0
        %v1510 = vmul.f32 %v1446, 64.0
        %v1511 = vmul.f32 %v1447, 64.0
        %v1512 = vmul.f32 %v1448, 64.0
        %v1513 = vmul.f32 %v1449, 64.0
        %v1514 = vmul.f32 %v1450, 64.0
        %v1515 = vmul.f32 %v1451, 64.0
        %v1516 = vmul.f32 %v1452, 64.0
        %v1517 = vmul.f32 %v1453, 64.0
        %v1518 = vmul.f32 %v1454, 64.0
        %v1519 = vmul.f32 %v1455, 64.0
        %v1520 = vmul.f32 %v1456, 64.0
        %v1521 = vmul.f32 %v1457, 64.0
        %v1522 = vmul.f32 %v1458, 64.0
        %v1523 = vmul.f32 %v1459, 64.0
        %v1524 = vsub.f32 %v1261, %v1460
        %v1525 = vsub.f32 %v1262, %v1461
        %v1526 = vsub.f32 %v1263, %v1462
        %v1527 = vsub.f32 %v1264, %v1463
        %v1528 = vsub.f32 %v1265, %v1464
        %v1529 = vsub.f32 %v1266, %v1465
        %v1530 = vsub.f32 %v1267, %v1466
        %v1531 = vsub.f32 %v1268, %v1467
        %v1532 = vsub.f32 %v1269, %v1468
        %v1533 = vsub.f32 %v1270, %v1469
        %v1534 = vsub.f32 %v1271, %v1470
        %v1535 = vsub.f32 %v1272, %v1471
        %v1536 = vsub.f32 %v1273, %v1472
        %v1537 = vsub.f32 %v1274, %v1473
        %v1538 = vsub.f32 %v1275, %v1474
        %v1539 = vsub.f32 %v1276, %v1475
        %v1540 = vsub.f32 %v1277, %v1476
        %v1541 = vsub.f32 %v1278, %v1477
        %v1542 = vsub.f32 %v1279, %v1478
        %v1543 = vsub.f32 %v1280, %v1479
        %v1544 = vsub.f32 %v1281, %v1480
        %v1545 = vsub.f32 %v1282, %v1481
        %v1546 = vsub.f32 %v1283, %v1482
        %v1547 = vsub.f32 %v1284, %v1483
        %v1548 = vsub.f32 %v1285, %v1484
        %v1549 = vsub.f32 %v1286, %v1485
        %v1550 = vsub.f32 %v1287, %v1486
        %v1551 = vsub.f32 %v1288, %v1487
        %v1552 = vsub.f32 %v1289, %v1488
        %v1553 = vsub.f32 %v1290, %v1489
        %v1554 = vsub.f32 %v1291, %v1490
        %v1555 = vsub.f32 %v1292, %v1491
        %v1556 = vsub.f32 %v1293, %v1492
        %v1557 = vsub.f32 %v1294, %v1493
        %v1558 = vsub.f32 %v1295, %v1494
        %v1559 = vsub.f32 %v1296, %v1495
        %v1560 = vsub.f32 %v1297, %v1496
        %v1561 = vsub.f32 %v1298, %v1497
        %v1562 = vsub.f32 %v1299, %v1498
        %v1563 = vsub.f32 %v1300, %v1499
        %v1564 = vsub.f32 %v1301, %v1500
        %v1565 = vsub.f32 %v1302, %v1501
        %v1566 = vsub.f32 %v1303, %v1502
        %v1567 = vsub.f32 %v1304, %v1503
        %v1568 = vsub.f32 %v1305, %v1504
        %v1569 = vsub.f32 %v1306, %v1505
        %v1570 = vsub.f32 %v1307, %v1506
        %v1571 = vsub.f32 %v1308, %v1507
        %v1572 = vsub.f32 %v1309, %v1508
        %v1573 = vsub.f32 %v1310, %v1509
        %v1574 = vsub.f32 %v1311, %v1510
        %v1575 = vsub.f32 %v1312, %v1511
        %v1576 = vsub.f32 %v1313, %v1512
        %v1577 = vsub.f32 %v1314, %v1513
        %v1578 = vsub.f32 %v1315, %v1514
        %v1579 = vsub.f32 %v1316, %v1515
        %v1580 = vsub.f32 %v1317, %v1516
        %v1581 = vsub.f32 %v1318, %v1517
        %v1582 = vsub.f32 %v1319, %v1518
        %v1583 = vsub.f32 %v1320, %v1519
        %v1584 = vsub.f32 %v1321, %v1520
        %v1585 = vsub.f32 %v1322, %v1521
        %v1586 = vsub.f32 %v1323, %v1522
        %v1587 = vsub.f32 %v1324, %v1523
        %v1588 = vrcp.pop 8.0
        %v1589 = vmul.f32 8.0, %v1588
        %v1590 = vsub.f32 1.0, %v1589
        %v1591 = vmul.f32 %v1588, %v1590
        %v1592 = vadd.f32 %v1588, %v1591
        %vm1593 = vweird.f32 %v1588
        %v1594 = vsel %vm1593, %v1588, %v1592
        %v1595 = vmul.f32 %v1524, %v1594
        %v1596 = vmul.f32 %v1525, %v1594
        %v1597 = vmul.f32 %v1526, %v1594
        %v1598 = vmul.f32 %v1527, %v1594
        %v1599 = vmul.f32 %v1528, %v1594
        %v1600 = vmul.f32 %v1529, %v1594
        %v1601 = vmul.f32 %v1530, %v1594
        %v1602 = vmul.f32 %v1531, %v1594
        %v1603 = vmul.f32 %v1532, %v1594
        %v1604 = vmul.f32 %v1533, %v1594
        %v1605 = vmul.f32 %v1534, %v1594
        %v1606 = vmul.f32 %v1535, %v1594
        %v1607 = vmul.f32 %v1536, %v1594
        %v1608 = vmul.f32 %v1537, %v1594
        %v1609 = vmul.f32 %v1538, %v1594
        %v1610 = vmul.f32 %v1539, %v1594
        %v1611 = vmul.f32 %v1540, %v1594
        %v1612 = vmul.f32 %v1541, %v1594
        %v1613 = vmul.f32 %v1542, %v1594
        %v1614 = vmul.f32 %v1543, %v1594
        %v1615 = vmul.f32 %v1544, %v1594
        %v1616 = vmul.f32 %v1545, %v1594
        %v1617 = vmul.f32 %v1546, %v1594
        %v1618 = vmul.f32 %v1547, %v1594
        %v1619 = vmul.f32 %v1548, %v1594
        %v1620 = vmul.f32 %v1549, %v1594
        %v1621 = vmul.f32 %v1550, %v1594
        %v1622 = vmul.f32 %v1551, %v1594
        %v1623 = vmul.f32 %v1552, %v1594
        %v1624 = vmul.f32 %v1553, %v1594
        %v1625 = vmul.f32 %v1554, %v1594
        %v1626 = vmul.f32 %v1555, %v1594
        %v1627 = vmul.f32 %v1556, %v1594
        %v1628 = vmul.f32 %v1557, %v1594
        %v1629 = vmul.f32 %v1558, %v1594
        %v1630 = vmul.f32 %v1559, %v1594
        %v1631 = vmul.f32 %v1560, %v1594
        %v1632 = vmul.f32 %v1561, %v1594
        %v1633 = vmul.f32 %v1562, %v1594
        %v1634 = vmul.f32 %v1563, %v1594
        %v1635 = vmul.f32 %v1564, %v1594
        %v1636 = vmul.f32 %v1565, %v1594
        %v1637 = vmul.f32 %v1566, %v1594
        %v1638 = vmul.f32 %v1567, %v1594
        %v1639 = vmul.f32 %v1568, %v1594
        %v1640 = vmul.f32 %v1569, %v1594
        %v1641 = vmul.f32 %v1570, %v1594
        %v1642 = vmul.f32 %v1571, %v1594
        %v1643 = vmul.f32 %v1572, %v1594
        %v1644 = vmul.f32 %v1573, %v1594
        %v1645 = vmul.f32 %v1574, %v1594
        %v1646 = vmul.f32 %v1575, %v1594
        %v1647 = vmul.f32 %v1576, %v1594
        %v1648 = vmul.f32 %v1577, %v1594
        %v1649 = vmul.f32 %v1578, %v1594
        %v1650 = vmul.f32 %v1579, %v1594
        %v1651 = vmul.f32 %v1580, %v1594
        %v1652 = vmul.f32 %v1581, %v1594
        %v1653 = vmul.f32 %v1582, %v1594
        %v1654 = vmul.f32 %v1583, %v1594
        %v1655 = vmul.f32 %v1584, %v1594
        %v1656 = vmul.f32 %v1585, %v1594
        %v1657 = vmul.f32 %v1586, %v1594
        %v1658 = vmul.f32 %v1587, %v1594
        %v1659 = vfloor.f32 %v1595
        %v1660 = vfloor.f32 %v1596
        %v1661 = vfloor.f32 %v1597
        %v1662 = vfloor.f32 %v1598
        %v1663 = vfloor.f32 %v1599
        %v1664 = vfloor.f32 %v1600
        %v1665 = vfloor.f32 %v1601
        %v1666 = vfloor.f32 %v1602
        %v1667 = vfloor.f32 %v1603
        %v1668 = vfloor.f32 %v1604
        %v1669 = vfloor.f32 %v1605
        %v1670 = vfloor.f32 %v1606
        %v1671 = vfloor.f32 %v1607
        %v1672 = vfloor.f32 %v1608
        %v1673 = vfloor.f32 %v1609
        %v1674 = vfloor.f32 %v1610
        %v1675 = vfloor.f32 %v1611
        %v1676 = vfloor.f32 %v1612
        %v1677 = vfloor.f32 %v1613
        %v1678 = vfloor.f32 %v1614
        %v1679 = vfloor.f32 %v1615
        %v1680 = vfloor.f32 %v1616
        %v1681 = vfloor.f32 %v1617
        %v1682 = vfloor.f32 %v1618
        %v1683 = vfloor.f32 %v1619
        %v1684 = vfloor.f32 %v1620
        %v1685 = vfloor.f32 %v1621
        %v1686 = vfloor.f32 %v1622
        %v1687 = vfloor.f32 %v1623
        %v1688 = vfloor.f32 %v1624
        %v1689 = vfloor.f32 %v1625
        %v1690 = vfloor.f32 %v1626
        %v1691 = vfloor.f32 %v1627
        %v1692 = vfloor.f32 %v1628
        %v1693 = vfloor.f32 %v1629
        %v1694 = vfloor.f32 %v1630
        %v1695 = vfloor.f32 %v1631
        %v1696 = vfloor.f32 %v1632
        %v1697 = vfloor.f32 %v1633
        %v1698 = vfloor.f32 %v1634
        %v1699 = vfloor.f32 %v1635
        %v1700 = vfloor.f32 %v1636
        %v1701 = vfloor.f32 %v1637
        %v1702 = vfloor.f32 %v1638
        %v1703 = vfloor.f32 %v1639
        %v1704 = vfloor.f32 %v1640
        %v1705 = vfloor.f32 %v1641
        %v1706 = vfloor.f32 %v1642
        %v1707 = vfloor.f32 %v1643
        %v1708 = vfloor.f32 %v1644
        %v1709 = vfloor.f32 %v1645
        %v1710 = vfloor.f32 %v1646
        %v1711 = vfloor.f32 %v1647
        %v1712 = vfloor.f32 %v1648
        %v1713 = vfloor.f32 %v1649
        %v1714 = vfloor.f32 %v1650
        %v1715 = vfloor.f32 %v1651
        %v1716 = vfloor.f32 %v1652
        %v1717 = vfloor.f32 %v1653
        %v1718 = vfloor.f32 %v1654
        %v1719 = vfloor.f32 %v1655
        %v1720 = vfloor.f32 %v1656
        %v1721 = vfloor.f32 %v1657
        %v1722 = vfloor.f32 %v1658
        %v1723 = vmul.f32 %v1659, 8.0
        %v1724 = vmul.f32 %v1660, 8.0
        %v1725 = vmul.f32 %v1661, 8.0
        %v1726 = vmul.f32 %v1662, 8.0
        %v1727 = vmul.f32 %v1663, 8.0
        %v1728 = vmul.f32 %v1664, 8.0
        %v1729 = vmul.f32 %v1665, 8.0
        %v1730 = vmul.f32 %v1666, 8.0
        %v1731 = vmul.f32 %v1667, 8.0
        %v1732 = vmul.f32 %v1668, 8.0
        %v1733 = vmul.f32 %v1669, 8.0
        %v1734 = vmul.f32 %v1670, 8.0
        %v1735 = vmul.f32 %v1671, 8.0
        %v1736 = vmul.f32 %v1672, 8.0
        %v1737 = vmul.f32 %v1673, 8.0
        %v1738 = vmul.f32 %v1674, 8.0
        %v1739 = vmul.f32 %v1675, 8.0
        %v1740 = vmul.f32 %v1676, 8.0
        %v1741 = vmul.f32 %v1677, 8.0
        %v1742 = vmul.f32 %v1678, 8.0
        %v1743 = vmul.f32 %v1679, 8.0
        %v1744 = vmul.f32 %v1680, 8.0
        %v1745 = vmul.f32 %v1681, 8.0
        %v1746 = vmul.f32 %v1682, 8.0
        %v1747 = vmul.f32 %v1683, 8.0
        %v1748 = vmul.f32 %v1684, 8.0
        %v1749 = vmul.f32 %v1685, 8.0
        %v1750 = vmul.f32 %v1686, 8.0
        %v1751 = vmul.f32 %v1687, 8.0
        %v1752 = vmul.f32 %v1688, 8.0
        %v1753 = vmul.f32 %v1689, 8.0
        %v1754 = vmul.f32 %v1690, 8.0
        %v1755 = vmul.f32 %v1691, 8.0
        %v1756 = vmul.f32 %v1692, 8.0
        %v1757 = vmul.f32 %v1693, 8.0
        %v1758 = vmul.f32 %v1694, 8.0
        %v1759 = vmul.f32 %v1695, 8.0
        %v1760 = vmul.f32 %v1696, 8.0
        %v1761 = vmul.f32 %v1697, 8.0
        %v1762 = vmul.f32 %v1698, 8.0
        %v1763 = vmul.f32 %v1699, 8.0
        %v1764 = vmul.f32 %v1700, 8.0
        %v1765 = vmul.f32 %v1701, 8.0
        %v1766 = vmul.f32 %v1702, 8.0
        %v1767 = vmul.f32 %v1703, 8.0
        %v1768 = vmul.f32 %v1704, 8.0
        %v1769 = vmul.f32 %v1705, 8.0
        %v1770 = vmul.f32 %v1706, 8.0
        %v1771 = vmul.f32 %v1707, 8.0
        %v1772 = vmul.f32 %v1708, 8.0
        %v1773 = vmul.f32 %v1709, 8.0
        %v1774 = vmul.f32 %v1710, 8.0
        %v1775 = vmul.f32 %v1711, 8.0
        %v1776 = vmul.f32 %v1712, 8.0
        %v1777 = vmul.f32 %v1713, 8.0
        %v1778 = vmul.f32 %v1714, 8.0
        %v1779 = vmul.f32 %v1715, 8.0
        %v1780 = vmul.f32 %v1716, 8.0
        %v1781 = vmul.f32 %v1717, 8.0
        %v1782 = vmul.f32 %v1718, 8.0
        %v1783 = vmul.f32 %v1719, 8.0
        %v1784 = vmul.f32 %v1720, 8.0
        %v1785 = vmul.f32 %v1721, 8.0
        %v1786 = vmul.f32 %v1722, 8.0
        %v1787 = vsub.f32 %v1524, %v1723
        %v1788 = vsub.f32 %v1525, %v1724
        %v1789 = vsub.f32 %v1526, %v1725
        %v1790 = vsub.f32 %v1527, %v1726
        %v1791 = vsub.f32 %v1528, %v1727
        %v1792 = vsub.f32 %v1529, %v1728
        %v1793 = vsub.f32 %v1530, %v1729
        %v1794 = vsub.f32 %v1531, %v1730
        %v1795 = vsub.f32 %v1532, %v1731
        %v1796 = vsub.f32 %v1533, %v1732
        %v1797 = vsub.f32 %v1534, %v1733
        %v1798 = vsub.f32 %v1535, %v1734
        %v1799 = vsub.f32 %v1536, %v1735
        %v1800 = vsub.f32 %v1537, %v1736
        %v1801 = vsub.f32 %v1538, %v1737
        %v1802 = vsub.f32 %v1539, %v1738
        %v1803 = vsub.f32 %v1540, %v1739
        %v1804 = vsub.f32 %v1541, %v1740
        %v1805 = vsub.f32 %v1542, %v1741
        %v1806 = vsub.f32 %v1543, %v1742
        %v1807 = vsub.f32 %v1544, %v1743
        %v1808 = vsub.f32 %v1545, %v1744
        %v1809 = vsub.f32 %v1546, %v1745
        %v1810 = vsub.f32 %v1547, %v1746
        %v1811 = vsub.f32 %v1548, %v1747
        %v1812 = vsub.f32 %v1549, %v1748
        %v1813 = vsub.f32 %v1550, %v1749
        %v1814 = vsub.f32 %v1551, %v1750
        %v1815 = vsub.f32 %v1552, %v1751
        %v1816 = vsub.f32 %v1553, %v1752
        %v1817 = vsub.f32 %v1554, %v1753
        %v1818 = vsub.f32 %v1555, %v1754
        %v1819 = vsub.f32 %v1556, %v1755
        %v1820 = vsub.f32 %v1557, %v1756
        %v1821 = vsub.f32 %v1558, %v1757
        %v1822 = vsub.f32 %v1559, %v1758
        %v1823 = vsub.f32 %v1560, %v1759
        %v1824 = vsub.f32 %v1561, %v1760
        %v1825 = vsub.f32 %v1562, %v1761
        %v1826 = vsub.f32 %v1563, %v1762
        %v1827 = vsub.f32 %v1564, %v1763
        %v1828 = vsub.f32 %v1565, %v1764
        %v1829 = vsub.f32 %v1566, %v1765
        %v1830 = vsub.f32 %v1567, %v1766
        %v1831 = vsub.f32 %v1568, %v1767
        %v1832 = vsub.f32 %v1569, %v1768
        %v1833 = vsub.f32 %v1570, %v1769
        %v1834 = vsub.f32 %v1571, %v1770
        %v1835 = vsub.f32 %v1572, %v1771
        %v1836 = vsub.f32 %v1573, %v1772
        %v1837 = vsub.f32 %v1574, %v1773
        %v1838 = vsub.f32 %v1575, %v1774
        %v1839 = vsub.f32 %v1576, %v1775
        %v1840 = vsub.f32 %v1577, %v1776
        %v1841 = vsub.f32 %v1578, %v1777
        %v1842 = vsub.f32 %v1579, %v1778
        %v1843 = vsub.f32 %v1580, %v1779
        %v1844 = vsub.f32 %v1581, %v1780
        %v1845 = vsub.f32 %v1582, %v1781
        %v1846 = vsub.f32 %v1583, %v1782
        %v1847 = vsub.f32 %v1584, %v1783
        %v1848 = vsub.f32 %v1585, %v1784
        %v1849 = vsub.f32 %v1586, %v1785
        %v1850 = vsub.f32 %v1587, %v1786
        %v1851 = vxor.u32 %v580, 2147483648
        %v1852 = vxor.u32 %v582, 2147483648
        %v1853 = vxor.u32 %v585, 2147483648
        %v1854 = vxor.u32 %v587, 2147483648
        %v1855 = vxor.u32 %v590, 2147483648
        %v1856 = vxor.u32 %v592, 2147483648
        %v1857 = vxor.u32 %v595, 2147483648
        %v1858 = vxor.u32 %v597, 2147483648
        %v1859 = vxor.u32 %v600, 2147483648
        %v1860 = vxor.u32 %v602, 2147483648
        %v1861 = vxor.u32 %v605, 2147483648
        %v1862 = vxor.u32 %v607, 2147483648
        %v1863 = vxor.u32 %v610, 2147483648
        %v1864 = vxor.u32 %v612, 2147483648
        %v1865 = vxor.u32 %v615, 2147483648
        %v1866 = vxor.u32 %v617, 2147483648
        %v1867 = vxor.u32 %v620, 2147483648
        %v1868 = vxor.u32 %v622, 2147483648
        %v1869 = vxor.u32 %v625, 2147483648
        %v1870 = vxor.u32 %v627, 2147483648
        %v1871 = vxor.u32 %v630, 2147483648
        %v1872 = vxor.u32 %v632, 2147483648
        %v1873 = vxor.u32 %v635, 2147483648
        %v1874 = vxor.u32 %v637, 2147483648
        %v1875 = vxor.u32 %v640, 2147483648
        %v1876 = vxor.u32 %v642, 2147483648
        %v1877 = vxor.u32 %v645, 2147483648
        %v1878 = vxor.u32 %v647, 2147483648
        %v1879 = vxor.u32 %v650, 2147483648
        %v1880 = vxor.u32 %v652, 2147483648
        %v1881 = vxor.u32 %v655, 2147483648
        %v1882 = vxor.u32 %v657, 2147483648
        %v1883 = vxor.u32 %v660, 2147483648
        %v1884 = vxor.u32 %v662, 2147483648
        %v1885 = vxor.u32 %v665, 2147483648
        %v1886 = vxor.u32 %v667, 2147483648
        %v1887 = vxor.u32 %v670, 2147483648
        %v1888 = vxor.u32 %v672, 2147483648
        %v1889 = vxor.u32 %v675, 2147483648
        %v1890 = vxor.u32 %v677, 2147483648
        %v1891 = vxor.u32 %v680, 2147483648
        %v1892 = vxor.u32 %v682, 2147483648
        %v1893 = vxor.u32 %v685, 2147483648
        %v1894 = vxor.u32 %v687, 2147483648
        %v1895 = vxor.u32 %v690, 2147483648
        %v1896 = vxor.u32 %v692, 2147483648
        %v1897 = vxor.u32 %v695, 2147483648
        %v1898 = vxor.u32 %v697, 2147483648
        %v1899 = vxor.u32 %v700, 2147483648
        %v1900 = vxor.u32 %v702, 2147483648
        %v1901 = vxor.u32 %v705, 2147483648
        %v1902 = vxor.u32 %v707, 2147483648
        %v1903 = vxor.u32 %v710, 2147483648
        %v1904 = vxor.u32 %v712, 2147483648
        %v1905 = vxor.u32 %v715, 2147483648
        %v1906 = vxor.u32 %v717, 2147483648
        %v1907 = vxor.u32 %v720, 2147483648
        %v1908 = vxor.u32 %v722, 2147483648
        %v1909 = vxor.u32 %v725, 2147483648
        %v1910 = vxor.u32 %v727, 2147483648
        %v1911 = vxor.u32 %v730, 2147483648
        %v1912 = vxor.u32 %v732, 2147483648
        %v1913 = vxor.u32 %v735, 2147483648
        %v1914 = vxor.u32 %v737, 2147483648
        %v1915 = vmul.f32 %v1851, 1.442695
        %v1916 = vpow.pop %v1915
        %v1917 = vmul.f32 %v1852, 1.442695
        %v1918 = vpow.pop %v1917
        %v1919 = vmul.f32 %v1853, 1.442695
        %v1920 = vpow.pop %v1919
        %v1921 = vmul.f32 %v1854, 1.442695
        %v1922 = vpow.pop %v1921
        %v1923 = vmul.f32 %v1855, 1.442695
        %v1924 = vpow.pop %v1923
        %v1925 = vmul.f32 %v1856, 1.442695
        %v1926 = vpow.pop %v1925
        %v1927 = vmul.f32 %v1857, 1.442695
        %v1928 = vpow.pop %v1927
        %v1929 = vmul.f32 %v1858, 1.442695
        %v1930 = vpow.pop %v1929
        %v1931 = vmul.f32 %v1859, 1.442695
        %v1932 = vpow.pop %v1931
        %v1933 = vmul.f32 %v1860, 1.442695
        %v1934 = vpow.pop %v1933
        %v1935 = vmul.f32 %v1861, 1.442695
        %v1936 = vpow.pop %v1935
        %v1937 = vmul.f32 %v1862, 1.442695
        %v1938 = vpow.pop %v1937
        %v1939 = vmul.f32 %v1863, 1.442695
        %v1940 = vpow.pop %v1939
        %v1941 = vmul.f32 %v1864, 1.442695
        %v1942 = vpow.pop %v1941
        %v1943 = vmul.f32 %v1865, 1.442695
        %v1944 = vpow.pop %v1943
        %v1945 = vmul.f32 %v1866, 1.442695
        %v1946 = vpow.pop %v1945
        %v1947 = vmul.f32 %v1867, 1.442695
        %v1948 = vpow.pop %v1947
        %v1949 = vmul.f32 %v1868, 1.442695
        %v1950 = vpow.pop %v1949
        %v1951 = vmul.f32 %v1869, 1.442695
        %v1952 = vpow.pop %v1951
        %v1953 = vmul.f32 %v1870, 1.442695
        %v1954 = vpow.pop %v1953
        %v1955 = vmul.f32 %v1871, 1.442695
        %v1956 = vpow.pop %v1955
        %v1957 = vmul.f32 %v1872, 1.442695
        %v1958 = vpow.pop %v1957
        %v1959 = vmul.f32 %v1873, 1.442695
        %v1960 = vpow.pop %v1959
        %v1961 = vmul.f32 %v1874, 1.442695
        %v1962 = vpow.pop %v1961
        %v1963 = vmul.f32 %v1875, 1.442695
        %v1964 = vpow.pop %v1963
        %v1965 = vmul.f32 %v1876, 1.442695
        %v1966 = vpow.pop %v1965
        %v1967 = vmul.f32 %v1877, 1.442695
        %v1968 = vpow.pop %v1967
        %v1969 = vmul.f32 %v1878, 1.442695
        %v1970 = vpow.pop %v1969
        %v1971 = vmul.f32 %v1879, 1.442695
        %v1972 = vpow.pop %v1971
        %v1973 = vmul.f32 %v1880, 1.442695
        %v1974 = vpow.pop %v1973
        %v1975 = vmul.f32 %v1881, 1.442695
        %v1976 = vpow.pop %v1975
        %v1977 = vmul.f32 %v1882, 1.442695
        %v1978 = vpow.pop %v1977
        %v1979 = vmul.f32 %v1883, 1.442695
        %v1980 = vpow.pop %v1979
        %v1981 = vmul.f32 %v1884, 1.442695
        %v1982 = vpow.pop %v1981
        %v1983 = vmul.f32 %v1885, 1.442695
        %v1984 = vpow.pop %v1983
        %v1985 = vmul.f32 %v1886, 1.442695
        %v1986 = vpow.pop %v1985
        %v1987 = vmul.f32 %v1887, 1.442695
        %v1988 = vpow.pop %v1987
        %v1989 = vmul.f32 %v1888, 1.442695
        %v1990 = vpow.pop %v1989
        %v1991 = vmul.f32 %v1889, 1.442695
        %v1992 = vpow.pop %v1991
        %v1993 = vmul.f32 %v1890, 1.442695
        %v1994 = vpow.pop %v1993
        %v1995 = vmul.f32 %v1891, 1.442695
        %v1996 = vpow.pop %v1995
        %v1997 = vmul.f32 %v1892, 1.442695
        %v1998 = vpow.pop %v1997
        %v1999 = vmul.f32 %v1893, 1.442695
        %v2000 = vpow.pop %v1999
        %v2001 = vmul.f32 %v1894, 1.442695
        %v2002 = vpow.pop %v2001
        %v2003 = vmul.f32 %v1895, 1.442695
        %v2004 = vpow.pop %v2003
        %v2005 = vmul.f32 %v1896, 1.442695
        %v2006 = vpow.pop %v2005
        %v2007 = vmul.f32 %v1897, 1.442695
        %v2008 = vpow.pop %v2007
        %v2009 = vmul.f32 %v1898, 1.442695
        %v2010 = vpow.pop %v2009
        %v2011 = vmul.f32 %v1899, 1.442695
        %v2012 = vpow.pop %v2011
        %v2013 = vmul.f32 %v1900, 1.442695
        %v2014 = vpow.pop %v2013
        %v2015 = vmul.f32 %v1901, 1.442695
        %v2016 = vpow.pop %v2015
        %v2017 = vmul.f32 %v1902, 1.442695
        %v2018 = vpow.pop %v2017
        %v2019 = vmul.f32 %v1903, 1.442695
        %v2020 = vpow.pop %v2019
        %v2021 = vmul.f32 %v1904, 1.442695
        %v2022 = vpow.pop %v2021
        %v2023 = vmul.f32 %v1905, 1.442695
        %v2024 = vpow.pop %v2023
        %v2025 = vmul.f32 %v1906, 1.442695
        %v2026 = vpow.pop %v2025
        %v2027 = vmul.f32 %v1907, 1.442695
        %v2028 = vpow.pop %v2027
        %v2029 = vmul.f32 %v1908, 1.442695
        %v2030 = vpow.pop %v2029
        %v2031 = vmul.f32 %v1909, 1.442695
        %v2032 = vpow.pop %v2031
        %v2033 = vmul.f32 %v1910, 1.442695
        %v2034 = vpow.pop %v2033
        %v2035 = vmul.f32 %v1911, 1.442695
        %v2036 = vpow.pop %v2035
        %v2037 = vmul.f32 %v1912, 1.442695
        %v2038 = vpow.pop %v2037
        %v2039 = vmul.f32 %v1913, 1.442695
        %v2040 = vpow.pop %v2039
        %v2041 = vmul.f32 %v1914, 1.442695
        %v2042 = vpow.pop %v2041
        %v2043 = vadd.f32 %v1916, 1.0
        %v2044 = vadd.f32 %v1918, 1.0
        %v2045 = vadd.f32 %v1920, 1.0
        %v2046 = vadd.f32 %v1922, 1.0
        %v2047 = vadd.f32 %v1924, 1.0
        %v2048 = vadd.f32 %v1926, 1.0
        %v2049 = vadd.f32 %v1928, 1.0
        %v2050 = vadd.f32 %v1930, 1.0
        %v2051 = vadd.f32 %v1932, 1.0
        %v2052 = vadd.f32 %v1934, 1.0
        %v2053 = vadd.f32 %v1936, 1.0
        %v2054 = vadd.f32 %v1938, 1.0
        %v2055 = vadd.f32 %v1940, 1.0
        %v2056 = vadd.f32 %v1942, 1.0
        %v2057 = vadd.f32 %v1944, 1.0
        %v2058 = vadd.f32 %v1946, 1.0
        %v2059 = vadd.f32 %v1948, 1.0
        %v2060 = vadd.f32 %v1950, 1.0
        %v2061 = vadd.f32 %v1952, 1.0
        %v2062 = vadd.f32 %v1954, 1.0
        %v2063 = vadd.f32 %v1956, 1.0
        %v2064 = vadd.f32 %v1958, 1.0
        %v2065 = vadd.f32 %v1960, 1.0
        %v2066 = vadd.f32 %v1962, 1.0
        %v2067 = vadd.f32 %v1964, 1.0
        %v2068 = vadd.f32 %v1966, 1.0
        %v2069 = vadd.f32 %v1968, 1.0
        %v2070 = vadd.f32 %v1970, 1.0
        %v2071 = vadd.f32 %v1972, 1.0
        %v2072 = vadd.f32 %v1974, 1.0
        %v2073 = vadd.f32 %v1976, 1.0
        %v2074 = vadd.f32 %v1978, 1.0
        %v2075 = vadd.f32 %v1980, 1.0
        %v2076 = vadd.f32 %v1982, 1.0
        %v2077 = vadd.f32 %v1984, 1.0
        %v2078 = vadd.f32 %v1986, 1.0
        %v2079 = vadd.f32 %v1988, 1.0
        %v2080 = vadd.f32 %v1990, 1.0
        %v2081 = vadd.f32 %v1992, 1.0
        %v2082 = vadd.f32 %v1994, 1.0
        %v2083 = vadd.f32 %v1996, 1.0
        %v2084 = vadd.f32 %v1998, 1.0
        %v2085 = vadd.f32 %v2000, 1.0
        %v2086 = vadd.f32 %v2002, 1.0
        %v2087 = vadd.f32 %v2004, 1.0
        %v2088 = vadd.f32 %v2006, 1.0
        %v2089 = vadd.f32 %v2008, 1.0
        %v2090 = vadd.f32 %v2010, 1.0
        %v2091 = vadd.f32 %v2012, 1.0
        %v2092 = vadd.f32 %v2014, 1.0
        %v2093 = vadd.f32 %v2016, 1.0
        %v2094 = vadd.f32 %v2018, 1.0
        %v2095 = vadd.f32 %v2020, 1.0
        %v2096 = vadd.f32 %v2022, 1.0
        %v2097 = vadd.f32 %v2024, 1.0
        %v2098 = vadd.f32 %v2026, 1.0
        %v2099 = vadd.f32 %v2028, 1.0
        %v2100 = vadd.f32 %v2030, 1.0
        %v2101 = vadd.f32 %v2032, 1.0
        %v2102 = vadd.f32 %v2034, 1.0
        %v2103 = vadd.f32 %v2036, 1.0
        %v2104 = vadd.f32 %v2038, 1.0
        %v2105 = vadd.f32 %v2040, 1.0
        %v2106 = vadd.f32 %v2042, 1.0
        %v2107 = vrcp.pop %v2043
        %v2108 = vmul.f32 %v2043, %v2107
        %v2109 = vsub.f32 1.0, %v2108
        %v2110 = vmul.f32 %v2107, %v2109
        %v2111 = vadd.f32 %v2107, %v2110
        %vm2112 = vweird.f32 %v2043
        %vm2113 = vweird.f32 %v2107
        %vm2114 = vmor %vm2112, %vm2113
        %v2115 = vsel %vm2114, %v2107, %v2111
        %v2116 = vand.u32 2147483647, %v2043
        %vm2117 = vcmp.eq.f32.partialorder %v2116, 8.507059e+37
        %v2118 = vand.u32 %v2043, 2147483648
        %v2119 = vor.u32 1.1754944e-38, %v2118
        %v2120 = vsel %vm2117, %v2119, %v2115
        %v2121 = vmul.f32 1.0, %v2120
        %v2122 = vrcp.pop %v2044
        %v2123 = vmul.f32 %v2044, %v2122
        %v2124 = vsub.f32 1.0, %v2123
        %v2125 = vmul.f32 %v2122, %v2124
        %v2126 = vadd.f32 %v2122, %v2125
        %vm2127 = vweird.f32 %v2044
        %vm2128 = vweird.f32 %v2122
        %vm2129 = vmor %vm2127, %vm2128
        %v2130 = vsel %vm2129, %v2122, %v2126
        %v2131 = vand.u32 2147483647, %v2044
        %vm2132 = vcmp.eq.f32.partialorder %v2131, 8.507059e+37
        %v2133 = vand.u32 %v2044, 2147483648
        %v2134 = vor.u32 1.1754944e-38, %v2133
        %v2135 = vsel %vm2132, %v2134, %v2130
        %v2136 = vmul.f32 1.0, %v2135
        %v2137 = vrcp.pop %v2045
        %v2138 = vmul.f32 %v2045, %v2137
        %v2139 = vsub.f32 1.0, %v2138
        %v2140 = vmul.f32 %v2137, %v2139
        %v2141 = vadd.f32 %v2137, %v2140
        %vm2142 = vweird.f32 %v2045
        %vm2143 = vweird.f32 %v2137
        %vm2144 = vmor %vm2142, %vm2143
        %v2145 = vsel %vm2144, %v2137, %v2141
        %v2146 = vand.u32 2147483647, %v2045
        %vm2147 = vcmp.eq.f32.partialorder %v2146, 8.507059e+37
        %v2148 = vand.u32 %v2045, 2147483648
        %v2149 = vor.u32 1.1754944e-38, %v2148
        %v2150 = vsel %vm2147, %v2149, %v2145
        %v2151 = vmul.f32 1.0, %v2150
        %v2152 = vrcp.pop %v2046
        %v2153 = vmul.f32 %v2046, %v2152
        %v2154 = vsub.f32 1.0, %v2153
        %v2155 = vmul.f32 %v2152, %v2154
        %v2156 = vadd.f32 %v2152, %v2155
        %vm2157 = vweird.f32 %v2046
        %vm2158 = vweird.f32 %v2152
        %vm2159 = vmor %vm2157, %vm2158
        %v2160 = vsel %vm2159, %v2152, %v2156
        %v2161 = vand.u32 2147483647, %v2046
        %vm2162 = vcmp.eq.f32.partialorder %v2161, 8.507059e+37
        %v2163 = vand.u32 %v2046, 2147483648
        %v2164 = vor.u32 1.1754944e-38, %v2163
        %v2165 = vsel %vm2162, %v2164, %v2160
        %v2166 = vmul.f32 1.0, %v2165
        %v2167 = vrcp.pop %v2047
        %v2168 = vmul.f32 %v2047, %v2167
        %v2169 = vsub.f32 1.0, %v2168
        %v2170 = vmul.f32 %v2167, %v2169
        %v2171 = vadd.f32 %v2167, %v2170
        %vm2172 = vweird.f32 %v2047
        %vm2173 = vweird.f32 %v2167
        %vm2174 = vmor %vm2172, %vm2173
        %v2175 = vsel %vm2174, %v2167, %v2171
        %v2176 = vand.u32 2147483647, %v2047
        %vm2177 = vcmp.eq.f32.partialorder %v2176, 8.507059e+37
        %v2178 = vand.u32 %v2047, 2147483648
        %v2179 = vor.u32 1.1754944e-38, %v2178
        %v2180 = vsel %vm2177, %v2179, %v2175
        %v2181 = vmul.f32 1.0, %v2180
        %v2182 = vrcp.pop %v2048
        %v2183 = vmul.f32 %v2048, %v2182
        %v2184 = vsub.f32 1.0, %v2183
        %v2185 = vmul.f32 %v2182, %v2184
        %v2186 = vadd.f32 %v2182, %v2185
        %vm2187 = vweird.f32 %v2048
        %vm2188 = vweird.f32 %v2182
        %vm2189 = vmor %vm2187, %vm2188
        %v2190 = vsel %vm2189, %v2182, %v2186
        %v2191 = vand.u32 2147483647, %v2048
        %vm2192 = vcmp.eq.f32.partialorder %v2191, 8.507059e+37
        %v2193 = vand.u32 %v2048, 2147483648
        %v2194 = vor.u32 1.1754944e-38, %v2193
        %v2195 = vsel %vm2192, %v2194, %v2190
        %v2196 = vmul.f32 1.0, %v2195
        %v2197 = vrcp.pop %v2049
        %v2198 = vmul.f32 %v2049, %v2197
        %v2199 = vsub.f32 1.0, %v2198
        %v2200 = vmul.f32 %v2197, %v2199
        %v2201 = vadd.f32 %v2197, %v2200
        %vm2202 = vweird.f32 %v2049
        %vm2203 = vweird.f32 %v2197
        %vm2204 = vmor %vm2202, %vm2203
        %v2205 = vsel %vm2204, %v2197, %v2201
        %v2206 = vand.u32 2147483647, %v2049
        %vm2207 = vcmp.eq.f32.partialorder %v2206, 8.507059e+37
        %v2208 = vand.u32 %v2049, 2147483648
        %v2209 = vor.u32 1.1754944e-38, %v2208
        %v2210 = vsel %vm2207, %v2209, %v2205
        %v2211 = vmul.f32 1.0, %v2210
        %v2212 = vrcp.pop %v2050
        %v2213 = vmul.f32 %v2050, %v2212
        %v2214 = vsub.f32 1.0, %v2213
        %v2215 = vmul.f32 %v2212, %v2214
        %v2216 = vadd.f32 %v2212, %v2215
        %vm2217 = vweird.f32 %v2050
        %vm2218 = vweird.f32 %v2212
        %vm2219 = vmor %vm2217, %vm2218
        %v2220 = vsel %vm2219, %v2212, %v2216
        %v2221 = vand.u32 2147483647, %v2050
        %vm2222 = vcmp.eq.f32.partialorder %v2221, 8.507059e+37
        %v2223 = vand.u32 %v2050, 2147483648
        %v2224 = vor.u32 1.1754944e-38, %v2223
        %v2225 = vsel %vm2222, %v2224, %v2220
        %v2226 = vmul.f32 1.0, %v2225
        %v2227 = vrcp.pop %v2051
        %v2228 = vmul.f32 %v2051, %v2227
        %v2229 = vsub.f32 1.0, %v2228
        %v2230 = vmul.f32 %v2227, %v2229
        %v2231 = vadd.f32 %v2227, %v2230
        %vm2232 = vweird.f32 %v2051
        %vm2233 = vweird.f32 %v2227
        %vm2234 = vmor %vm2232, %vm2233
        %v2235 = vsel %vm2234, %v2227, %v2231
        %v2236 = vand.u32 2147483647, %v2051
        %vm2237 = vcmp.eq.f32.partialorder %v2236, 8.507059e+37
        %v2238 = vand.u32 %v2051, 2147483648
        %v2239 = vor.u32 1.1754944e-38, %v2238
        %v2240 = vsel %vm2237, %v2239, %v2235
        %v2241 = vmul.f32 1.0, %v2240
        %v2242 = vrcp.pop %v2052
        %v2243 = vmul.f32 %v2052, %v2242
        %v2244 = vsub.f32 1.0, %v2243
        %v2245 = vmul.f32 %v2242, %v2244
        %v2246 = vadd.f32 %v2242, %v2245
        %vm2247 = vweird.f32 %v2052
        %vm2248 = vweird.f32 %v2242
        %vm2249 = vmor %vm2247, %vm2248
        %v2250 = vsel %vm2249, %v2242, %v2246
        %v2251 = vand.u32 2147483647, %v2052
        %vm2252 = vcmp.eq.f32.partialorder %v2251, 8.507059e+37
        %v2253 = vand.u32 %v2052, 2147483648
        %v2254 = vor.u32 1.1754944e-38, %v2253
        %v2255 = vsel %vm2252, %v2254, %v2250
        %v2256 = vmul.f32 1.0, %v2255
        %v2257 = vrcp.pop %v2053
        %v2258 = vmul.f32 %v2053, %v2257
        %v2259 = vsub.f32 1.0, %v2258
        %v2260 = vmul.f32 %v2257, %v2259
        %v2261 = vadd.f32 %v2257, %v2260
        %vm2262 = vweird.f32 %v2053
        %vm2263 = vweird.f32 %v2257
        %vm2264 = vmor %vm2262, %vm2263
        %v2265 = vsel %vm2264, %v2257, %v2261
        %v2266 = vand.u32 2147483647, %v2053
        %vm2267 = vcmp.eq.f32.partialorder %v2266, 8.507059e+37
        %v2268 = vand.u32 %v2053, 2147483648
        %v2269 = vor.u32 1.1754944e-38, %v2268
        %v2270 = vsel %vm2267, %v2269, %v2265
        %v2271 = vmul.f32 1.0, %v2270
        %v2272 = vrcp.pop %v2054
        %v2273 = vmul.f32 %v2054, %v2272
        %v2274 = vsub.f32 1.0, %v2273
        %v2275 = vmul.f32 %v2272, %v2274
        %v2276 = vadd.f32 %v2272, %v2275
        %vm2277 = vweird.f32 %v2054
        %vm2278 = vweird.f32 %v2272
        %vm2279 = vmor %vm2277, %vm2278
        %v2280 = vsel %vm2279, %v2272, %v2276
        %v2281 = vand.u32 2147483647, %v2054
        %vm2282 = vcmp.eq.f32.partialorder %v2281, 8.507059e+37
        %v2283 = vand.u32 %v2054, 2147483648
        %v2284 = vor.u32 1.1754944e-38, %v2283
        %v2285 = vsel %vm2282, %v2284, %v2280
        %v2286 = vmul.f32 1.0, %v2285
        %v2287 = vrcp.pop %v2055
        %v2288 = vmul.f32 %v2055, %v2287
        %v2289 = vsub.f32 1.0, %v2288
        %v2290 = vmul.f32 %v2287, %v2289
        %v2291 = vadd.f32 %v2287, %v2290
        %vm2292 = vweird.f32 %v2055
        %vm2293 = vweird.f32 %v2287
        %vm2294 = vmor %vm2292, %vm2293
        %v2295 = vsel %vm2294, %v2287, %v2291
        %v2296 = vand.u32 2147483647, %v2055
        %vm2297 = vcmp.eq.f32.partialorder %v2296, 8.507059e+37
        %v2298 = vand.u32 %v2055, 2147483648
        %v2299 = vor.u32 1.1754944e-38, %v2298
        %v2300 = vsel %vm2297, %v2299, %v2295
        %v2301 = vmul.f32 1.0, %v2300
        %v2302 = vrcp.pop %v2056
        %v2303 = vmul.f32 %v2056, %v2302
        %v2304 = vsub.f32 1.0, %v2303
        %v2305 = vmul.f32 %v2302, %v2304
        %v2306 = vadd.f32 %v2302, %v2305
        %vm2307 = vweird.f32 %v2056
        %vm2308 = vweird.f32 %v2302
        %vm2309 = vmor %vm2307, %vm2308
        %v2310 = vsel %vm2309, %v2302, %v2306
        %v2311 = vand.u32 2147483647, %v2056
        %vm2312 = vcmp.eq.f32.partialorder %v2311, 8.507059e+37
        %v2313 = vand.u32 %v2056, 2147483648
        %v2314 = vor.u32 1.1754944e-38, %v2313
        %v2315 = vsel %vm2312, %v2314, %v2310
        %v2316 = vmul.f32 1.0, %v2315
        %v2317 = vrcp.pop %v2057
        %v2318 = vmul.f32 %v2057, %v2317
        %v2319 = vsub.f32 1.0, %v2318
        %v2320 = vmul.f32 %v2317, %v2319
        %v2321 = vadd.f32 %v2317, %v2320
        %vm2322 = vweird.f32 %v2057
        %vm2323 = vweird.f32 %v2317
        %vm2324 = vmor %vm2322, %vm2323
        %v2325 = vsel %vm2324, %v2317, %v2321
        %v2326 = vand.u32 2147483647, %v2057
        %vm2327 = vcmp.eq.f32.partialorder %v2326, 8.507059e+37
        %v2328 = vand.u32 %v2057, 2147483648
        %v2329 = vor.u32 1.1754944e-38, %v2328
        %v2330 = vsel %vm2327, %v2329, %v2325
        %v2331 = vmul.f32 1.0, %v2330
        %v2332 = vrcp.pop %v2058
        %v2333 = vmul.f32 %v2058, %v2332
        %v2334 = vsub.f32 1.0, %v2333
        %v2335 = vmul.f32 %v2332, %v2334
        %v2336 = vadd.f32 %v2332, %v2335
        %vm2337 = vweird.f32 %v2058
        %vm2338 = vweird.f32 %v2332
        %vm2339 = vmor %vm2337, %vm2338
        %v2340 = vsel %vm2339, %v2332, %v2336
        %v2341 = vand.u32 2147483647, %v2058
        %vm2342 = vcmp.eq.f32.partialorder %v2341, 8.507059e+37
        %v2343 = vand.u32 %v2058, 2147483648
        %v2344 = vor.u32 1.1754944e-38, %v2343
        %v2345 = vsel %vm2342, %v2344, %v2340
        %v2346 = vmul.f32 1.0, %v2345
        %v2347 = vrcp.pop %v2059
        %v2348 = vmul.f32 %v2059, %v2347
        %v2349 = vsub.f32 1.0, %v2348
        %v2350 = vmul.f32 %v2347, %v2349
        %v2351 = vadd.f32 %v2347, %v2350
        %vm2352 = vweird.f32 %v2059
        %vm2353 = vweird.f32 %v2347
        %vm2354 = vmor %vm2352, %vm2353
        %v2355 = vsel %vm2354, %v2347, %v2351
        %v2356 = vand.u32 2147483647, %v2059
        %vm2357 = vcmp.eq.f32.partialorder %v2356, 8.507059e+37
        %v2358 = vand.u32 %v2059, 2147483648
        %v2359 = vor.u32 1.1754944e-38, %v2358
        %v2360 = vsel %vm2357, %v2359, %v2355
        %v2361 = vmul.f32 1.0, %v2360
        %v2362 = vrcp.pop %v2060
        %v2363 = vmul.f32 %v2060, %v2362
        %v2364 = vsub.f32 1.0, %v2363
        %v2365 = vmul.f32 %v2362, %v2364
        %v2366 = vadd.f32 %v2362, %v2365
        %vm2367 = vweird.f32 %v2060
        %vm2368 = vweird.f32 %v2362
        %vm2369 = vmor %vm2367, %vm2368
        %v2370 = vsel %vm2369, %v2362, %v2366
        %v2371 = vand.u32 2147483647, %v2060
        %vm2372 = vcmp.eq.f32.partialorder %v2371, 8.507059e+37
        %v2373 = vand.u32 %v2060, 2147483648
        %v2374 = vor.u32 1.1754944e-38, %v2373
        %v2375 = vsel %vm2372, %v2374, %v2370
        %v2376 = vmul.f32 1.0, %v2375
        %v2377 = vrcp.pop %v2061
        %v2378 = vmul.f32 %v2061, %v2377
        %v2379 = vsub.f32 1.0, %v2378
        %v2380 = vmul.f32 %v2377, %v2379
        %v2381 = vadd.f32 %v2377, %v2380
        %vm2382 = vweird.f32 %v2061
        %vm2383 = vweird.f32 %v2377
        %vm2384 = vmor %vm2382, %vm2383
        %v2385 = vsel %vm2384, %v2377, %v2381
        %v2386 = vand.u32 2147483647, %v2061
        %vm2387 = vcmp.eq.f32.partialorder %v2386, 8.507059e+37
        %v2388 = vand.u32 %v2061, 2147483648
        %v2389 = vor.u32 1.1754944e-38, %v2388
        %v2390 = vsel %vm2387, %v2389, %v2385
        %v2391 = vmul.f32 1.0, %v2390
        %v2392 = vrcp.pop %v2062
        %v2393 = vmul.f32 %v2062, %v2392
        %v2394 = vsub.f32 1.0, %v2393
        %v2395 = vmul.f32 %v2392, %v2394
        %v2396 = vadd.f32 %v2392, %v2395
        %vm2397 = vweird.f32 %v2062
        %vm2398 = vweird.f32 %v2392
        %vm2399 = vmor %vm2397, %vm2398
        %v2400 = vsel %vm2399, %v2392, %v2396
        %v2401 = vand.u32 2147483647, %v2062
        %vm2402 = vcmp.eq.f32.partialorder %v2401, 8.507059e+37
        %v2403 = vand.u32 %v2062, 2147483648
        %v2404 = vor.u32 1.1754944e-38, %v2403
        %v2405 = vsel %vm2402, %v2404, %v2400
        %v2406 = vmul.f32 1.0, %v2405
        %v2407 = vrcp.pop %v2063
        %v2408 = vmul.f32 %v2063, %v2407
        %v2409 = vsub.f32 1.0, %v2408
        %v2410 = vmul.f32 %v2407, %v2409
        %v2411 = vadd.f32 %v2407, %v2410
        %vm2412 = vweird.f32 %v2063
        %vm2413 = vweird.f32 %v2407
        %vm2414 = vmor %vm2412, %vm2413
        %v2415 = vsel %vm2414, %v2407, %v2411
        %v2416 = vand.u32 2147483647, %v2063
        %vm2417 = vcmp.eq.f32.partialorder %v2416, 8.507059e+37
        %v2418 = vand.u32 %v2063, 2147483648
        %v2419 = vor.u32 1.1754944e-38, %v2418
        %v2420 = vsel %vm2417, %v2419, %v2415
        %v2421 = vmul.f32 1.0, %v2420
        %v2422 = vrcp.pop %v2064
        %v2423 = vmul.f32 %v2064, %v2422
        %v2424 = vsub.f32 1.0, %v2423
        %v2425 = vmul.f32 %v2422, %v2424
        %v2426 = vadd.f32 %v2422, %v2425
        %vm2427 = vweird.f32 %v2064
        %vm2428 = vweird.f32 %v2422
        %vm2429 = vmor %vm2427, %vm2428
        %v2430 = vsel %vm2429, %v2422, %v2426
        %v2431 = vand.u32 2147483647, %v2064
        %vm2432 = vcmp.eq.f32.partialorder %v2431, 8.507059e+37
        %v2433 = vand.u32 %v2064, 2147483648
        %v2434 = vor.u32 1.1754944e-38, %v2433
        %v2435 = vsel %vm2432, %v2434, %v2430
        %v2436 = vmul.f32 1.0, %v2435
        %v2437 = vrcp.pop %v2065
        %v2438 = vmul.f32 %v2065, %v2437
        %v2439 = vsub.f32 1.0, %v2438
        %v2440 = vmul.f32 %v2437, %v2439
        %v2441 = vadd.f32 %v2437, %v2440
        %vm2442 = vweird.f32 %v2065
        %vm2443 = vweird.f32 %v2437
        %vm2444 = vmor %vm2442, %vm2443
        %v2445 = vsel %vm2444, %v2437, %v2441
        %v2446 = vand.u32 2147483647, %v2065
        %vm2447 = vcmp.eq.f32.partialorder %v2446, 8.507059e+37
        %v2448 = vand.u32 %v2065, 2147483648
        %v2449 = vor.u32 1.1754944e-38, %v2448
        %v2450 = vsel %vm2447, %v2449, %v2445
        %v2451 = vmul.f32 1.0, %v2450
        %v2452 = vrcp.pop %v2066
        %v2453 = vmul.f32 %v2066, %v2452
        %v2454 = vsub.f32 1.0, %v2453
        %v2455 = vmul.f32 %v2452, %v2454
        %v2456 = vadd.f32 %v2452, %v2455
        %vm2457 = vweird.f32 %v2066
        %vm2458 = vweird.f32 %v2452
        %vm2459 = vmor %vm2457, %vm2458
        %v2460 = vsel %vm2459, %v2452, %v2456
        %v2461 = vand.u32 2147483647, %v2066
        %vm2462 = vcmp.eq.f32.partialorder %v2461, 8.507059e+37
        %v2463 = vand.u32 %v2066, 2147483648
        %v2464 = vor.u32 1.1754944e-38, %v2463
        %v2465 = vsel %vm2462, %v2464, %v2460
        %v2466 = vmul.f32 1.0, %v2465
        %v2467 = vrcp.pop %v2067
        %v2468 = vmul.f32 %v2067, %v2467
        %v2469 = vsub.f32 1.0, %v2468
        %v2470 = vmul.f32 %v2467, %v2469
        %v2471 = vadd.f32 %v2467, %v2470
        %vm2472 = vweird.f32 %v2067
        %vm2473 = vweird.f32 %v2467
        %vm2474 = vmor %vm2472, %vm2473
        %v2475 = vsel %vm2474, %v2467, %v2471
        %v2476 = vand.u32 2147483647, %v2067
        %vm2477 = vcmp.eq.f32.partialorder %v2476, 8.507059e+37
        %v2478 = vand.u32 %v2067, 2147483648
        %v2479 = vor.u32 1.1754944e-38, %v2478
        %v2480 = vsel %vm2477, %v2479, %v2475
        %v2481 = vmul.f32 1.0, %v2480
        %v2482 = vrcp.pop %v2068
        %v2483 = vmul.f32 %v2068, %v2482
        %v2484 = vsub.f32 1.0, %v2483
        %v2485 = vmul.f32 %v2482, %v2484
        %v2486 = vadd.f32 %v2482, %v2485
        %vm2487 = vweird.f32 %v2068
        %vm2488 = vweird.f32 %v2482
        %vm2489 = vmor %vm2487, %vm2488
        %v2490 = vsel %vm2489, %v2482, %v2486
        %v2491 = vand.u32 2147483647, %v2068
        %vm2492 = vcmp.eq.f32.partialorder %v2491, 8.507059e+37
        %v2493 = vand.u32 %v2068, 2147483648
        %v2494 = vor.u32 1.1754944e-38, %v2493
        %v2495 = vsel %vm2492, %v2494, %v2490
        %v2496 = vmul.f32 1.0, %v2495
        %v2497 = vrcp.pop %v2069
        %v2498 = vmul.f32 %v2069, %v2497
        %v2499 = vsub.f32 1.0, %v2498
        %v2500 = vmul.f32 %v2497, %v2499
        %v2501 = vadd.f32 %v2497, %v2500
        %vm2502 = vweird.f32 %v2069
        %vm2503 = vweird.f32 %v2497
        %vm2504 = vmor %vm2502, %vm2503
        %v2505 = vsel %vm2504, %v2497, %v2501
        %v2506 = vand.u32 2147483647, %v2069
        %vm2507 = vcmp.eq.f32.partialorder %v2506, 8.507059e+37
        %v2508 = vand.u32 %v2069, 2147483648
        %v2509 = vor.u32 1.1754944e-38, %v2508
        %v2510 = vsel %vm2507, %v2509, %v2505
        %v2511 = vmul.f32 1.0, %v2510
        %v2512 = vrcp.pop %v2070
        %v2513 = vmul.f32 %v2070, %v2512
        %v2514 = vsub.f32 1.0, %v2513
        %v2515 = vmul.f32 %v2512, %v2514
        %v2516 = vadd.f32 %v2512, %v2515
        %vm2517 = vweird.f32 %v2070
        %vm2518 = vweird.f32 %v2512
        %vm2519 = vmor %vm2517, %vm2518
        %v2520 = vsel %vm2519, %v2512, %v2516
        %v2521 = vand.u32 2147483647, %v2070
        %vm2522 = vcmp.eq.f32.partialorder %v2521, 8.507059e+37
        %v2523 = vand.u32 %v2070, 2147483648
        %v2524 = vor.u32 1.1754944e-38, %v2523
        %v2525 = vsel %vm2522, %v2524, %v2520
        %v2526 = vmul.f32 1.0, %v2525
        %v2527 = vrcp.pop %v2071
        %v2528 = vmul.f32 %v2071, %v2527
        %v2529 = vsub.f32 1.0, %v2528
        %v2530 = vmul.f32 %v2527, %v2529
        %v2531 = vadd.f32 %v2527, %v2530
        %vm2532 = vweird.f32 %v2071
        %vm2533 = vweird.f32 %v2527
        %vm2534 = vmor %vm2532, %vm2533
        %v2535 = vsel %vm2534, %v2527, %v2531
        %v2536 = vand.u32 2147483647, %v2071
        %vm2537 = vcmp.eq.f32.partialorder %v2536, 8.507059e+37
        %v2538 = vand.u32 %v2071, 2147483648
        %v2539 = vor.u32 1.1754944e-38, %v2538
        %v2540 = vsel %vm2537, %v2539, %v2535
        %v2541 = vmul.f32 1.0, %v2540
        %v2542 = vrcp.pop %v2072
        %v2543 = vmul.f32 %v2072, %v2542
        %v2544 = vsub.f32 1.0, %v2543
        %v2545 = vmul.f32 %v2542, %v2544
        %v2546 = vadd.f32 %v2542, %v2545
        %vm2547 = vweird.f32 %v2072
        %vm2548 = vweird.f32 %v2542
        %vm2549 = vmor %vm2547, %vm2548
        %v2550 = vsel %vm2549, %v2542, %v2546
        %v2551 = vand.u32 2147483647, %v2072
        %vm2552 = vcmp.eq.f32.partialorder %v2551, 8.507059e+37
        %v2553 = vand.u32 %v2072, 2147483648
        %v2554 = vor.u32 1.1754944e-38, %v2553
        %v2555 = vsel %vm2552, %v2554, %v2550
        %v2556 = vmul.f32 1.0, %v2555
        %v2557 = vrcp.pop %v2073
        %v2558 = vmul.f32 %v2073, %v2557
        %v2559 = vsub.f32 1.0, %v2558
        %v2560 = vmul.f32 %v2557, %v2559
        %v2561 = vadd.f32 %v2557, %v2560
        %vm2562 = vweird.f32 %v2073
        %vm2563 = vweird.f32 %v2557
        %vm2564 = vmor %vm2562, %vm2563
        %v2565 = vsel %vm2564, %v2557, %v2561
        %v2566 = vand.u32 2147483647, %v2073
        %vm2567 = vcmp.eq.f32.partialorder %v2566, 8.507059e+37
        %v2568 = vand.u32 %v2073, 2147483648
        %v2569 = vor.u32 1.1754944e-38, %v2568
        %v2570 = vsel %vm2567, %v2569, %v2565
        %v2571 = vmul.f32 1.0, %v2570
        %v2572 = vrcp.pop %v2074
        %v2573 = vmul.f32 %v2074, %v2572
        %v2574 = vsub.f32 1.0, %v2573
        %v2575 = vmul.f32 %v2572, %v2574
        %v2576 = vadd.f32 %v2572, %v2575
        %vm2577 = vweird.f32 %v2074
        %vm2578 = vweird.f32 %v2572
        %vm2579 = vmor %vm2577, %vm2578
        %v2580 = vsel %vm2579, %v2572, %v2576
        %v2581 = vand.u32 2147483647, %v2074
        %vm2582 = vcmp.eq.f32.partialorder %v2581, 8.507059e+37
        %v2583 = vand.u32 %v2074, 2147483648
        %v2584 = vor.u32 1.1754944e-38, %v2583
        %v2585 = vsel %vm2582, %v2584, %v2580
        %v2586 = vmul.f32 1.0, %v2585
        %v2587 = vrcp.pop %v2075
        %v2588 = vmul.f32 %v2075, %v2587
        %v2589 = vsub.f32 1.0, %v2588
        %v2590 = vmul.f32 %v2587, %v2589
        %v2591 = vadd.f32 %v2587, %v2590
        %vm2592 = vweird.f32 %v2075
        %vm2593 = vweird.f32 %v2587
        %vm2594 = vmor %vm2592, %vm2593
        %v2595 = vsel %vm2594, %v2587, %v2591
        %v2596 = vand.u32 2147483647, %v2075
        %vm2597 = vcmp.eq.f32.partialorder %v2596, 8.507059e+37
        %v2598 = vand.u32 %v2075, 2147483648
        %v2599 = vor.u32 1.1754944e-38, %v2598
        %v2600 = vsel %vm2597, %v2599, %v2595
        %v2601 = vmul.f32 1.0, %v2600
        %v2602 = vrcp.pop %v2076
        %v2603 = vmul.f32 %v2076, %v2602
        %v2604 = vsub.f32 1.0, %v2603
        %v2605 = vmul.f32 %v2602, %v2604
        %v2606 = vadd.f32 %v2602, %v2605
        %vm2607 = vweird.f32 %v2076
        %vm2608 = vweird.f32 %v2602
        %vm2609 = vmor %vm2607, %vm2608
        %v2610 = vsel %vm2609, %v2602, %v2606
        %v2611 = vand.u32 2147483647, %v2076
        %vm2612 = vcmp.eq.f32.partialorder %v2611, 8.507059e+37
        %v2613 = vand.u32 %v2076, 2147483648
        %v2614 = vor.u32 1.1754944e-38, %v2613
        %v2615 = vsel %vm2612, %v2614, %v2610
        %v2616 = vmul.f32 1.0, %v2615
        %v2617 = vrcp.pop %v2077
        %v2618 = vmul.f32 %v2077, %v2617
        %v2619 = vsub.f32 1.0, %v2618
        %v2620 = vmul.f32 %v2617, %v2619
        %v2621 = vadd.f32 %v2617, %v2620
        %vm2622 = vweird.f32 %v2077
        %vm2623 = vweird.f32 %v2617
        %vm2624 = vmor %vm2622, %vm2623
        %v2625 = vsel %vm2624, %v2617, %v2621
        %v2626 = vand.u32 2147483647, %v2077
        %vm2627 = vcmp.eq.f32.partialorder %v2626, 8.507059e+37
        %v2628 = vand.u32 %v2077, 2147483648
        %v2629 = vor.u32 1.1754944e-38, %v2628
        %v2630 = vsel %vm2627, %v2629, %v2625
        %v2631 = vmul.f32 1.0, %v2630
        %v2632 = vrcp.pop %v2078
        %v2633 = vmul.f32 %v2078, %v2632
        %v2634 = vsub.f32 1.0, %v2633
        %v2635 = vmul.f32 %v2632, %v2634
        %v2636 = vadd.f32 %v2632, %v2635
        %vm2637 = vweird.f32 %v2078
        %vm2638 = vweird.f32 %v2632
        %vm2639 = vmor %vm2637, %vm2638
        %v2640 = vsel %vm2639, %v2632, %v2636
        %v2641 = vand.u32 2147483647, %v2078
        %vm2642 = vcmp.eq.f32.partialorder %v2641, 8.507059e+37
        %v2643 = vand.u32 %v2078, 2147483648
        %v2644 = vor.u32 1.1754944e-38, %v2643
        %v2645 = vsel %vm2642, %v2644, %v2640
        %v2646 = vmul.f32 1.0, %v2645
        %v2647 = vrcp.pop %v2079
        %v2648 = vmul.f32 %v2079, %v2647
        %v2649 = vsub.f32 1.0, %v2648
        %v2650 = vmul.f32 %v2647, %v2649
        %v2651 = vadd.f32 %v2647, %v2650
        %vm2652 = vweird.f32 %v2079
        %vm2653 = vweird.f32 %v2647
        %vm2654 = vmor %vm2652, %vm2653
        %v2655 = vsel %vm2654, %v2647, %v2651
        %v2656 = vand.u32 2147483647, %v2079
        %vm2657 = vcmp.eq.f32.partialorder %v2656, 8.507059e+37
        %v2658 = vand.u32 %v2079, 2147483648
        %v2659 = vor.u32 1.1754944e-38, %v2658
        %v2660 = vsel %vm2657, %v2659, %v2655
        %v2661 = vmul.f32 1.0, %v2660
        %v2662 = vrcp.pop %v2080
        %v2663 = vmul.f32 %v2080, %v2662
        %v2664 = vsub.f32 1.0, %v2663
        %v2665 = vmul.f32 %v2662, %v2664
        %v2666 = vadd.f32 %v2662, %v2665
        %vm2667 = vweird.f32 %v2080
        %vm2668 = vweird.f32 %v2662
        %vm2669 = vmor %vm2667, %vm2668
        %v2670 = vsel %vm2669, %v2662, %v2666
        %v2671 = vand.u32 2147483647, %v2080
        %vm2672 = vcmp.eq.f32.partialorder %v2671, 8.507059e+37
        %v2673 = vand.u32 %v2080, 2147483648
        %v2674 = vor.u32 1.1754944e-38, %v2673
        %v2675 = vsel %vm2672, %v2674, %v2670
        %v2676 = vmul.f32 1.0, %v2675
        %v2677 = vrcp.pop %v2081
        %v2678 = vmul.f32 %v2081, %v2677
        %v2679 = vsub.f32 1.0, %v2678
        %v2680 = vmul.f32 %v2677, %v2679
        %v2681 = vadd.f32 %v2677, %v2680
        %vm2682 = vweird.f32 %v2081
        %vm2683 = vweird.f32 %v2677
        %vm2684 = vmor %vm2682, %vm2683
        %v2685 = vsel %vm2684, %v2677, %v2681
        %v2686 = vand.u32 2147483647, %v2081
        %vm2687 = vcmp.eq.f32.partialorder %v2686, 8.507059e+37
        %v2688 = vand.u32 %v2081, 2147483648
        %v2689 = vor.u32 1.1754944e-38, %v2688
        %v2690 = vsel %vm2687, %v2689, %v2685
        %v2691 = vmul.f32 1.0, %v2690
        %v2692 = vrcp.pop %v2082
        %v2693 = vmul.f32 %v2082, %v2692
        %v2694 = vsub.f32 1.0, %v2693
        %v2695 = vmul.f32 %v2692, %v2694
        %v2696 = vadd.f32 %v2692, %v2695
        %vm2697 = vweird.f32 %v2082
        %vm2698 = vweird.f32 %v2692
        %vm2699 = vmor %vm2697, %vm2698
        %v2700 = vsel %vm2699, %v2692, %v2696
        %v2701 = vand.u32 2147483647, %v2082
        %vm2702 = vcmp.eq.f32.partialorder %v2701, 8.507059e+37
        %v2703 = vand.u32 %v2082, 2147483648
        %v2704 = vor.u32 1.1754944e-38, %v2703
        %v2705 = vsel %vm2702, %v2704, %v2700
        %v2706 = vmul.f32 1.0, %v2705
        %v2707 = vrcp.pop %v2083
        %v2708 = vmul.f32 %v2083, %v2707
        %v2709 = vsub.f32 1.0, %v2708
        %v2710 = vmul.f32 %v2707, %v2709
        %v2711 = vadd.f32 %v2707, %v2710
        %vm2712 = vweird.f32 %v2083
        %vm2713 = vweird.f32 %v2707
        %vm2714 = vmor %vm2712, %vm2713
        %v2715 = vsel %vm2714, %v2707, %v2711
        %v2716 = vand.u32 2147483647, %v2083
        %vm2717 = vcmp.eq.f32.partialorder %v2716, 8.507059e+37
        %v2718 = vand.u32 %v2083, 2147483648
        %v2719 = vor.u32 1.1754944e-38, %v2718
        %v2720 = vsel %vm2717, %v2719, %v2715
        %v2721 = vmul.f32 1.0, %v2720
        %v2722 = vrcp.pop %v2084
        %v2723 = vmul.f32 %v2084, %v2722
        %v2724 = vsub.f32 1.0, %v2723
        %v2725 = vmul.f32 %v2722, %v2724
        %v2726 = vadd.f32 %v2722, %v2725
        %vm2727 = vweird.f32 %v2084
        %vm2728 = vweird.f32 %v2722
        %vm2729 = vmor %vm2727, %vm2728
        %v2730 = vsel %vm2729, %v2722, %v2726
        %v2731 = vand.u32 2147483647, %v2084
        %vm2732 = vcmp.eq.f32.partialorder %v2731, 8.507059e+37
        %v2733 = vand.u32 %v2084, 2147483648
        %v2734 = vor.u32 1.1754944e-38, %v2733
        %v2735 = vsel %vm2732, %v2734, %v2730
        %v2736 = vmul.f32 1.0, %v2735
        %v2737 = vrcp.pop %v2085
        %v2738 = vmul.f32 %v2085, %v2737
        %v2739 = vsub.f32 1.0, %v2738
        %v2740 = vmul.f32 %v2737, %v2739
        %v2741 = vadd.f32 %v2737, %v2740
        %vm2742 = vweird.f32 %v2085
        %vm2743 = vweird.f32 %v2737
        %vm2744 = vmor %vm2742, %vm2743
        %v2745 = vsel %vm2744, %v2737, %v2741
        %v2746 = vand.u32 2147483647, %v2085
        %vm2747 = vcmp.eq.f32.partialorder %v2746, 8.507059e+37
        %v2748 = vand.u32 %v2085, 2147483648
        %v2749 = vor.u32 1.1754944e-38, %v2748
        %v2750 = vsel %vm2747, %v2749, %v2745
        %v2751 = vmul.f32 1.0, %v2750
        %v2752 = vrcp.pop %v2086
        %v2753 = vmul.f32 %v2086, %v2752
        %v2754 = vsub.f32 1.0, %v2753
        %v2755 = vmul.f32 %v2752, %v2754
        %v2756 = vadd.f32 %v2752, %v2755
        %vm2757 = vweird.f32 %v2086
        %vm2758 = vweird.f32 %v2752
        %vm2759 = vmor %vm2757, %vm2758
        %v2760 = vsel %vm2759, %v2752, %v2756
        %v2761 = vand.u32 2147483647, %v2086
        %vm2762 = vcmp.eq.f32.partialorder %v2761, 8.507059e+37
        %v2763 = vand.u32 %v2086, 2147483648
        %v2764 = vor.u32 1.1754944e-38, %v2763
        %v2765 = vsel %vm2762, %v2764, %v2760
        %v2766 = vmul.f32 1.0, %v2765
        %v2767 = vrcp.pop %v2087
        %v2768 = vmul.f32 %v2087, %v2767
        %v2769 = vsub.f32 1.0, %v2768
        %v2770 = vmul.f32 %v2767, %v2769
        %v2771 = vadd.f32 %v2767, %v2770
        %vm2772 = vweird.f32 %v2087
        %vm2773 = vweird.f32 %v2767
        %vm2774 = vmor %vm2772, %vm2773
        %v2775 = vsel %vm2774, %v2767, %v2771
        %v2776 = vand.u32 2147483647, %v2087
        %vm2777 = vcmp.eq.f32.partialorder %v2776, 8.507059e+37
        %v2778 = vand.u32 %v2087, 2147483648
        %v2779 = vor.u32 1.1754944e-38, %v2778
        %v2780 = vsel %vm2777, %v2779, %v2775
        %v2781 = vmul.f32 1.0, %v2780
        %v2782 = vrcp.pop %v2088
        %v2783 = vmul.f32 %v2088, %v2782
        %v2784 = vsub.f32 1.0, %v2783
        %v2785 = vmul.f32 %v2782, %v2784
        %v2786 = vadd.f32 %v2782, %v2785
        %vm2787 = vweird.f32 %v2088
        %vm2788 = vweird.f32 %v2782
        %vm2789 = vmor %vm2787, %vm2788
        %v2790 = vsel %vm2789, %v2782, %v2786
        %v2791 = vand.u32 2147483647, %v2088
        %vm2792 = vcmp.eq.f32.partialorder %v2791, 8.507059e+37
        %v2793 = vand.u32 %v2088, 2147483648
        %v2794 = vor.u32 1.1754944e-38, %v2793
        %v2795 = vsel %vm2792, %v2794, %v2790
        %v2796 = vmul.f32 1.0, %v2795
        %v2797 = vrcp.pop %v2089
        %v2798 = vmul.f32 %v2089, %v2797
        %v2799 = vsub.f32 1.0, %v2798
        %v2800 = vmul.f32 %v2797, %v2799
        %v2801 = vadd.f32 %v2797, %v2800
        %vm2802 = vweird.f32 %v2089
        %vm2803 = vweird.f32 %v2797
        %vm2804 = vmor %vm2802, %vm2803
        %v2805 = vsel %vm2804, %v2797, %v2801
        %v2806 = vand.u32 2147483647, %v2089
        %vm2807 = vcmp.eq.f32.partialorder %v2806, 8.507059e+37
        %v2808 = vand.u32 %v2089, 2147483648
        %v2809 = vor.u32 1.1754944e-38, %v2808
        %v2810 = vsel %vm2807, %v2809, %v2805
        %v2811 = vmul.f32 1.0, %v2810
        %v2812 = vrcp.pop %v2090
        %v2813 = vmul.f32 %v2090, %v2812
        %v2814 = vsub.f32 1.0, %v2813
        %v2815 = vmul.f32 %v2812, %v2814
        %v2816 = vadd.f32 %v2812, %v2815
        %vm2817 = vweird.f32 %v2090
        %vm2818 = vweird.f32 %v2812
        %vm2819 = vmor %vm2817, %vm2818
        %v2820 = vsel %vm2819, %v2812, %v2816
        %v2821 = vand.u32 2147483647, %v2090
        %vm2822 = vcmp.eq.f32.partialorder %v2821, 8.507059e+37
        %v2823 = vand.u32 %v2090, 2147483648
        %v2824 = vor.u32 1.1754944e-38, %v2823
        %v2825 = vsel %vm2822, %v2824, %v2820
        %v2826 = vmul.f32 1.0, %v2825
        %v2827 = vrcp.pop %v2091
        %v2828 = vmul.f32 %v2091, %v2827
        %v2829 = vsub.f32 1.0, %v2828
        %v2830 = vmul.f32 %v2827, %v2829
        %v2831 = vadd.f32 %v2827, %v2830
        %vm2832 = vweird.f32 %v2091
        %vm2833 = vweird.f32 %v2827
        %vm2834 = vmor %vm2832, %vm2833
        %v2835 = vsel %vm2834, %v2827, %v2831
        %v2836 = vand.u32 2147483647, %v2091
        %vm2837 = vcmp.eq.f32.partialorder %v2836, 8.507059e+37
        %v2838 = vand.u32 %v2091, 2147483648
        %v2839 = vor.u32 1.1754944e-38, %v2838
        %v2840 = vsel %vm2837, %v2839, %v2835
        %v2841 = vmul.f32 1.0, %v2840
        %v2842 = vrcp.pop %v2092
        %v2843 = vmul.f32 %v2092, %v2842
        %v2844 = vsub.f32 1.0, %v2843
        %v2845 = vmul.f32 %v2842, %v2844
        %v2846 = vadd.f32 %v2842, %v2845
        %vm2847 = vweird.f32 %v2092
        %vm2848 = vweird.f32 %v2842
        %vm2849 = vmor %vm2847, %vm2848
        %v2850 = vsel %vm2849, %v2842, %v2846
        %v2851 = vand.u32 2147483647, %v2092
        %vm2852 = vcmp.eq.f32.partialorder %v2851, 8.507059e+37
        %v2853 = vand.u32 %v2092, 2147483648
        %v2854 = vor.u32 1.1754944e-38, %v2853
        %v2855 = vsel %vm2852, %v2854, %v2850
        %v2856 = vmul.f32 1.0, %v2855
        %v2857 = vrcp.pop %v2093
        %v2858 = vmul.f32 %v2093, %v2857
        %v2859 = vsub.f32 1.0, %v2858
        %v2860 = vmul.f32 %v2857, %v2859
        %v2861 = vadd.f32 %v2857, %v2860
        %vm2862 = vweird.f32 %v2093
        %vm2863 = vweird.f32 %v2857
        %vm2864 = vmor %vm2862, %vm2863
        %v2865 = vsel %vm2864, %v2857, %v2861
        %v2866 = vand.u32 2147483647, %v2093
        %vm2867 = vcmp.eq.f32.partialorder %v2866, 8.507059e+37
        %v2868 = vand.u32 %v2093, 2147483648
        %v2869 = vor.u32 1.1754944e-38, %v2868
        %v2870 = vsel %vm2867, %v2869, %v2865
        %v2871 = vmul.f32 1.0, %v2870
        %v2872 = vrcp.pop %v2094
        %v2873 = vmul.f32 %v2094, %v2872
        %v2874 = vsub.f32 1.0, %v2873
        %v2875 = vmul.f32 %v2872, %v2874
        %v2876 = vadd.f32 %v2872, %v2875
        %vm2877 = vweird.f32 %v2094
        %vm2878 = vweird.f32 %v2872
        %vm2879 = vmor %vm2877, %vm2878
        %v2880 = vsel %vm2879, %v2872, %v2876
        %v2881 = vand.u32 2147483647, %v2094
        %vm2882 = vcmp.eq.f32.partialorder %v2881, 8.507059e+37
        %v2883 = vand.u32 %v2094, 2147483648
        %v2884 = vor.u32 1.1754944e-38, %v2883
        %v2885 = vsel %vm2882, %v2884, %v2880
        %v2886 = vmul.f32 1.0, %v2885
        %v2887 = vrcp.pop %v2095
        %v2888 = vmul.f32 %v2095, %v2887
        %v2889 = vsub.f32 1.0, %v2888
        %v2890 = vmul.f32 %v2887, %v2889
        %v2891 = vadd.f32 %v2887, %v2890
        %vm2892 = vweird.f32 %v2095
        %vm2893 = vweird.f32 %v2887
        %vm2894 = vmor %vm2892, %vm2893
        %v2895 = vsel %vm2894, %v2887, %v2891
        %v2896 = vand.u32 2147483647, %v2095
        %vm2897 = vcmp.eq.f32.partialorder %v2896, 8.507059e+37
        %v2898 = vand.u32 %v2095, 2147483648
        %v2899 = vor.u32 1.1754944e-38, %v2898
        %v2900 = vsel %vm2897, %v2899, %v2895
        %v2901 = vmul.f32 1.0, %v2900
        %v2902 = vrcp.pop %v2096
        %v2903 = vmul.f32 %v2096, %v2902
        %v2904 = vsub.f32 1.0, %v2903
        %v2905 = vmul.f32 %v2902, %v2904
        %v2906 = vadd.f32 %v2902, %v2905
        %vm2907 = vweird.f32 %v2096
        %vm2908 = vweird.f32 %v2902
        %vm2909 = vmor %vm2907, %vm2908
        %v2910 = vsel %vm2909, %v2902, %v2906
        %v2911 = vand.u32 2147483647, %v2096
        %vm2912 = vcmp.eq.f32.partialorder %v2911, 8.507059e+37
        %v2913 = vand.u32 %v2096, 2147483648
        %v2914 = vor.u32 1.1754944e-38, %v2913
        %v2915 = vsel %vm2912, %v2914, %v2910
        %v2916 = vmul.f32 1.0, %v2915
        %v2917 = vrcp.pop %v2097
        %v2918 = vmul.f32 %v2097, %v2917
        %v2919 = vsub.f32 1.0, %v2918
        %v2920 = vmul.f32 %v2917, %v2919
        %v2921 = vadd.f32 %v2917, %v2920
        %vm2922 = vweird.f32 %v2097
        %vm2923 = vweird.f32 %v2917
        %vm2924 = vmor %vm2922, %vm2923
        %v2925 = vsel %vm2924, %v2917, %v2921
        %v2926 = vand.u32 2147483647, %v2097
        %vm2927 = vcmp.eq.f32.partialorder %v2926, 8.507059e+37
        %v2928 = vand.u32 %v2097, 2147483648
        %v2929 = vor.u32 1.1754944e-38, %v2928
        %v2930 = vsel %vm2927, %v2929, %v2925
        %v2931 = vmul.f32 1.0, %v2930
        %v2932 = vrcp.pop %v2098
        %v2933 = vmul.f32 %v2098, %v2932
        %v2934 = vsub.f32 1.0, %v2933
        %v2935 = vmul.f32 %v2932, %v2934
        %v2936 = vadd.f32 %v2932, %v2935
        %vm2937 = vweird.f32 %v2098
        %vm2938 = vweird.f32 %v2932
        %vm2939 = vmor %vm2937, %vm2938
        %v2940 = vsel %vm2939, %v2932, %v2936
        %v2941 = vand.u32 2147483647, %v2098
        %vm2942 = vcmp.eq.f32.partialorder %v2941, 8.507059e+37
        %v2943 = vand.u32 %v2098, 2147483648
        %v2944 = vor.u32 1.1754944e-38, %v2943
        %v2945 = vsel %vm2942, %v2944, %v2940
        %v2946 = vmul.f32 1.0, %v2945
        %v2947 = vrcp.pop %v2099
        %v2948 = vmul.f32 %v2099, %v2947
        %v2949 = vsub.f32 1.0, %v2948
        %v2950 = vmul.f32 %v2947, %v2949
        %v2951 = vadd.f32 %v2947, %v2950
        %vm2952 = vweird.f32 %v2099
        %vm2953 = vweird.f32 %v2947
        %vm2954 = vmor %vm2952, %vm2953
        %v2955 = vsel %vm2954, %v2947, %v2951
        %v2956 = vand.u32 2147483647, %v2099
        %vm2957 = vcmp.eq.f32.partialorder %v2956, 8.507059e+37
        %v2958 = vand.u32 %v2099, 2147483648
        %v2959 = vor.u32 1.1754944e-38, %v2958
        %v2960 = vsel %vm2957, %v2959, %v2955
        %v2961 = vmul.f32 1.0, %v2960
        %v2962 = vrcp.pop %v2100
        %v2963 = vmul.f32 %v2100, %v2962
        %v2964 = vsub.f32 1.0, %v2963
        %v2965 = vmul.f32 %v2962, %v2964
        %v2966 = vadd.f32 %v2962, %v2965
        %vm2967 = vweird.f32 %v2100
        %vm2968 = vweird.f32 %v2962
        %vm2969 = vmor %vm2967, %vm2968
        %v2970 = vsel %vm2969, %v2962, %v2966
        %v2971 = vand.u32 2147483647, %v2100
        %vm2972 = vcmp.eq.f32.partialorder %v2971, 8.507059e+37
        %v2973 = vand.u32 %v2100, 2147483648
        %v2974 = vor.u32 1.1754944e-38, %v2973
        %v2975 = vsel %vm2972, %v2974, %v2970
        %v2976 = vmul.f32 1.0, %v2975
        %v2977 = vrcp.pop %v2101
        %v2978 = vmul.f32 %v2101, %v2977
        %v2979 = vsub.f32 1.0, %v2978
        %v2980 = vmul.f32 %v2977, %v2979
        %v2981 = vadd.f32 %v2977, %v2980
        %vm2982 = vweird.f32 %v2101
        %vm2983 = vweird.f32 %v2977
        %vm2984 = vmor %vm2982, %vm2983
        %v2985 = vsel %vm2984, %v2977, %v2981
        %v2986 = vand.u32 2147483647, %v2101
        %vm2987 = vcmp.eq.f32.partialorder %v2986, 8.507059e+37
        %v2988 = vand.u32 %v2101, 2147483648
        %v2989 = vor.u32 1.1754944e-38, %v2988
        %v2990 = vsel %vm2987, %v2989, %v2985
        %v2991 = vmul.f32 1.0, %v2990
        %v2992 = vrcp.pop %v2102
        %v2993 = vmul.f32 %v2102, %v2992
        %v2994 = vsub.f32 1.0, %v2993
        %v2995 = vmul.f32 %v2992, %v2994
        %v2996 = vadd.f32 %v2992, %v2995
        %vm2997 = vweird.f32 %v2102
        %vm2998 = vweird.f32 %v2992
        %vm2999 = vmor %vm2997, %vm2998
        %v3000 = vsel %vm2999, %v2992, %v2996
        %v3001 = vand.u32 2147483647, %v2102
        %vm3002 = vcmp.eq.f32.partialorder %v3001, 8.507059e+37
        %v3003 = vand.u32 %v2102, 2147483648
        %v3004 = vor.u32 1.1754944e-38, %v3003
        %v3005 = vsel %vm3002, %v3004, %v3000
        %v3006 = vmul.f32 1.0, %v3005
        %v3007 = vrcp.pop %v2103
        %v3008 = vmul.f32 %v2103, %v3007
        %v3009 = vsub.f32 1.0, %v3008
        %v3010 = vmul.f32 %v3007, %v3009
        %v3011 = vadd.f32 %v3007, %v3010
        %vm3012 = vweird.f32 %v2103
        %vm3013 = vweird.f32 %v3007
        %vm3014 = vmor %vm3012, %vm3013
        %v3015 = vsel %vm3014, %v3007, %v3011
        %v3016 = vand.u32 2147483647, %v2103
        %vm3017 = vcmp.eq.f32.partialorder %v3016, 8.507059e+37
        %v3018 = vand.u32 %v2103, 2147483648
        %v3019 = vor.u32 1.1754944e-38, %v3018
        %v3020 = vsel %vm3017, %v3019, %v3015
        %v3021 = vmul.f32 1.0, %v3020
        %v3022 = vrcp.pop %v2104
        %v3023 = vmul.f32 %v2104, %v3022
        %v3024 = vsub.f32 1.0, %v3023
        %v3025 = vmul.f32 %v3022, %v3024
        %v3026 = vadd.f32 %v3022, %v3025
        %vm3027 = vweird.f32 %v2104
        %vm3028 = vweird.f32 %v3022
        %vm3029 = vmor %vm3027, %vm3028
        %v3030 = vsel %vm3029, %v3022, %v3026
        %v3031 = vand.u32 2147483647, %v2104
        %vm3032 = vcmp.eq.f32.partialorder %v3031, 8.507059e+37
        %v3033 = vand.u32 %v2104, 2147483648
        %v3034 = vor.u32 1.1754944e-38, %v3033
        %v3035 = vsel %vm3032, %v3034, %v3030
        %v3036 = vmul.f32 1.0, %v3035
        %v3037 = vrcp.pop %v2105
        %v3038 = vmul.f32 %v2105, %v3037
        %v3039 = vsub.f32 1.0, %v3038
        %v3040 = vmul.f32 %v3037, %v3039
        %v3041 = vadd.f32 %v3037, %v3040
        %vm3042 = vweird.f32 %v2105
        %vm3043 = vweird.f32 %v3037
        %vm3044 = vmor %vm3042, %vm3043
        %v3045 = vsel %vm3044, %v3037, %v3041
        %v3046 = vand.u32 2147483647, %v2105
        %vm3047 = vcmp.eq.f32.partialorder %v3046, 8.507059e+37
        %v3048 = vand.u32 %v2105, 2147483648
        %v3049 = vor.u32 1.1754944e-38, %v3048
        %v3050 = vsel %vm3047, %v3049, %v3045
        %v3051 = vmul.f32 1.0, %v3050
        %v3052 = vrcp.pop %v2106
        %v3053 = vmul.f32 %v2106, %v3052
        %v3054 = vsub.f32 1.0, %v3053
        %v3055 = vmul.f32 %v3052, %v3054
        %v3056 = vadd.f32 %v3052, %v3055
        %vm3057 = vweird.f32 %v2106
        %vm3058 = vweird.f32 %v3052
        %vm3059 = vmor %vm3057, %vm3058
        %v3060 = vsel %vm3059, %v3052, %v3056
        %v3061 = vand.u32 2147483647, %v2106
        %vm3062 = vcmp.eq.f32.partialorder %v3061, 8.507059e+37
        %v3063 = vand.u32 %v2106, 2147483648
        %v3064 = vor.u32 1.1754944e-38, %v3063
        %v3065 = vsel %vm3062, %v3064, %v3060
        %v3066 = vmul.f32 1.0, %v3065
        %v3067 = vperm.slane %v239, 1
        %v3068 = vmul.f32 %v2121, %v3067
        %v3069 = vmul.f32 %v2136, %v3067
        %v3070 = vmul.f32 %v2151, %v3067
        %v3071 = vmul.f32 %v2166, %v3067
        %v3072 = vmul.f32 %v2181, %v3067
        %v3073 = vmul.f32 %v2196, %v3067
        %v3074 = vmul.f32 %v2211, %v3067
        %v3075 = vmul.f32 %v2226, %v3067
        %v3076 = vmul.f32 %v2241, %v3067
        %v3077 = vmul.f32 %v2256, %v3067
        %v3078 = vmul.f32 %v2271, %v3067
        %v3079 = vmul.f32 %v2286, %v3067
        %v3080 = vmul.f32 %v2301, %v3067
        %v3081 = vmul.f32 %v2316, %v3067
        %v3082 = vmul.f32 %v2331, %v3067
        %v3083 = vmul.f32 %v2346, %v3067
        %v3084 = vmul.f32 %v2361, %v3067
        %v3085 = vmul.f32 %v2376, %v3067
        %v3086 = vmul.f32 %v2391, %v3067
        %v3087 = vmul.f32 %v2406, %v3067
        %v3088 = vmul.f32 %v2421, %v3067
        %v3089 = vmul.f32 %v2436, %v3067
        %v3090 = vmul.f32 %v2451, %v3067
        %v3091 = vmul.f32 %v2466, %v3067
        %v3092 = vmul.f32 %v2481, %v3067
        %v3093 = vmul.f32 %v2496, %v3067
        %v3094 = vmul.f32 %v2511, %v3067
        %v3095 = vmul.f32 %v2526, %v3067
        %v3096 = vmul.f32 %v2541, %v3067
        %v3097 = vmul.f32 %v2556, %v3067
        %v3098 = vmul.f32 %v2571, %v3067
        %v3099 = vmul.f32 %v2586, %v3067
        %v3100 = vmul.f32 %v2601, %v3067
        %v3101 = vmul.f32 %v2616, %v3067
        %v3102 = vmul.f32 %v2631, %v3067
        %v3103 = vmul.f32 %v2646, %v3067
        %v3104 = vmul.f32 %v2661, %v3067
        %v3105 = vmul.f32 %v2676, %v3067
        %v3106 = vmul.f32 %v2691, %v3067
        %v3107 = vmul.f32 %v2706, %v3067
        %v3108 = vmul.f32 %v2721, %v3067
        %v3109 = vmul.f32 %v2736, %v3067
        %v3110 = vmul.f32 %v2751, %v3067
        %v3111 = vmul.f32 %v2766, %v3067
        %v3112 = vmul.f32 %v2781, %v3067
        %v3113 = vmul.f32 %v2796, %v3067
        %v3114 = vmul.f32 %v2811, %v3067
        %v3115 = vmul.f32 %v2826, %v3067
        %v3116 = vmul.f32 %v2841, %v3067
        %v3117 = vmul.f32 %v2856, %v3067
        %v3118 = vmul.f32 %v2871, %v3067
        %v3119 = vmul.f32 %v2886, %v3067
        %v3120 = vmul.f32 %v2901, %v3067
        %v3121 = vmul.f32 %v2916, %v3067
        %v3122 = vmul.f32 %v2931, %v3067
        %v3123 = vmul.f32 %v2946, %v3067
        %v3124 = vmul.f32 %v2961, %v3067
        %v3125 = vmul.f32 %v2976, %v3067
        %v3126 = vmul.f32 %v2991, %v3067
        %v3127 = vmul.f32 %v3006, %v3067
        %v3128 = vmul.f32 %v3021, %v3067
        %v3129 = vmul.f32 %v3036, %v3067
        %v3130 = vmul.f32 %v3051, %v3067
        %v3131 = vmul.f32 %v3066, %v3067
        %v3132 = vperm.slane %v239, 3
        %v3133 = vmul.f32 %v1396, %v3132
        %v3134 = vmul.f32 %v1397, %v3132
        %v3135 = vmul.f32 %v1398, %v3132
        %v3136 = vmul.f32 %v1399, %v3132
        %v3137 = vmul.f32 %v1400, %v3132
        %v3138 = vmul.f32 %v1401, %v3132
        %v3139 = vmul.f32 %v1402, %v3132
        %v3140 = vmul.f32 %v1403, %v3132
        %v3141 = vmul.f32 %v1404, %v3132
        %v3142 = vmul.f32 %v1405, %v3132
        %v3143 = vmul.f32 %v1406, %v3132
        %v3144 = vmul.f32 %v1407, %v3132
        %v3145 = vmul.f32 %v1408, %v3132
        %v3146 = vmul.f32 %v1409, %v3132
        %v3147 = vmul.f32 %v1410, %v3132
        %v3148 = vmul.f32 %v1411, %v3132
        %v3149 = vmul.f32 %v1412, %v3132
        %v3150 = vmul.f32 %v1413, %v3132
        %v3151 = vmul.f32 %v1414, %v3132
        %v3152 = vmul.f32 %v1415, %v3132
        %v3153 = vmul.f32 %v1416, %v3132
        %v3154 = vmul.f32 %v1417, %v3132
        %v3155 = vmul.f32 %v1418, %v3132
        %v3156 = vmul.f32 %v1419, %v3132
        %v3157 = vmul.f32 %v1420, %v3132
        %v3158 = vmul.f32 %v1421, %v3132
        %v3159 = vmul.f32 %v1422, %v3132
        %v3160 = vmul.f32 %v1423, %v3132
        %v3161 = vmul.f32 %v1424, %v3132
        %v3162 = vmul.f32 %v1425, %v3132
        %v3163 = vmul.f32 %v1426, %v3132
        %v3164 = vmul.f32 %v1427, %v3132
        %v3165 = vmul.f32 %v1428, %v3132
        %v3166 = vmul.f32 %v1429, %v3132
        %v3167 = vmul.f32 %v1430, %v3132
        %v3168 = vmul.f32 %v1431, %v3132
        %v3169 = vmul.f32 %v1432, %v3132
        %v3170 = vmul.f32 %v1433, %v3132
        %v3171 = vmul.f32 %v1434, %v3132
        %v3172 = vmul.f32 %v1435, %v3132
        %v3173 = vmul.f32 %v1436, %v3132
        %v3174 = vmul.f32 %v1437, %v3132
        %v3175 = vmul.f32 %v1438, %v3132
        %v3176 = vmul.f32 %v1439, %v3132
        %v3177 = vmul.f32 %v1440, %v3132
        %v3178 = vmul.f32 %v1441, %v3132
        %v3179 = vmul.f32 %v1442, %v3132
        %v3180 = vmul.f32 %v1443, %v3132
        %v3181 = vmul.f32 %v1444, %v3132
        %v3182 = vmul.f32 %v1445, %v3132
        %v3183 = vmul.f32 %v1446, %v3132
        %v3184 = vmul.f32 %v1447, %v3132
        %v3185 = vmul.f32 %v1448, %v3132
        %v3186 = vmul.f32 %v1449, %v3132
        %v3187 = vmul.f32 %v1450, %v3132
        %v3188 = vmul.f32 %v1451, %v3132
        %v3189 = vmul.f32 %v1452, %v3132
        %v3190 = vmul.f32 %v1453, %v3132
        %v3191 = vmul.f32 %v1454, %v3132
        %v3192 = vmul.f32 %v1455, %v3132
        %v3193 = vmul.f32 %v1456, %v3132
        %v3194 = vmul.f32 %v1457, %v3132
        %v3195 = vmul.f32 %v1458, %v3132
        %v3196 = vmul.f32 %v1459, %v3132
        %v3197 = vperm.slane %v239, 2
        %v3198 = vadd.f32 %v3197, %v3133
        %v3199 = vadd.f32 %v3197, %v3134
        %v3200 = vadd.f32 %v3197, %v3135
        %v3201 = vadd.f32 %v3197, %v3136
        %v3202 = vadd.f32 %v3197, %v3137
        %v3203 = vadd.f32 %v3197, %v3138
        %v3204 = vadd.f32 %v3197, %v3139
        %v3205 = vadd.f32 %v3197, %v3140
        %v3206 = vadd.f32 %v3197, %v3141
        %v3207 = vadd.f32 %v3197, %v3142
        %v3208 = vadd.f32 %v3197, %v3143
        %v3209 = vadd.f32 %v3197, %v3144
        %v3210 = vadd.f32 %v3197, %v3145
        %v3211 = vadd.f32 %v3197, %v3146
        %v3212 = vadd.f32 %v3197, %v3147
        %v3213 = vadd.f32 %v3197, %v3148
        %v3214 = vadd.f32 %v3197, %v3149
        %v3215 = vadd.f32 %v3197, %v3150
        %v3216 = vadd.f32 %v3197, %v3151
        %v3217 = vadd.f32 %v3197, %v3152
        %v3218 = vadd.f32 %v3197, %v3153
        %v3219 = vadd.f32 %v3197, %v3154
        %v3220 = vadd.f32 %v3197, %v3155
        %v3221 = vadd.f32 %v3197, %v3156
        %v3222 = vadd.f32 %v3197, %v3157
        %v3223 = vadd.f32 %v3197, %v3158
        %v3224 = vadd.f32 %v3197, %v3159
        %v3225 = vadd.f32 %v3197, %v3160
        %v3226 = vadd.f32 %v3197, %v3161
        %v3227 = vadd.f32 %v3197, %v3162
        %v3228 = vadd.f32 %v3197, %v3163
        %v3229 = vadd.f32 %v3197, %v3164
        %v3230 = vadd.f32 %v3197, %v3165
        %v3231 = vadd.f32 %v3197, %v3166
        %v3232 = vadd.f32 %v3197, %v3167
        %v3233 = vadd.f32 %v3197, %v3168
        %v3234 = vadd.f32 %v3197, %v3169
        %v3235 = vadd.f32 %v3197, %v3170
        %v3236 = vadd.f32 %v3197, %v3171
        %v3237 = vadd.f32 %v3197, %v3172
        %v3238 = vadd.f32 %v3197, %v3173
        %v3239 = vadd.f32 %v3197, %v3174
        %v3240 = vadd.f32 %v3197, %v3175
        %v3241 = vadd.f32 %v3197, %v3176
        %v3242 = vadd.f32 %v3197, %v3177
        %v3243 = vadd.f32 %v3197, %v3178
        %v3244 = vadd.f32 %v3197, %v3179
        %v3245 = vadd.f32 %v3197, %v3180
        %v3246 = vadd.f32 %v3197, %v3181
        %v3247 = vadd.f32 %v3197, %v3182
        %v3248 = vadd.f32 %v3197, %v3183
        %v3249 = vadd.f32 %v3197, %v3184
        %v3250 = vadd.f32 %v3197, %v3185
        %v3251 = vadd.f32 %v3197, %v3186
        %v3252 = vadd.f32 %v3197, %v3187
        %v3253 = vadd.f32 %v3197, %v3188
        %v3254 = vadd.f32 %v3197, %v3189
        %v3255 = vadd.f32 %v3197, %v3190
        %v3256 = vadd.f32 %v3197, %v3191
        %v3257 = vadd.f32 %v3197, %v3192
        %v3258 = vadd.f32 %v3197, %v3193
        %v3259 = vadd.f32 %v3197, %v3194
        %v3260 = vadd.f32 %v3197, %v3195
        %v3261 = vadd.f32 %v3197, %v3196
        %v3262 = vperm.slane %v239, 4
        %v3263 = vmul.f32 %v1787, %v3262
        %v3264 = vmul.f32 %v1788, %v3262
        %v3265 = vmul.f32 %v1789, %v3262
        %v3266 = vmul.f32 %v1790, %v3262
        %v3267 = vmul.f32 %v1791, %v3262
        %v3268 = vmul.f32 %v1792, %v3262
        %v3269 = vmul.f32 %v1793, %v3262
        %v3270 = vmul.f32 %v1794, %v3262
        %v3271 = vmul.f32 %v1795, %v3262
        %v3272 = vmul.f32 %v1796, %v3262
        %v3273 = vmul.f32 %v1797, %v3262
        %v3274 = vmul.f32 %v1798, %v3262
        %v3275 = vmul.f32 %v1799, %v3262
        %v3276 = vmul.f32 %v1800, %v3262
        %v3277 = vmul.f32 %v1801, %v3262
        %v3278 = vmul.f32 %v1802, %v3262
        %v3279 = vmul.f32 %v1803, %v3262
        %v3280 = vmul.f32 %v1804, %v3262
        %v3281 = vmul.f32 %v1805, %v3262
        %v3282 = vmul.f32 %v1806, %v3262
        %v3283 = vmul.f32 %v1807, %v3262
        %v3284 = vmul.f32 %v1808, %v3262
        %v3285 = vmul.f32 %v1809, %v3262
        %v3286 = vmul.f32 %v1810, %v3262
        %v3287 = vmul.f32 %v1811, %v3262
        %v3288 = vmul.f32 %v1812, %v3262
        %v3289 = vmul.f32 %v1813, %v3262
        %v3290 = vmul.f32 %v1814, %v3262
        %v3291 = vmul.f32 %v1815, %v3262
        %v3292 = vmul.f32 %v1816, %v3262
        %v3293 = vmul.f32 %v1817, %v3262
        %v3294 = vmul.f32 %v1818, %v3262
        %v3295 = vmul.f32 %v1819, %v3262
        %v3296 = vmul.f32 %v1820, %v3262
        %v3297 = vmul.f32 %v1821, %v3262
        %v3298 = vmul.f32 %v1822, %v3262
        %v3299 = vmul.f32 %v1823, %v3262
        %v3300 = vmul.f32 %v1824, %v3262
        %v3301 = vmul.f32 %v1825, %v3262
        %v3302 = vmul.f32 %v1826, %v3262
        %v3303 = vmul.f32 %v1827, %v3262
        %v3304 = vmul.f32 %v1828, %v3262
        %v3305 = vmul.f32 %v1829, %v3262
        %v3306 = vmul.f32 %v1830, %v3262
        %v3307 = vmul.f32 %v1831, %v3262
        %v3308 = vmul.f32 %v1832, %v3262
        %v3309 = vmul.f32 %v1833, %v3262
        %v3310 = vmul.f32 %v1834, %v3262
        %v3311 = vmul.f32 %v1835, %v3262
        %v3312 = vmul.f32 %v1836, %v3262
        %v3313 = vmul.f32 %v1837, %v3262
        %v3314 = vmul.f32 %v1838, %v3262
        %v3315 = vmul.f32 %v1839, %v3262
        %v3316 = vmul.f32 %v1840, %v3262
        %v3317 = vmul.f32 %v1841, %v3262
        %v3318 = vmul.f32 %v1842, %v3262
        %v3319 = vmul.f32 %v1843, %v3262
        %v3320 = vmul.f32 %v1844, %v3262
        %v3321 = vmul.f32 %v1845, %v3262
        %v3322 = vmul.f32 %v1846, %v3262
        %v3323 = vmul.f32 %v1847, %v3262
        %v3324 = vmul.f32 %v1848, %v3262
        %v3325 = vmul.f32 %v1849, %v3262
        %v3326 = vmul.f32 %v1850, %v3262
        %v3327 = vadd.f32 %v3198, %v3263
        %v3328 = vadd.f32 %v3199, %v3264
        %v3329 = vadd.f32 %v3200, %v3265
        %v3330 = vadd.f32 %v3201, %v3266
        %v3331 = vadd.f32 %v3202, %v3267
        %v3332 = vadd.f32 %v3203, %v3268
        %v3333 = vadd.f32 %v3204, %v3269
        %v3334 = vadd.f32 %v3205, %v3270
        %v3335 = vadd.f32 %v3206, %v3271
        %v3336 = vadd.f32 %v3207, %v3272
        %v3337 = vadd.f32 %v3208, %v3273
        %v3338 = vadd.f32 %v3209, %v3274
        %v3339 = vadd.f32 %v3210, %v3275
        %v3340 = vadd.f32 %v3211, %v3276
        %v3341 = vadd.f32 %v3212, %v3277
        %v3342 = vadd.f32 %v3213, %v3278
        %v3343 = vadd.f32 %v3214, %v3279
        %v3344 = vadd.f32 %v3215, %v3280
        %v3345 = vadd.f32 %v3216, %v3281
        %v3346 = vadd.f32 %v3217, %v3282
        %v3347 = vadd.f32 %v3218, %v3283
        %v3348 = vadd.f32 %v3219, %v3284
        %v3349 = vadd.f32 %v3220, %v3285
        %v3350 = vadd.f32 %v3221, %v3286
        %v3351 = vadd.f32 %v3222, %v3287
        %v3352 = vadd.f32 %v3223, %v3288
        %v3353 = vadd.f32 %v3224, %v3289
        %v3354 = vadd.f32 %v3225, %v3290
        %v3355 = vadd.f32 %v3226, %v3291
        %v3356 = vadd.f32 %v3227, %v3292
        %v3357 = vadd.f32 %v3228, %v3293
        %v3358 = vadd.f32 %v3229, %v3294
        %v3359 = vadd.f32 %v3230, %v3295
        %v3360 = vadd.f32 %v3231, %v3296
        %v3361 = vadd.f32 %v3232, %v3297
        %v3362 = vadd.f32 %v3233, %v3298
        %v3363 = vadd.f32 %v3234, %v3299
        %v3364 = vadd.f32 %v3235, %v3300
        %v3365 = vadd.f32 %v3236, %v3301
        %v3366 = vadd.f32 %v3237, %v3302
        %v3367 = vadd.f32 %v3238, %v3303
        %v3368 = vadd.f32 %v3239, %v3304
        %v3369 = vadd.f32 %v3240, %v3305
        %v3370 = vadd.f32 %v3241, %v3306
        %v3371 = vadd.f32 %v3242, %v3307
        %v3372 = vadd.f32 %v3243, %v3308
        %v3373 = vadd.f32 %v3244, %v3309
        %v3374 = vadd.f32 %v3245, %v3310
        %v3375 = vadd.f32 %v3246, %v3311
        %v3376 = vadd.f32 %v3247, %v3312
        %v3377 = vadd.f32 %v3248, %v3313
        %v3378 = vadd.f32 %v3249, %v3314
        %v3379 = vadd.f32 %v3250, %v3315
        %v3380 = vadd.f32 %v3251, %v3316
        %v3381 = vadd.f32 %v3252, %v3317
        %v3382 = vadd.f32 %v3253, %v3318
        %v3383 = vadd.f32 %v3254, %v3319
        %v3384 = vadd.f32 %v3255, %v3320
        %v3385 = vadd.f32 %v3256, %v3321
        %v3386 = vadd.f32 %v3257, %v3322
        %v3387 = vadd.f32 %v3258, %v3323
        %v3388 = vadd.f32 %v3259, %v3324
        %v3389 = vadd.f32 %v3260, %v3325
        %v3390 = vadd.f32 %v3261, %v3326
        %v3391 = vperm.slane %v239, 5
        %v3392 = vmul.f32 %v1659, %v3391
        %v3393 = vmul.f32 %v1660, %v3391
        %v3394 = vmul.f32 %v1661, %v3391
        %v3395 = vmul.f32 %v1662, %v3391
        %v3396 = vmul.f32 %v1663, %v3391
        %v3397 = vmul.f32 %v1664, %v3391
        %v3398 = vmul.f32 %v1665, %v3391
        %v3399 = vmul.f32 %v1666, %v3391
        %v3400 = vmul.f32 %v1667, %v3391
        %v3401 = vmul.f32 %v1668, %v3391
        %v3402 = vmul.f32 %v1669, %v3391
        %v3403 = vmul.f32 %v1670, %v3391
        %v3404 = vmul.f32 %v1671, %v3391
        %v3405 = vmul.f32 %v1672, %v3391
        %v3406 = vmul.f32 %v1673, %v3391
        %v3407 = vmul.f32 %v1674, %v3391
        %v3408 = vmul.f32 %v1675, %v3391
        %v3409 = vmul.f32 %v1676, %v3391
        %v3410 = vmul.f32 %v1677, %v3391
        %v3411 = vmul.f32 %v1678, %v3391
        %v3412 = vmul.f32 %v1679, %v3391
        %v3413 = vmul.f32 %v1680, %v3391
        %v3414 = vmul.f32 %v1681, %v3391
        %v3415 = vmul.f32 %v1682, %v3391
        %v3416 = vmul.f32 %v1683, %v3391
        %v3417 = vmul.f32 %v1684, %v3391
        %v3418 = vmul.f32 %v1685, %v3391
        %v3419 = vmul.f32 %v1686, %v3391
        %v3420 = vmul.f32 %v1687, %v3391
        %v3421 = vmul.f32 %v1688, %v3391
        %v3422 = vmul.f32 %v1689, %v3391
        %v3423 = vmul.f32 %v1690, %v3391
        %v3424 = vmul.f32 %v1691, %v3391
        %v3425 = vmul.f32 %v1692, %v3391
        %v3426 = vmul.f32 %v1693, %v3391
        %v3427 = vmul.f32 %v1694, %v3391
        %v3428 = vmul.f32 %v1695, %v3391
        %v3429 = vmul.f32 %v1696, %v3391
        %v3430 = vmul.f32 %v1697, %v3391
        %v3431 = vmul.f32 %v1698, %v3391
        %v3432 = vmul.f32 %v1699, %v3391
        %v3433 = vmul.f32 %v1700, %v3391
        %v3434 = vmul.f32 %v1701, %v3391
        %v3435 = vmul.f32 %v1702, %v3391
        %v3436 = vmul.f32 %v1703, %v3391
        %v3437 = vmul.f32 %v1704, %v3391
        %v3438 = vmul.f32 %v1705, %v3391
        %v3439 = vmul.f32 %v1706, %v3391
        %v3440 = vmul.f32 %v1707, %v3391
        %v3441 = vmul.f32 %v1708, %v3391
        %v3442 = vmul.f32 %v1709, %v3391
        %v3443 = vmul.f32 %v1710, %v3391
        %v3444 = vmul.f32 %v1711, %v3391
        %v3445 = vmul.f32 %v1712, %v3391
        %v3446 = vmul.f32 %v1713, %v3391
        %v3447 = vmul.f32 %v1714, %v3391
        %v3448 = vmul.f32 %v1715, %v3391
        %v3449 = vmul.f32 %v1716, %v3391
        %v3450 = vmul.f32 %v1717, %v3391
        %v3451 = vmul.f32 %v1718, %v3391
        %v3452 = vmul.f32 %v1719, %v3391
        %v3453 = vmul.f32 %v1720, %v3391
        %v3454 = vmul.f32 %v1721, %v3391
        %v3455 = vmul.f32 %v1722, %v3391
        %v3456 = vadd.f32 %v3327, %v3392
        %v3457 = vadd.f32 %v3328, %v3393
        %v3458 = vadd.f32 %v3329, %v3394
        %v3459 = vadd.f32 %v3330, %v3395
        %v3460 = vadd.f32 %v3331, %v3396
        %v3461 = vadd.f32 %v3332, %v3397
        %v3462 = vadd.f32 %v3333, %v3398
        %v3463 = vadd.f32 %v3334, %v3399
        %v3464 = vadd.f32 %v3335, %v3400
        %v3465 = vadd.f32 %v3336, %v3401
        %v3466 = vadd.f32 %v3337, %v3402
        %v3467 = vadd.f32 %v3338, %v3403
        %v3468 = vadd.f32 %v3339, %v3404
        %v3469 = vadd.f32 %v3340, %v3405
        %v3470 = vadd.f32 %v3341, %v3406
        %v3471 = vadd.f32 %v3342, %v3407
        %v3472 = vadd.f32 %v3343, %v3408
        %v3473 = vadd.f32 %v3344, %v3409
        %v3474 = vadd.f32 %v3345, %v3410
        %v3475 = vadd.f32 %v3346, %v3411
        %v3476 = vadd.f32 %v3347, %v3412
        %v3477 = vadd.f32 %v3348, %v3413
        %v3478 = vadd.f32 %v3349, %v3414
        %v3479 = vadd.f32 %v3350, %v3415
        %v3480 = vadd.f32 %v3351, %v3416
        %v3481 = vadd.f32 %v3352, %v3417
        %v3482 = vadd.f32 %v3353, %v3418
        %v3483 = vadd.f32 %v3354, %v3419
        %v3484 = vadd.f32 %v3355, %v3420
        %v3485 = vadd.f32 %v3356, %v3421
        %v3486 = vadd.f32 %v3357, %v3422
        %v3487 = vadd.f32 %v3358, %v3423
        %v3488 = vadd.f32 %v3359, %v3424
        %v3489 = vadd.f32 %v3360, %v3425
        %v3490 = vadd.f32 %v3361, %v3426
        %v3491 = vadd.f32 %v3362, %v3427
        %v3492 = vadd.f32 %v3363, %v3428
        %v3493 = vadd.f32 %v3364, %v3429
        %v3494 = vadd.f32 %v3365, %v3430
        %v3495 = vadd.f32 %v3366, %v3431
        %v3496 = vadd.f32 %v3367, %v3432
        %v3497 = vadd.f32 %v3368, %v3433
        %v3498 = vadd.f32 %v3369, %v3434
        %v3499 = vadd.f32 %v3370, %v3435
        %v3500 = vadd.f32 %v3371, %v3436
        %v3501 = vadd.f32 %v3372, %v3437
        %v3502 = vadd.f32 %v3373, %v3438
        %v3503 = vadd.f32 %v3374, %v3439
        %v3504 = vadd.f32 %v3375, %v3440
        %v3505 = vadd.f32 %v3376, %v3441
        %v3506 = vadd.f32 %v3377, %v3442
        %v3507 = vadd.f32 %v3378, %v3443
        %v3508 = vadd.f32 %v3379, %v3444
        %v3509 = vadd.f32 %v3380, %v3445
        %v3510 = vadd.f32 %v3381, %v3446
        %v3511 = vadd.f32 %v3382, %v3447
        %v3512 = vadd.f32 %v3383, %v3448
        %v3513 = vadd.f32 %v3384, %v3449
        %v3514 = vadd.f32 %v3385, %v3450
        %v3515 = vadd.f32 %v3386, %v3451
        %v3516 = vadd.f32 %v3387, %v3452
        %v3517 = vadd.f32 %v3388, %v3453
        %v3518 = vadd.f32 %v3389, %v3454
        %v3519 = vadd.f32 %v3390, %v3455
        %v3520 = vadd.f32 %v3068, %v3456
        %v3521 = vadd.f32 %v3069, %v3457
        %v3522 = vadd.f32 %v3070, %v3458
        %v3523 = vadd.f32 %v3071, %v3459
        %v3524 = vadd.f32 %v3072, %v3460
        %v3525 = vadd.f32 %v3073, %v3461
        %v3526 = vadd.f32 %v3074, %v3462
        %v3527 = vadd.f32 %v3075, %v3463
        %v3528 = vadd.f32 %v3076, %v3464
        %v3529 = vadd.f32 %v3077, %v3465
        %v3530 = vadd.f32 %v3078, %v3466
        %v3531 = vadd.f32 %v3079, %v3467
        %v3532 = vadd.f32 %v3080, %v3468
        %v3533 = vadd.f32 %v3081, %v3469
        %v3534 = vadd.f32 %v3082, %v3470
        %v3535 = vadd.f32 %v3083, %v3471
        %v3536 = vadd.f32 %v3084, %v3472
        %v3537 = vadd.f32 %v3085, %v3473
        %v3538 = vadd.f32 %v3086, %v3474
        %v3539 = vadd.f32 %v3087, %v3475
        %v3540 = vadd.f32 %v3088, %v3476
        %v3541 = vadd.f32 %v3089, %v3477
        %v3542 = vadd.f32 %v3090, %v3478
        %v3543 = vadd.f32 %v3091, %v3479
        %v3544 = vadd.f32 %v3092, %v3480
        %v3545 = vadd.f32 %v3093, %v3481
        %v3546 = vadd.f32 %v3094, %v3482
        %v3547 = vadd.f32 %v3095, %v3483
        %v3548 = vadd.f32 %v3096, %v3484
        %v3549 = vadd.f32 %v3097, %v3485
        %v3550 = vadd.f32 %v3098, %v3486
        %v3551 = vadd.f32 %v3099, %v3487
        %v3552 = vadd.f32 %v3100, %v3488
        %v3553 = vadd.f32 %v3101, %v3489
        %v3554 = vadd.f32 %v3102, %v3490
        %v3555 = vadd.f32 %v3103, %v3491
        %v3556 = vadd.f32 %v3104, %v3492
        %v3557 = vadd.f32 %v3105, %v3493
        %v3558 = vadd.f32 %v3106, %v3494
        %v3559 = vadd.f32 %v3107, %v3495
        %v3560 = vadd.f32 %v3108, %v3496
        %v3561 = vadd.f32 %v3109, %v3497
        %v3562 = vadd.f32 %v3110, %v3498
        %v3563 = vadd.f32 %v3111, %v3499
        %v3564 = vadd.f32 %v3112, %v3500
        %v3565 = vadd.f32 %v3113, %v3501
        %v3566 = vadd.f32 %v3114, %v3502
        %v3567 = vadd.f32 %v3115, %v3503
        %v3568 = vadd.f32 %v3116, %v3504
        %v3569 = vadd.f32 %v3117, %v3505
        %v3570 = vadd.f32 %v3118, %v3506
        %v3571 = vadd.f32 %v3119, %v3507
        %v3572 = vadd.f32 %v3120, %v3508
        %v3573 = vadd.f32 %v3121, %v3509
        %v3574 = vadd.f32 %v3122, %v3510
        %v3575 = vadd.f32 %v3123, %v3511
        %v3576 = vadd.f32 %v3124, %v3512
        %v3577 = vadd.f32 %v3125, %v3513
        %v3578 = vadd.f32 %v3126, %v3514
        %v3579 = vadd.f32 %v3127, %v3515
        %v3580 = vadd.f32 %v3128, %v3516
        %v3581 = vadd.f32 %v3129, %v3517
        %v3582 = vadd.f32 %v3130, %v3518
        %v3583 = vadd.f32 %v3131, %v3519
        %v3584 = vadd.f32 %v2121, %v2121
        %v3585 = vadd.f32 %v2136, %v2136
        %v3586 = vadd.f32 %v2151, %v2151
        %v3587 = vadd.f32 %v2166, %v2166
        %v3588 = vadd.f32 %v2181, %v2181
        %v3589 = vadd.f32 %v2196, %v2196
        %v3590 = vadd.f32 %v2211, %v2211
        %v3591 = vadd.f32 %v2226, %v2226
        %v3592 = vadd.f32 %v2241, %v2241
        %v3593 = vadd.f32 %v2256, %v2256
        %v3594 = vadd.f32 %v2271, %v2271
        %v3595 = vadd.f32 %v2286, %v2286
        %v3596 = vadd.f32 %v2301, %v2301
        %v3597 = vadd.f32 %v2316, %v2316
        %v3598 = vadd.f32 %v2331, %v2331
        %v3599 = vadd.f32 %v2346, %v2346
        %v3600 = vadd.f32 %v2361, %v2361
        %v3601 = vadd.f32 %v2376, %v2376
        %v3602 = vadd.f32 %v2391, %v2391
        %v3603 = vadd.f32 %v2406, %v2406
        %v3604 = vadd.f32 %v2421, %v2421
        %v3605 = vadd.f32 %v2436, %v2436
        %v3606 = vadd.f32 %v2451, %v2451
        %v3607 = vadd.f32 %v2466, %v2466
        %v3608 = vadd.f32 %v2481, %v2481
        %v3609 = vadd.f32 %v2496, %v2496
        %v3610 = vadd.f32 %v2511, %v2511
        %v3611 = vadd.f32 %v2526, %v2526
        %v3612 = vadd.f32 %v2541, %v2541
        %v3613 = vadd.f32 %v2556, %v2556
        %v3614 = vadd.f32 %v2571, %v2571
        %v3615 = vadd.f32 %v2586, %v2586
        %v3616 = vadd.f32 %v2601, %v2601
        %v3617 = vadd.f32 %v2616, %v2616
        %v3618 = vadd.f32 %v2631, %v2631
        %v3619 = vadd.f32 %v2646, %v2646
        %v3620 = vadd.f32 %v2661, %v2661
        %v3621 = vadd.f32 %v2676, %v2676
        %v3622 = vadd.f32 %v2691, %v2691
        %v3623 = vadd.f32 %v2706, %v2706
        %v3624 = vadd.f32 %v2721, %v2721
        %v3625 = vadd.f32 %v2736, %v2736
        %v3626 = vadd.f32 %v2751, %v2751
        %v3627 = vadd.f32 %v2766, %v2766
        %v3628 = vadd.f32 %v2781, %v2781
        %v3629 = vadd.f32 %v2796, %v2796
        %v3630 = vadd.f32 %v2811, %v2811
        %v3631 = vadd.f32 %v2826, %v2826
        %v3632 = vadd.f32 %v2841, %v2841
        %v3633 = vadd.f32 %v2856, %v2856
        %v3634 = vadd.f32 %v2871, %v2871
        %v3635 = vadd.f32 %v2886, %v2886
        %v3636 = vadd.f32 %v2901, %v2901
        %v3637 = vadd.f32 %v2916, %v2916
        %v3638 = vadd.f32 %v2931, %v2931
        %v3639 = vadd.f32 %v2946, %v2946
        %v3640 = vadd.f32 %v2961, %v2961
        %v3641 = vadd.f32 %v2976, %v2976
        %v3642 = vadd.f32 %v2991, %v2991
        %v3643 = vadd.f32 %v3006, %v3006
        %v3644 = vadd.f32 %v3021, %v3021
        %v3645 = vadd.f32 %v3036, %v3036
        %v3646 = vadd.f32 %v3051, %v3051
        %v3647 = vadd.f32 %v3066, %v3066
        %vm3648 = vcmp.gt.f32.partialorder %v239, 0.0
        %v3649 = vmul.f32 %v3584, %v3584
        %v3650 = vmul.f32 %v3585, %v3585
        %v3651 = vmul.f32 %v3586, %v3586
        %v3652 = vmul.f32 %v3587, %v3587
        %v3653 = vmul.f32 %v3588, %v3588
        %v3654 = vmul.f32 %v3589, %v3589
        %v3655 = vmul.f32 %v3590, %v3590
        %v3656 = vmul.f32 %v3591, %v3591
        %v3657 = vmul.f32 %v3592, %v3592
        %v3658 = vmul.f32 %v3593, %v3593
        %v3659 = vmul.f32 %v3594, %v3594
        %v3660 = vmul.f32 %v3595, %v3595
        %v3661 = vmul.f32 %v3596, %v3596
        %v3662 = vmul.f32 %v3597, %v3597
        %v3663 = vmul.f32 %v3598, %v3598
        %v3664 = vmul.f32 %v3599, %v3599
        %v3665 = vmul.f32 %v3600, %v3600
        %v3666 = vmul.f32 %v3601, %v3601
        %v3667 = vmul.f32 %v3602, %v3602
        %v3668 = vmul.f32 %v3603, %v3603
        %v3669 = vmul.f32 %v3604, %v3604
        %v3670 = vmul.f32 %v3605, %v3605
        %v3671 = vmul.f32 %v3606, %v3606
        %v3672 = vmul.f32 %v3607, %v3607
        %v3673 = vmul.f32 %v3608, %v3608
        %v3674 = vmul.f32 %v3609, %v3609
        %v3675 = vmul.f32 %v3610, %v3610
        %v3676 = vmul.f32 %v3611, %v3611
        %v3677 = vmul.f32 %v3612, %v3612
        %v3678 = vmul.f32 %v3613, %v3613
        %v3679 = vmul.f32 %v3614, %v3614
        %v3680 = vmul.f32 %v3615, %v3615
        %v3681 = vmul.f32 %v3616, %v3616
        %v3682 = vmul.f32 %v3617, %v3617
        %v3683 = vmul.f32 %v3618, %v3618
        %v3684 = vmul.f32 %v3619, %v3619
        %v3685 = vmul.f32 %v3620, %v3620
        %v3686 = vmul.f32 %v3621, %v3621
        %v3687 = vmul.f32 %v3622, %v3622
        %v3688 = vmul.f32 %v3623, %v3623
        %v3689 = vmul.f32 %v3624, %v3624
        %v3690 = vmul.f32 %v3625, %v3625
        %v3691 = vmul.f32 %v3626, %v3626
        %v3692 = vmul.f32 %v3627, %v3627
        %v3693 = vmul.f32 %v3628, %v3628
        %v3694 = vmul.f32 %v3629, %v3629
        %v3695 = vmul.f32 %v3630, %v3630
        %v3696 = vmul.f32 %v3631, %v3631
        %v3697 = vmul.f32 %v3632, %v3632
        %v3698 = vmul.f32 %v3633, %v3633
        %v3699 = vmul.f32 %v3634, %v3634
        %v3700 = vmul.f32 %v3635, %v3635
        %v3701 = vmul.f32 %v3636, %v3636
        %v3702 = vmul.f32 %v3637, %v3637
        %v3703 = vmul.f32 %v3638, %v3638
        %v3704 = vmul.f32 %v3639, %v3639
        %v3705 = vmul.f32 %v3640, %v3640
        %v3706 = vmul.f32 %v3641, %v3641
        %v3707 = vmul.f32 %v3642, %v3642
        %v3708 = vmul.f32 %v3643, %v3643
        %v3709 = vmul.f32 %v3644, %v3644
        %v3710 = vmul.f32 %v3645, %v3645
        %v3711 = vmul.f32 %v3646, %v3646
        %v3712 = vmul.f32 %v3647, %v3647
        %v3713 = vperm.slane %v239, 6
        %v3714 = vmul.f32 %v3649, %v3713
        %v3715 = vmul.f32 %v3650, %v3713
        %v3716 = vmul.f32 %v3651, %v3713
        %v3717 = vmul.f32 %v3652, %v3713
        %v3718 = vmul.f32 %v3653, %v3713
        %v3719 = vmul.f32 %v3654, %v3713
        %v3720 = vmul.f32 %v3655, %v3713
        %v3721 = vmul.f32 %v3656, %v3713
        %v3722 = vmul.f32 %v3657, %v3713
        %v3723 = vmul.f32 %v3658, %v3713
        %v3724 = vmul.f32 %v3659, %v3713
        %v3725 = vmul.f32 %v3660, %v3713
        %v3726 = vmul.f32 %v3661, %v3713
        %v3727 = vmul.f32 %v3662, %v3713
        %v3728 = vmul.f32 %v3663, %v3713
        %v3729 = vmul.f32 %v3664, %v3713
        %v3730 = vmul.f32 %v3665, %v3713
        %v3731 = vmul.f32 %v3666, %v3713
        %v3732 = vmul.f32 %v3667, %v3713
        %v3733 = vmul.f32 %v3668, %v3713
        %v3734 = vmul.f32 %v3669, %v3713
        %v3735 = vmul.f32 %v3670, %v3713
        %v3736 = vmul.f32 %v3671, %v3713
        %v3737 = vmul.f32 %v3672, %v3713
        %v3738 = vmul.f32 %v3673, %v3713
        %v3739 = vmul.f32 %v3674, %v3713
        %v3740 = vmul.f32 %v3675, %v3713
        %v3741 = vmul.f32 %v3676, %v3713
        %v3742 = vmul.f32 %v3677, %v3713
        %v3743 = vmul.f32 %v3678, %v3713
        %v3744 = vmul.f32 %v3679, %v3713
        %v3745 = vmul.f32 %v3680, %v3713
        %v3746 = vmul.f32 %v3681, %v3713
        %v3747 = vmul.f32 %v3682, %v3713
        %v3748 = vmul.f32 %v3683, %v3713
        %v3749 = vmul.f32 %v3684, %v3713
        %v3750 = vmul.f32 %v3685, %v3713
        %v3751 = vmul.f32 %v3686, %v3713
        %v3752 = vmul.f32 %v3687, %v3713
        %v3753 = vmul.f32 %v3688, %v3713
        %v3754 = vmul.f32 %v3689, %v3713
        %v3755 = vmul.f32 %v3690, %v3713
        %v3756 = vmul.f32 %v3691, %v3713
        %v3757 = vmul.f32 %v3692, %v3713
        %v3758 = vmul.f32 %v3693, %v3713
        %v3759 = vmul.f32 %v3694, %v3713
        %v3760 = vmul.f32 %v3695, %v3713
        %v3761 = vmul.f32 %v3696, %v3713
        %v3762 = vmul.f32 %v3697, %v3713
        %v3763 = vmul.f32 %v3698, %v3713
        %v3764 = vmul.f32 %v3699, %v3713
        %v3765 = vmul.f32 %v3700, %v3713
        %v3766 = vmul.f32 %v3701, %v3713
        %v3767 = vmul.f32 %v3702, %v3713
        %v3768 = vmul.f32 %v3703, %v3713
        %v3769 = vmul.f32 %v3704, %v3713
        %v3770 = vmul.f32 %v3705, %v3713
        %v3771 = vmul.f32 %v3706, %v3713
        %v3772 = vmul.f32 %v3707, %v3713
        %v3773 = vmul.f32 %v3708, %v3713
        %v3774 = vmul.f32 %v3709, %v3713
        %v3775 = vmul.f32 %v3710, %v3713
        %v3776 = vmul.f32 %v3711, %v3713
        %v3777 = vmul.f32 %v3712, %v3713
        %v3778 = vsel %vm3648, 1, 0
        %v3779 = vperm.slane %v3778, 6
        %vm3780 = vcmp.eq.s32.totalorder %v3779, 1
        %v3781 = vsel %vm3780, %v3714, %v3520
        %v3782 = vsel %vm3780, %v3715, %v3521
        %v3783 = vsel %vm3780, %v3716, %v3522
        %v3784 = vsel %vm3780, %v3717, %v3523
        %v3785 = vsel %vm3780, %v3718, %v3524
        %v3786 = vsel %vm3780, %v3719, %v3525
        %v3787 = vsel %vm3780, %v3720, %v3526
        %v3788 = vsel %vm3780, %v3721, %v3527
        %v3789 = vsel %vm3780, %v3722, %v3528
        %v3790 = vsel %vm3780, %v3723, %v3529
        %v3791 = vsel %vm3780, %v3724, %v3530
        %v3792 = vsel %vm3780, %v3725, %v3531
        %v3793 = vsel %vm3780, %v3726, %v3532
        %v3794 = vsel %vm3780, %v3727, %v3533
        %v3795 = vsel %vm3780, %v3728, %v3534
        %v3796 = vsel %vm3780, %v3729, %v3535
        %v3797 = vsel %vm3780, %v3730, %v3536
        %v3798 = vsel %vm3780, %v3731, %v3537
        %v3799 = vsel %vm3780, %v3732, %v3538
        %v3800 = vsel %vm3780, %v3733, %v3539
        %v3801 = vsel %vm3780, %v3734, %v3540
        %v3802 = vsel %vm3780, %v3735, %v3541
        %v3803 = vsel %vm3780, %v3736, %v3542
        %v3804 = vsel %vm3780, %v3737, %v3543
        %v3805 = vsel %vm3780, %v3738, %v3544
        %v3806 = vsel %vm3780, %v3739, %v3545
        %v3807 = vsel %vm3780, %v3740, %v3546
        %v3808 = vsel %vm3780, %v3741, %v3547
        %v3809 = vsel %vm3780, %v3742, %v3548
        %v3810 = vsel %vm3780, %v3743, %v3549
        %v3811 = vsel %vm3780, %v3744, %v3550
        %v3812 = vsel %vm3780, %v3745, %v3551
        %v3813 = vsel %vm3780, %v3746, %v3552
        %v3814 = vsel %vm3780, %v3747, %v3553
        %v3815 = vsel %vm3780, %v3748, %v3554
        %v3816 = vsel %vm3780, %v3749, %v3555
        %v3817 = vsel %vm3780, %v3750, %v3556
        %v3818 = vsel %vm3780, %v3751, %v3557
        %v3819 = vsel %vm3780, %v3752, %v3558
        %v3820 = vsel %vm3780, %v3753, %v3559
        %v3821 = vsel %vm3780, %v3754, %v3560
        %v3822 = vsel %vm3780, %v3755, %v3561
        %v3823 = vsel %vm3780, %v3756, %v3562
        %v3824 = vsel %vm3780, %v3757, %v3563
        %v3825 = vsel %vm3780, %v3758, %v3564
        %v3826 = vsel %vm3780, %v3759, %v3565
        %v3827 = vsel %vm3780, %v3760, %v3566
        %v3828 = vsel %vm3780, %v3761, %v3567
        %v3829 = vsel %vm3780, %v3762, %v3568
        %v3830 = vsel %vm3780, %v3763, %v3569
        %v3831 = vsel %vm3780, %v3764, %v3570
        %v3832 = vsel %vm3780, %v3765, %v3571
        %v3833 = vsel %vm3780, %v3766, %v3572
        %v3834 = vsel %vm3780, %v3767, %v3573
        %v3835 = vsel %vm3780, %v3768, %v3574
        %v3836 = vsel %vm3780, %v3769, %v3575
        %v3837 = vsel %vm3780, %v3770, %v3576
        %v3838 = vsel %vm3780, %v3771, %v3577
        %v3839 = vsel %vm3780, %v3772, %v3578
        %v3840 = vsel %vm3780, %v3773, %v3579
        %v3841 = vsel %vm3780, %v3774, %v3580
        %v3842 = vsel %vm3780, %v3775, %v3581
        %v3843 = vsel %vm3780, %v3776, %v3582
        %v3844 = vsel %vm3780, %v3777, %v3583
        %v3845 = vperm.slane %v3778, 7
        %vm3846 = vcmp.eq.s32.totalorder %v3845, 1
        %v3847 = vsel %vm3846, %v580, -inf
        %v3848 = vsel %vm3846, %v582, -inf
        %v3849 = vsel %vm3846, %v585, -inf
        %v3850 = vsel %vm3846, %v587, -inf
        %v3851 = vsel %vm3846, %v590, -inf
        %v3852 = vsel %vm3846, %v592, -inf
        %v3853 = vsel %vm3846, %v595, -inf
        %v3854 = vsel %vm3846, %v597, -inf
        %v3855 = vsel %vm3846, %v600, -inf
        %v3856 = vsel %vm3846, %v602, -inf
        %v3857 = vsel %vm3846, %v605, -inf
        %v3858 = vsel %vm3846, %v607, -inf
        %v3859 = vsel %vm3846, %v610, -inf
        %v3860 = vsel %vm3846, %v612, -inf
        %v3861 = vsel %vm3846, %v615, -inf
        %v3862 = vsel %vm3846, %v617, -inf
        %v3863 = vsel %vm3846, %v620, -inf
        %v3864 = vsel %vm3846, %v622, -inf
        %v3865 = vsel %vm3846, %v625, -inf
        %v3866 = vsel %vm3846, %v627, -inf
        %v3867 = vsel %vm3846, %v630, -inf
        %v3868 = vsel %vm3846, %v632, -inf
        %v3869 = vsel %vm3846, %v635, -inf
        %v3870 = vsel %vm3846, %v637, -inf
        %v3871 = vsel %vm3846, %v640, -inf
        %v3872 = vsel %vm3846, %v642, -inf
        %v3873 = vsel %vm3846, %v645, -inf
        %v3874 = vsel %vm3846, %v647, -inf
        %v3875 = vsel %vm3846, %v650, -inf
        %v3876 = vsel %vm3846, %v652, -inf
        %v3877 = vsel %vm3846, %v655, -inf
        %v3878 = vsel %vm3846, %v657, -inf
        %v3879 = vsel %vm3846, %v660, -inf
        %v3880 = vsel %vm3846, %v662, -inf
        %v3881 = vsel %vm3846, %v665, -inf
        %v3882 = vsel %vm3846, %v667, -inf
        %v3883 = vsel %vm3846, %v670, -inf
        %v3884 = vsel %vm3846, %v672, -inf
        %v3885 = vsel %vm3846, %v675, -inf
        %v3886 = vsel %vm3846, %v677, -inf
        %v3887 = vsel %vm3846, %v680, -inf
        %v3888 = vsel %vm3846, %v682, -inf
        %v3889 = vsel %vm3846, %v685, -inf
        %v3890 = vsel %vm3846, %v687, -inf
        %v3891 = vsel %vm3846, %v690, -inf
        %v3892 = vsel %vm3846, %v692, -inf
        %v3893 = vsel %vm3846, %v695, -inf
        %v3894 = vsel %vm3846, %v697, -inf
        %v3895 = vsel %vm3846, %v700, -inf
        %v3896 = vsel %vm3846, %v702, -inf
        %v3897 = vsel %vm3846, %v705, -inf
        %v3898 = vsel %vm3846, %v707, -inf
        %v3899 = vsel %vm3846, %v710, -inf
        %v3900 = vsel %vm3846, %v712, -inf
        %v3901 = vsel %vm3846, %v715, -inf
        %v3902 = vsel %vm3846, %v717, -inf
        %v3903 = vsel %vm3846, %v720, -inf
        %v3904 = vsel %vm3846, %v722, -inf
        %v3905 = vsel %vm3846, %v725, -inf
        %v3906 = vsel %vm3846, %v727, -inf
        %v3907 = vsel %vm3846, %v730, -inf
        %v3908 = vsel %vm3846, %v732, -inf
        %v3909 = vsel %vm3846, %v735, -inf
        %v3910 = vsel %vm3846, %v737, -inf
        %3911 = vmax.xlane.f32.xlu0 %v3847
        %v3912 = vpop.xlane.xlu0 %3911
        %3913 = vmax.xlane.f32.xlu0 %v3848
        %v3914 = vpop.xlane.xlu0 %3913
        %3915 = vmax.xlane.f32.xlu0 %v3849
        %v3916 = vpop.xlane.xlu0 %3915
        %3917 = vmax.xlane.f32.xlu0 %v3850
        %v3918 = vpop.xlane.xlu0 %3917
        %3919 = vmax.xlane.f32.xlu0 %v3851
        %v3920 = vpop.xlane.xlu0 %3919
        %3921 = vmax.xlane.f32.xlu0 %v3852
        %v3922 = vpop.xlane.xlu0 %3921
        %3923 = vmax.xlane.f32.xlu0 %v3853
        %v3924 = vpop.xlane.xlu0 %3923
        %3925 = vmax.xlane.f32.xlu0 %v3854
        %v3926 = vpop.xlane.xlu0 %3925
        %3927 = vmax.xlane.f32.xlu0 %v3855
        %v3928 = vpop.xlane.xlu0 %3927
        %3929 = vmax.xlane.f32.xlu0 %v3856
        %v3930 = vpop.xlane.xlu0 %3929
        %3931 = vmax.xlane.f32.xlu0 %v3857
        %v3932 = vpop.xlane.xlu0 %3931
        %3933 = vmax.xlane.f32.xlu0 %v3858
        %v3934 = vpop.xlane.xlu0 %3933
        %3935 = vmax.xlane.f32.xlu0 %v3859
        %v3936 = vpop.xlane.xlu0 %3935
        %3937 = vmax.xlane.f32.xlu0 %v3860
        %v3938 = vpop.xlane.xlu0 %3937
        %3939 = vmax.xlane.f32.xlu0 %v3861
        %v3940 = vpop.xlane.xlu0 %3939
        %3941 = vmax.xlane.f32.xlu0 %v3862
        %v3942 = vpop.xlane.xlu0 %3941
        %3943 = vmax.xlane.f32.xlu0 %v3863
        %v3944 = vpop.xlane.xlu0 %3943
        %3945 = vmax.xlane.f32.xlu0 %v3864
        %v3946 = vpop.xlane.xlu0 %3945
        %3947 = vmax.xlane.f32.xlu0 %v3865
        %v3948 = vpop.xlane.xlu0 %3947
        %3949 = vmax.xlane.f32.xlu0 %v3866
        %v3950 = vpop.xlane.xlu0 %3949
        %3951 = vmax.xlane.f32.xlu0 %v3867
        %v3952 = vpop.xlane.xlu0 %3951
        %3953 = vmax.xlane.f32.xlu0 %v3868
        %v3954 = vpop.xlane.xlu0 %3953
        %3955 = vmax.xlane.f32.xlu0 %v3869
        %v3956 = vpop.xlane.xlu0 %3955
        %3957 = vmax.xlane.f32.xlu0 %v3870
        %v3958 = vpop.xlane.xlu0 %3957
        %3959 = vmax.xlane.f32.xlu0 %v3871
        %v3960 = vpop.xlane.xlu0 %3959
        %3961 = vmax.xlane.f32.xlu0 %v3872
        %v3962 = vpop.xlane.xlu0 %3961
        %3963 = vmax.xlane.f32.xlu0 %v3873
        %v3964 = vpop.xlane.xlu0 %3963
        %3965 = vmax.xlane.f32.xlu0 %v3874
        %v3966 = vpop.xlane.xlu0 %3965
        %3967 = vmax.xlane.f32.xlu0 %v3875
        %v3968 = vpop.xlane.xlu0 %3967
        %3969 = vmax.xlane.f32.xlu0 %v3876
        %v3970 = vpop.xlane.xlu0 %3969
        %3971 = vmax.xlane.f32.xlu0 %v3877
        %v3972 = vpop.xlane.xlu0 %3971
        %3973 = vmax.xlane.f32.xlu0 %v3878
        %v3974 = vpop.xlane.xlu0 %3973
        %3975 = vmax.xlane.f32.xlu0 %v3879
        %v3976 = vpop.xlane.xlu0 %3975
        %3977 = vmax.xlane.f32.xlu0 %v3880
        %v3978 = vpop.xlane.xlu0 %3977
        %3979 = vmax.xlane.f32.xlu0 %v3881
        %v3980 = vpop.xlane.xlu0 %3979
        %3981 = vmax.xlane.f32.xlu0 %v3882
        %v3982 = vpop.xlane.xlu0 %3981
        %3983 = vmax.xlane.f32.xlu0 %v3883
        %v3984 = vpop.xlane.xlu0 %3983
        %3985 = vmax.xlane.f32.xlu0 %v3884
        %v3986 = vpop.xlane.xlu0 %3985
        %3987 = vmax.xlane.f32.xlu0 %v3885
        %v3988 = vpop.xlane.xlu0 %3987
        %3989 = vmax.xlane.f32.xlu0 %v3886
        %v3990 = vpop.xlane.xlu0 %3989
        %3991 = vmax.xlane.f32.xlu0 %v3887
        %v3992 = vpop.xlane.xlu0 %3991
        %3993 = vmax.xlane.f32.xlu0 %v3888
        %v3994 = vpop.xlane.xlu0 %3993
        %3995 = vmax.xlane.f32.xlu0 %v3889
        %v3996 = vpop.xlane.xlu0 %3995
        %3997 = vmax.xlane.f32.xlu0 %v3890
        %v3998 = vpop.xlane.xlu0 %3997
        %3999 = vmax.xlane.f32.xlu0 %v3891
        %v4000 = vpop.xlane.xlu0 %3999
        %4001 = vmax.xlane.f32.xlu0 %v3892
        %v4002 = vpop.xlane.xlu0 %4001
        %4003 = vmax.xlane.f32.xlu0 %v3893
        %v4004 = vpop.xlane.xlu0 %4003
        %4005 = vmax.xlane.f32.xlu0 %v3894
        %v4006 = vpop.xlane.xlu0 %4005
        %4007 = vmax.xlane.f32.xlu0 %v3895
        %v4008 = vpop.xlane.xlu0 %4007
        %4009 = vmax.xlane.f32.xlu0 %v3896
        %v4010 = vpop.xlane.xlu0 %4009
        %4011 = vmax.xlane.f32.xlu0 %v3897
        %v4012 = vpop.xlane.xlu0 %4011
        %4013 = vmax.xlane.f32.xlu0 %v3898
        %v4014 = vpop.xlane.xlu0 %4013
        %4015 = vmax.xlane.f32.xlu0 %v3899
        %v4016 = vpop.xlane.xlu0 %4015
        %4017 = vmax.xlane.f32.xlu0 %v3900
        %v4018 = vpop.xlane.xlu0 %4017
        %4019 = vmax.xlane.f32.xlu0 %v3901
        %v4020 = vpop.xlane.xlu0 %4019
        %4021 = vmax.xlane.f32.xlu0 %v3902
        %v4022 = vpop.xlane.xlu0 %4021
        %4023 = vmax.xlane.f32.xlu0 %v3903
        %v4024 = vpop.xlane.xlu0 %4023
        %4025 = vmax.xlane.f32.xlu0 %v3904
        %v4026 = vpop.xlane.xlu0 %4025
        %4027 = vmax.xlane.f32.xlu0 %v3905
        %v4028 = vpop.xlane.xlu0 %4027
        %4029 = vmax.xlane.f32.xlu0 %v3906
        %v4030 = vpop.xlane.xlu0 %4029
        %4031 = vmax.xlane.f32.xlu0 %v3907
        %v4032 = vpop.xlane.xlu0 %4031
        %4033 = vmax.xlane.f32.xlu0 %v3908
        %v4034 = vpop.xlane.xlu0 %4033
        %4035 = vmax.xlane.f32.xlu0 %v3909
        %v4036 = vpop.xlane.xlu0 %4035
        %4037 = vmax.xlane.f32.xlu0 %v3910
        %v4038 = vpop.xlane.xlu0 %4037
        %v4039 = vsub.f32 %v580, %v3912
        %v4040 = vsub.f32 %v582, %v3914
        %v4041 = vsub.f32 %v585, %v3916
        %v4042 = vsub.f32 %v587, %v3918
        %v4043 = vsub.f32 %v590, %v3920
        %v4044 = vsub.f32 %v592, %v3922
        %v4045 = vsub.f32 %v595, %v3924
        %v4046 = vsub.f32 %v597, %v3926
        %v4047 = vsub.f32 %v600, %v3928
        %v4048 = vsub.f32 %v602, %v3930
        %v4049 = vsub.f32 %v605, %v3932
        %v4050 = vsub.f32 %v607, %v3934
        %v4051 = vsub.f32 %v610, %v3936
        %v4052 = vsub.f32 %v612, %v3938
        %v4053 = vsub.f32 %v615, %v3940
        %v4054 = vsub.f32 %v617, %v3942
        %v4055 = vsub.f32 %v620, %v3944
        %v4056 = vsub.f32 %v622, %v3946
        %v4057 = vsub.f32 %v625, %v3948
        %v4058 = vsub.f32 %v627, %v3950
        %v4059 = vsub.f32 %v630, %v3952
        %v4060 = vsub.f32 %v632, %v3954
        %v4061 = vsub.f32 %v635, %v3956
        %v4062 = vsub.f32 %v637, %v3958
        %v4063 = vsub.f32 %v640, %v3960
        %v4064 = vsub.f32 %v642, %v3962
        %v4065 = vsub.f32 %v645, %v3964
        %v4066 = vsub.f32 %v647, %v3966
        %v4067 = vsub.f32 %v650, %v3968
        %v4068 = vsub.f32 %v652, %v3970
        %v4069 = vsub.f32 %v655, %v3972
        %v4070 = vsub.f32 %v657, %v3974
        %v4071 = vsub.f32 %v660, %v3976
        %v4072 = vsub.f32 %v662, %v3978
        %v4073 = vsub.f32 %v665, %v3980
        %v4074 = vsub.f32 %v667, %v3982
        %v4075 = vsub.f32 %v670, %v3984
        %v4076 = vsub.f32 %v672, %v3986
        %v4077 = vsub.f32 %v675, %v3988
        %v4078 = vsub.f32 %v677, %v3990
        %v4079 = vsub.f32 %v680, %v3992
        %v4080 = vsub.f32 %v682, %v3994
        %v4081 = vsub.f32 %v685, %v3996
        %v4082 = vsub.f32 %v687, %v3998
        %v4083 = vsub.f32 %v690, %v4000
        %v4084 = vsub.f32 %v692, %v4002
        %v4085 = vsub.f32 %v695, %v4004
        %v4086 = vsub.f32 %v697, %v4006
        %v4087 = vsub.f32 %v700, %v4008
        %v4088 = vsub.f32 %v702, %v4010
        %v4089 = vsub.f32 %v705, %v4012
        %v4090 = vsub.f32 %v707, %v4014
        %v4091 = vsub.f32 %v710, %v4016
        %v4092 = vsub.f32 %v712, %v4018
        %v4093 = vsub.f32 %v715, %v4020
        %v4094 = vsub.f32 %v717, %v4022
        %v4095 = vsub.f32 %v720, %v4024
        %v4096 = vsub.f32 %v722, %v4026
        %v4097 = vsub.f32 %v725, %v4028
        %v4098 = vsub.f32 %v727, %v4030
        %v4099 = vsub.f32 %v730, %v4032
        %v4100 = vsub.f32 %v732, %v4034
        %v4101 = vsub.f32 %v735, %v4036
        %v4102 = vsub.f32 %v737, %v4038
        %v4103 = vsel %vm3846, %v4039, -inf
        %v4104 = vsel %vm3846, %v4040, -inf
        %v4105 = vsel %vm3846, %v4041, -inf
        %v4106 = vsel %vm3846, %v4042, -inf
        %v4107 = vsel %vm3846, %v4043, -inf
        %v4108 = vsel %vm3846, %v4044, -inf
        %v4109 = vsel %vm3846, %v4045, -inf
        %v4110 = vsel %vm3846, %v4046, -inf
        %v4111 = vsel %vm3846, %v4047, -inf
        %v4112 = vsel %vm3846, %v4048, -inf
        %v4113 = vsel %vm3846, %v4049, -inf
        %v4114 = vsel %vm3846, %v4050, -inf
        %v4115 = vsel %vm3846, %v4051, -inf
        %v4116 = vsel %vm3846, %v4052, -inf
        %v4117 = vsel %vm3846, %v4053, -inf
        %v4118 = vsel %vm3846, %v4054, -inf
        %v4119 = vsel %vm3846, %v4055, -inf
        %v4120 = vsel %vm3846, %v4056, -inf
        %v4121 = vsel %vm3846, %v4057, -inf
        %v4122 = vsel %vm3846, %v4058, -inf
        %v4123 = vsel %vm3846, %v4059, -inf
        %v4124 = vsel %vm3846, %v4060, -inf
        %v4125 = vsel %vm3846, %v4061, -inf
        %v4126 = vsel %vm3846, %v4062, -inf
        %v4127 = vsel %vm3846, %v4063, -inf
        %v4128 = vsel %vm3846, %v4064, -inf
        %v4129 = vsel %vm3846, %v4065, -inf
        %v4130 = vsel %vm3846, %v4066, -inf
        %v4131 = vsel %vm3846, %v4067, -inf
        %v4132 = vsel %vm3846, %v4068, -inf
        %v4133 = vsel %vm3846, %v4069, -inf
        %v4134 = vsel %vm3846, %v4070, -inf
        %v4135 = vsel %vm3846, %v4071, -inf
        %v4136 = vsel %vm3846, %v4072, -inf
        %v4137 = vsel %vm3846, %v4073, -inf
        %v4138 = vsel %vm3846, %v4074, -inf
        %v4139 = vsel %vm3846, %v4075, -inf
        %v4140 = vsel %vm3846, %v4076, -inf
        %v4141 = vsel %vm3846, %v4077, -inf
        %v4142 = vsel %vm3846, %v4078, -inf
        %v4143 = vsel %vm3846, %v4079, -inf
        %v4144 = vsel %vm3846, %v4080, -inf
        %v4145 = vsel %vm3846, %v4081, -inf
        %v4146 = vsel %vm3846, %v4082, -inf
        %v4147 = vsel %vm3846, %v4083, -inf
        %v4148 = vsel %vm3846, %v4084, -inf
        %v4149 = vsel %vm3846, %v4085, -inf
        %v4150 = vsel %vm3846, %v4086, -inf
        %v4151 = vsel %vm3846, %v4087, -inf
        %v4152 = vsel %vm3846, %v4088, -inf
        %v4153 = vsel %vm3846, %v4089, -inf
        %v4154 = vsel %vm3846, %v4090, -inf
        %v4155 = vsel %vm3846, %v4091, -inf
        %v4156 = vsel %vm3846, %v4092, -inf
        %v4157 = vsel %vm3846, %v4093, -inf
        %v4158 = vsel %vm3846, %v4094, -inf
        %v4159 = vsel %vm3846, %v4095, -inf
        %v4160 = vsel %vm3846, %v4096, -inf
        %v4161 = vsel %vm3846, %v4097, -inf
        %v4162 = vsel %vm3846, %v4098, -inf
        %v4163 = vsel %vm3846, %v4099, -inf
        %v4164 = vsel %vm3846, %v4100, -inf
        %v4165 = vsel %vm3846, %v4101, -inf
        %v4166 = vsel %vm3846, %v4102, -inf
        %v4167 = vmul.f32 %v4103, 1.442695
        %v4168 = vpow.pop %v4167
        %v4169 = vmul.f32 %v4104, 1.442695
        %v4170 = vpow.pop %v4169
        %v4171 = vmul.f32 %v4105, 1.442695
        %v4172 = vpow.pop %v4171
        %v4173 = vmul.f32 %v4106, 1.442695
        %v4174 = vpow.pop %v4173
        %v4175 = vmul.f32 %v4107, 1.442695
        %v4176 = vpow.pop %v4175
        %v4177 = vmul.f32 %v4108, 1.442695
        %v4178 = vpow.pop %v4177
        %v4179 = vmul.f32 %v4109, 1.442695
        %v4180 = vpow.pop %v4179
        %v4181 = vmul.f32 %v4110, 1.442695
        %v4182 = vpow.pop %v4181
        %v4183 = vmul.f32 %v4111, 1.442695
        %v4184 = vpow.pop %v4183
        %v4185 = vmul.f32 %v4112, 1.442695
        %v4186 = vpow.pop %v4185
        %v4187 = vmul.f32 %v4113, 1.442695
        %v4188 = vpow.pop %v4187
        %v4189 = vmul.f32 %v4114, 1.442695
        %v4190 = vpow.pop %v4189
        %v4191 = vmul.f32 %v4115, 1.442695
        %v4192 = vpow.pop %v4191
        %v4193 = vmul.f32 %v4116, 1.442695
        %v4194 = vpow.pop %v4193
        %v4195 = vmul.f32 %v4117, 1.442695
        %v4196 = vpow.pop %v4195
        %v4197 = vmul.f32 %v4118, 1.442695
        %v4198 = vpow.pop %v4197
        %v4199 = vmul.f32 %v4119, 1.442695
        %v4200 = vpow.pop %v4199
        %v4201 = vmul.f32 %v4120, 1.442695
        %v4202 = vpow.pop %v4201
        %v4203 = vmul.f32 %v4121, 1.442695
        %v4204 = vpow.pop %v4203
        %v4205 = vmul.f32 %v4122, 1.442695
        %v4206 = vpow.pop %v4205
        %v4207 = vmul.f32 %v4123, 1.442695
        %v4208 = vpow.pop %v4207
        %v4209 = vmul.f32 %v4124, 1.442695
        %v4210 = vpow.pop %v4209
        %v4211 = vmul.f32 %v4125, 1.442695
        %v4212 = vpow.pop %v4211
        %v4213 = vmul.f32 %v4126, 1.442695
        %v4214 = vpow.pop %v4213
        %v4215 = vmul.f32 %v4127, 1.442695
        %v4216 = vpow.pop %v4215
        %v4217 = vmul.f32 %v4128, 1.442695
        %v4218 = vpow.pop %v4217
        %v4219 = vmul.f32 %v4129, 1.442695
        %v4220 = vpow.pop %v4219
        %v4221 = vmul.f32 %v4130, 1.442695
        %v4222 = vpow.pop %v4221
        %v4223 = vmul.f32 %v4131, 1.442695
        %v4224 = vpow.pop %v4223
        %v4225 = vmul.f32 %v4132, 1.442695
        %v4226 = vpow.pop %v4225
        %v4227 = vmul.f32 %v4133, 1.442695
        %v4228 = vpow.pop %v4227
        %v4229 = vmul.f32 %v4134, 1.442695
        %v4230 = vpow.pop %v4229
        %v4231 = vmul.f32 %v4135, 1.442695
        %v4232 = vpow.pop %v4231
        %v4233 = vmul.f32 %v4136, 1.442695
        %v4234 = vpow.pop %v4233
        %v4235 = vmul.f32 %v4137, 1.442695
        %v4236 = vpow.pop %v4235
        %v4237 = vmul.f32 %v4138, 1.442695
        %v4238 = vpow.pop %v4237
        %v4239 = vmul.f32 %v4139, 1.442695
        %v4240 = vpow.pop %v4239
        %v4241 = vmul.f32 %v4140, 1.442695
        %v4242 = vpow.pop %v4241
        %v4243 = vmul.f32 %v4141, 1.442695
        %v4244 = vpow.pop %v4243
        %v4245 = vmul.f32 %v4142, 1.442695
        %v4246 = vpow.pop %v4245
        %v4247 = vmul.f32 %v4143, 1.442695
        %v4248 = vpow.pop %v4247
        %v4249 = vmul.f32 %v4144, 1.442695
        %v4250 = vpow.pop %v4249
        %v4251 = vmul.f32 %v4145, 1.442695
        %v4252 = vpow.pop %v4251
        %v4253 = vmul.f32 %v4146, 1.442695
        %v4254 = vpow.pop %v4253
        %v4255 = vmul.f32 %v4147, 1.442695
        %v4256 = vpow.pop %v4255
        %v4257 = vmul.f32 %v4148, 1.442695
        %v4258 = vpow.pop %v4257
        %v4259 = vmul.f32 %v4149, 1.442695
        %v4260 = vpow.pop %v4259
        %v4261 = vmul.f32 %v4150, 1.442695
        %v4262 = vpow.pop %v4261
        %v4263 = vmul.f32 %v4151, 1.442695
        %v4264 = vpow.pop %v4263
        %v4265 = vmul.f32 %v4152, 1.442695
        %v4266 = vpow.pop %v4265
        %v4267 = vmul.f32 %v4153, 1.442695
        %v4268 = vpow.pop %v4267
        %v4269 = vmul.f32 %v4154, 1.442695
        %v4270 = vpow.pop %v4269
        %v4271 = vmul.f32 %v4155, 1.442695
        %v4272 = vpow.pop %v4271
        %v4273 = vmul.f32 %v4156, 1.442695
        %v4274 = vpow.pop %v4273
        %v4275 = vmul.f32 %v4157, 1.442695
        %v4276 = vpow.pop %v4275
        %v4277 = vmul.f32 %v4158, 1.442695
        %v4278 = vpow.pop %v4277
        %v4279 = vmul.f32 %v4159, 1.442695
        %v4280 = vpow.pop %v4279
        %v4281 = vmul.f32 %v4160, 1.442695
        %v4282 = vpow.pop %v4281
        %v4283 = vmul.f32 %v4161, 1.442695
        %v4284 = vpow.pop %v4283
        %v4285 = vmul.f32 %v4162, 1.442695
        %v4286 = vpow.pop %v4285
        %v4287 = vmul.f32 %v4163, 1.442695
        %v4288 = vpow.pop %v4287
        %v4289 = vmul.f32 %v4164, 1.442695
        %v4290 = vpow.pop %v4289
        %v4291 = vmul.f32 %v4165, 1.442695
        %v4292 = vpow.pop %v4291
        %v4293 = vmul.f32 %v4166, 1.442695
        %v4294 = vpow.pop %v4293
        %v4295 = vld [vmem:[%s3] sm:$0xff]
        %v4296 = vld [vmem:[%s3 + $0x8] sm:$0xff]
        %v4297 = vld [vmem:[%s3 + $0x10] sm:$0xff]
        %v4298 = vld [vmem:[%s3 + $0x18] sm:$0xff]
        %v4299 = vld [vmem:[%s3 + $0x20] sm:$0xff]
        %v4300 = vld [vmem:[%s3 + $0x28] sm:$0xff]
        %v4301 = vld [vmem:[%s3 + $0x30] sm:$0xff]
        %v4302 = vld [vmem:[%s3 + $0x38] sm:$0xff]
        %v4303 = vld [vmem:[%s3 + $0x40] sm:$0xff]
        %v4304 = vld [vmem:[%s3 + $0x48] sm:$0xff]
        %v4305 = vld [vmem:[%s3 + $0x50] sm:$0xff]
        %v4306 = vld [vmem:[%s3 + $0x58] sm:$0xff]
        %v4307 = vld [vmem:[%s3 + $0x60] sm:$0xff]
        %v4308 = vld [vmem:[%s3 + $0x68] sm:$0xff]
        %v4309 = vld [vmem:[%s3 + $0x70] sm:$0xff]
        %v4310 = vld [vmem:[%s3 + $0x78] sm:$0xff]
        %v4311 = vsub.f32 1.0, %v239
        %v4312 = vperm.slane %v4311, 7
        %4313 = vmatpush.msra.mxu0 %v4310
        %4314 = vmatpush.msra.mxu0 %v4309
        %4315 = vmatpush.msra.mxu0 %v4308
        %4316 = vmatpush.msra.mxu0 %v4307
        %4317 = vmatpush.msra.mxu0 %v4306
        %4318 = vmatpush.msra.mxu0 %v4305
        %4319 = vmatpush.msra.mxu0 %v4304
        %4320 = vmatpush.msra.mxu0 %v4303
        %4321 = vmatpush.msra.mxu0 %v4302
        %4322 = vmatpush.msra.mxu0 %v4301
        %4323 = vmatpush.msra.mxu0 %v4300
        %4324 = vmatpush.msra.mxu0 %v4299
        %4325 = vmatpush.msra.mxu0 %v4298
        %4326 = vmatpush.msra.mxu0 %v4297
        %4327 = vmatpush.msra.mxu0 %v4296
        %4328 = vmatpush.msra.mxu0 %v4295
        %4329 = vmatmul.f32.gmra.mxu0 %v4168
        %v4330 = vpop.f32.mrf.mxu0
        %v4331 = vadd.f32 %v4312, %v4330
        %4332 = vmatmul.f32.gmra.mxu0 %v4170
        %v4333 = vpop.f32.mrf.mxu0
        %v4334 = vadd.f32 %v4312, %v4333
        %4335 = vmatmul.f32.gmra.mxu0 %v4172
        %v4336 = vpop.f32.mrf.mxu0
        %v4337 = vadd.f32 %v4312, %v4336
        %4338 = vmatmul.f32.gmra.mxu0 %v4174
        %v4339 = vpop.f32.mrf.mxu0
        %v4340 = vadd.f32 %v4312, %v4339
        %4341 = vmatmul.f32.gmra.mxu0 %v4176
        %v4342 = vpop.f32.mrf.mxu0
        %v4343 = vadd.f32 %v4312, %v4342
        %4344 = vmatmul.f32.gmra.mxu0 %v4178
        %v4345 = vpop.f32.mrf.mxu0
        %v4346 = vadd.f32 %v4312, %v4345
        %4347 = vmatmul.f32.gmra.mxu0 %v4180
        %v4348 = vpop.f32.mrf.mxu0
        %v4349 = vadd.f32 %v4312, %v4348
        %4350 = vmatmul.f32.gmra.mxu0 %v4182
        %v4351 = vpop.f32.mrf.mxu0
        %v4352 = vadd.f32 %v4312, %v4351
        %4353 = vmatmul.f32.gmra.mxu0 %v4184
        %v4354 = vpop.f32.mrf.mxu0
        %v4355 = vadd.f32 %v4312, %v4354
        %4356 = vmatmul.f32.gmra.mxu0 %v4186
        %v4357 = vpop.f32.mrf.mxu0
        %v4358 = vadd.f32 %v4312, %v4357
        %4359 = vmatmul.f32.gmra.mxu0 %v4188
        %v4360 = vpop.f32.mrf.mxu0
        %v4361 = vadd.f32 %v4312, %v4360
        %4362 = vmatmul.f32.gmra.mxu0 %v4190
        %v4363 = vpop.f32.mrf.mxu0
        %v4364 = vadd.f32 %v4312, %v4363
        %4365 = vmatmul.f32.gmra.mxu0 %v4192
        %v4366 = vpop.f32.mrf.mxu0
        %v4367 = vadd.f32 %v4312, %v4366
        %4368 = vmatmul.f32.gmra.mxu0 %v4194
        %v4369 = vpop.f32.mrf.mxu0
        %v4370 = vadd.f32 %v4312, %v4369
        %4371 = vmatmul.f32.gmra.mxu0 %v4196
        %v4372 = vpop.f32.mrf.mxu0
        %v4373 = vadd.f32 %v4312, %v4372
        %4374 = vmatmul.f32.gmra.mxu0 %v4198
        %v4375 = vpop.f32.mrf.mxu0
        %v4376 = vadd.f32 %v4312, %v4375
        %4377 = vmatmul.f32.gmra.mxu0 %v4200
        %v4378 = vpop.f32.mrf.mxu0
        %v4379 = vadd.f32 %v4312, %v4378
        %4380 = vmatmul.f32.gmra.mxu0 %v4202
        %v4381 = vpop.f32.mrf.mxu0
        %v4382 = vadd.f32 %v4312, %v4381
        %4383 = vmatmul.f32.gmra.mxu0 %v4204
        %v4384 = vpop.f32.mrf.mxu0
        %v4385 = vadd.f32 %v4312, %v4384
        %4386 = vmatmul.f32.gmra.mxu0 %v4206
        %v4387 = vpop.f32.mrf.mxu0
        %v4388 = vadd.f32 %v4312, %v4387
        %4389 = vmatmul.f32.gmra.mxu0 %v4208
        %v4390 = vpop.f32.mrf.mxu0
        %v4391 = vadd.f32 %v4312, %v4390
        %4392 = vmatmul.f32.gmra.mxu0 %v4210
        %v4393 = vpop.f32.mrf.mxu0
        %v4394 = vadd.f32 %v4312, %v4393
        %4395 = vmatmul.f32.gmra.mxu0 %v4212
        %v4396 = vpop.f32.mrf.mxu0
        %v4397 = vadd.f32 %v4312, %v4396
        %4398 = vmatmul.f32.gmra.mxu0 %v4214
        %v4399 = vpop.f32.mrf.mxu0
        %v4400 = vadd.f32 %v4312, %v4399
        %4401 = vmatmul.f32.gmra.mxu0 %v4216
        %v4402 = vpop.f32.mrf.mxu0
        %v4403 = vadd.f32 %v4312, %v4402
        %4404 = vmatmul.f32.gmra.mxu0 %v4218
        %v4405 = vpop.f32.mrf.mxu0
        %v4406 = vadd.f32 %v4312, %v4405
        %4407 = vmatmul.f32.gmra.mxu0 %v4220
        %v4408 = vpop.f32.mrf.mxu0
        %v4409 = vadd.f32 %v4312, %v4408
        %4410 = vmatmul.f32.gmra.mxu0 %v4222
        %v4411 = vpop.f32.mrf.mxu0
        %v4412 = vadd.f32 %v4312, %v4411
        %4413 = vmatmul.f32.gmra.mxu0 %v4224
        %v4414 = vpop.f32.mrf.mxu0
        %v4415 = vadd.f32 %v4312, %v4414
        %4416 = vmatmul.f32.gmra.mxu0 %v4226
        %v4417 = vpop.f32.mrf.mxu0
        %v4418 = vadd.f32 %v4312, %v4417
        %4419 = vmatmul.f32.gmra.mxu0 %v4228
        %v4420 = vpop.f32.mrf.mxu0
        %v4421 = vadd.f32 %v4312, %v4420
        %4422 = vmatmul.f32.gmra.mxu0 %v4230
        %v4423 = vpop.f32.mrf.mxu0
        %v4424 = vadd.f32 %v4312, %v4423
        %4425 = vmatmul.f32.gmra.mxu0 %v4232
        %v4426 = vpop.f32.mrf.mxu0
        %v4427 = vadd.f32 %v4312, %v4426
        %4428 = vmatmul.f32.gmra.mxu0 %v4234
        %v4429 = vpop.f32.mrf.mxu0
        %v4430 = vadd.f32 %v4312, %v4429
        %4431 = vmatmul.f32.gmra.mxu0 %v4236
        %v4432 = vpop.f32.mrf.mxu0
        %v4433 = vadd.f32 %v4312, %v4432
        %4434 = vmatmul.f32.gmra.mxu0 %v4238
        %v4435 = vpop.f32.mrf.mxu0
        %v4436 = vadd.f32 %v4312, %v4435
        %4437 = vmatmul.f32.gmra.mxu0 %v4240
        %v4438 = vpop.f32.mrf.mxu0
        %v4439 = vadd.f32 %v4312, %v4438
        %4440 = vmatmul.f32.gmra.mxu0 %v4242
        %v4441 = vpop.f32.mrf.mxu0
        %v4442 = vadd.f32 %v4312, %v4441
        %4443 = vmatmul.f32.gmra.mxu0 %v4244
        %v4444 = vpop.f32.mrf.mxu0
        %v4445 = vadd.f32 %v4312, %v4444
        %4446 = vmatmul.f32.gmra.mxu0 %v4246
        %v4447 = vpop.f32.mrf.mxu0
        %v4448 = vadd.f32 %v4312, %v4447
        %4449 = vmatmul.f32.gmra.mxu0 %v4248
        %v4450 = vpop.f32.mrf.mxu0
        %v4451 = vadd.f32 %v4312, %v4450
        %4452 = vmatmul.f32.gmra.mxu0 %v4250
        %v4453 = vpop.f32.mrf.mxu0
        %v4454 = vadd.f32 %v4312, %v4453
        %4455 = vmatmul.f32.gmra.mxu0 %v4252
        %v4456 = vpop.f32.mrf.mxu0
        %v4457 = vadd.f32 %v4312, %v4456
        %4458 = vmatmul.f32.gmra.mxu0 %v4254
        %v4459 = vpop.f32.mrf.mxu0
        %v4460 = vadd.f32 %v4312, %v4459
        %4461 = vmatmul.f32.gmra.mxu0 %v4256
        %v4462 = vpop.f32.mrf.mxu0
        %v4463 = vadd.f32 %v4312, %v4462
        %4464 = vmatmul.f32.gmra.mxu0 %v4258
        %v4465 = vpop.f32.mrf.mxu0
        %v4466 = vadd.f32 %v4312, %v4465
        %4467 = vmatmul.f32.gmra.mxu0 %v4260
        %v4468 = vpop.f32.mrf.mxu0
        %v4469 = vadd.f32 %v4312, %v4468
        %4470 = vmatmul.f32.gmra.mxu0 %v4262
        %v4471 = vpop.f32.mrf.mxu0
        %v4472 = vadd.f32 %v4312, %v4471
        %4473 = vmatmul.f32.gmra.mxu0 %v4264
        %v4474 = vpop.f32.mrf.mxu0
        %v4475 = vadd.f32 %v4312, %v4474
        %4476 = vmatmul.f32.gmra.mxu0 %v4266
        %v4477 = vpop.f32.mrf.mxu0
        %v4478 = vadd.f32 %v4312, %v4477
        %4479 = vmatmul.f32.gmra.mxu0 %v4268
        %v4480 = vpop.f32.mrf.mxu0
        %v4481 = vadd.f32 %v4312, %v4480
        %4482 = vmatmul.f32.gmra.mxu0 %v4270
        %v4483 = vpop.f32.mrf.mxu0
        %v4484 = vadd.f32 %v4312, %v4483
        %4485 = vmatmul.f32.gmra.mxu0 %v4272
        %v4486 = vpop.f32.mrf.mxu0
        %v4487 = vadd.f32 %v4312, %v4486
        %4488 = vmatmul.f32.gmra.mxu0 %v4274
        %v4489 = vpop.f32.mrf.mxu0
        %v4490 = vadd.f32 %v4312, %v4489
        %4491 = vmatmul.f32.gmra.mxu0 %v4276
        %v4492 = vpop.f32.mrf.mxu0
        %v4493 = vadd.f32 %v4312, %v4492
        %4494 = vmatmul.f32.gmra.mxu0 %v4278
        %v4495 = vpop.f32.mrf.mxu0
        %v4496 = vadd.f32 %v4312, %v4495
        %4497 = vmatmul.f32.gmra.mxu0 %v4280
        %v4498 = vpop.f32.mrf.mxu0
        %v4499 = vadd.f32 %v4312, %v4498
        %4500 = vmatmul.f32.gmra.mxu0 %v4282
        %v4501 = vpop.f32.mrf.mxu0
        %v4502 = vadd.f32 %v4312, %v4501
        %4503 = vmatmul.f32.gmra.mxu0 %v4284
        %v4504 = vpop.f32.mrf.mxu0
        %v4505 = vadd.f32 %v4312, %v4504
        %4506 = vmatmul.f32.gmra.mxu0 %v4286
        %v4507 = vpop.f32.mrf.mxu0
        %v4508 = vadd.f32 %v4312, %v4507
        %4509 = vmatmul.f32.gmra.mxu0 %v4288
        %v4510 = vpop.f32.mrf.mxu0
        %v4511 = vadd.f32 %v4312, %v4510
        %4512 = vmatmul.f32.gmra.mxu0 %v4290
        %v4513 = vpop.f32.mrf.mxu0
        %v4514 = vadd.f32 %v4312, %v4513
        %4515 = vmatmul.f32.gmra.mxu0 %v4292
        %v4516 = vpop.f32.mrf.mxu0
        %v4517 = vadd.f32 %v4312, %v4516
        %4518 = vmatmul.f32.gmra.mxu0 %v4294
        %v4519 = vpop.f32.mrf.mxu0
        %v4520 = vadd.f32 %v4312, %v4519
        %4521 = vdwg.mxu0
        %v4522 = vrcp.pop %v4331
        %v4523 = vrcp.pop %v4334
        %v4524 = vrcp.pop %v4337
        %v4525 = vrcp.pop %v4340
        %v4526 = vrcp.pop %v4343
        %v4527 = vrcp.pop %v4346
        %v4528 = vrcp.pop %v4349
        %v4529 = vrcp.pop %v4352
        %v4530 = vrcp.pop %v4355
        %v4531 = vrcp.pop %v4358
        %v4532 = vrcp.pop %v4361
        %v4533 = vrcp.pop %v4364
        %v4534 = vrcp.pop %v4367
        %v4535 = vrcp.pop %v4370
        %v4536 = vrcp.pop %v4373
        %v4537 = vrcp.pop %v4376
        %v4538 = vrcp.pop %v4379
        %v4539 = vrcp.pop %v4382
        %v4540 = vrcp.pop %v4385
        %v4541 = vrcp.pop %v4388
        %v4542 = vrcp.pop %v4391
        %v4543 = vrcp.pop %v4394
        %v4544 = vrcp.pop %v4397
        %v4545 = vrcp.pop %v4400
        %v4546 = vrcp.pop %v4403
        %v4547 = vrcp.pop %v4406
        %v4548 = vrcp.pop %v4409
        %v4549 = vrcp.pop %v4412
        %v4550 = vrcp.pop %v4415
        %v4551 = vrcp.pop %v4418
        %v4552 = vrcp.pop %v4421
        %v4553 = vrcp.pop %v4424
        %v4554 = vrcp.pop %v4427
        %v4555 = vrcp.pop %v4430
        %v4556 = vrcp.pop %v4433
        %v4557 = vrcp.pop %v4436
        %v4558 = vrcp.pop %v4439
        %v4559 = vrcp.pop %v4442
        %v4560 = vrcp.pop %v4445
        %v4561 = vrcp.pop %v4448
        %v4562 = vrcp.pop %v4451
        %v4563 = vrcp.pop %v4454
        %v4564 = vrcp.pop %v4457
        %v4565 = vrcp.pop %v4460
        %v4566 = vrcp.pop %v4463
        %v4567 = vrcp.pop %v4466
        %v4568 = vrcp.pop %v4469
        %v4569 = vrcp.pop %v4472
        %v4570 = vrcp.pop %v4475
        %v4571 = vrcp.pop %v4478
        %v4572 = vrcp.pop %v4481
        %v4573 = vrcp.pop %v4484
        %v4574 = vrcp.pop %v4487
        %v4575 = vrcp.pop %v4490
        %v4576 = vrcp.pop %v4493
        %v4577 = vrcp.pop %v4496
        %v4578 = vrcp.pop %v4499
        %v4579 = vrcp.pop %v4502
        %v4580 = vrcp.pop %v4505
        %v4581 = vrcp.pop %v4508
        %v4582 = vrcp.pop %v4511
        %v4583 = vrcp.pop %v4514
        %v4584 = vrcp.pop %v4517
        %v4585 = vrcp.pop %v4520
        %v4586 = vmul.f32 %v4168, %v4522
        %v4587 = vmul.f32 %v4170, %v4523
        %v4588 = vmul.f32 %v4172, %v4524
        %v4589 = vmul.f32 %v4174, %v4525
        %v4590 = vmul.f32 %v4176, %v4526
        %v4591 = vmul.f32 %v4178, %v4527
        %v4592 = vmul.f32 %v4180, %v4528
        %v4593 = vmul.f32 %v4182, %v4529
        %v4594 = vmul.f32 %v4184, %v4530
        %v4595 = vmul.f32 %v4186, %v4531
        %v4596 = vmul.f32 %v4188, %v4532
        %v4597 = vmul.f32 %v4190, %v4533
        %v4598 = vmul.f32 %v4192, %v4534
        %v4599 = vmul.f32 %v4194, %v4535
        %v4600 = vmul.f32 %v4196, %v4536
        %v4601 = vmul.f32 %v4198, %v4537
        %v4602 = vmul.f32 %v4200, %v4538
        %v4603 = vmul.f32 %v4202, %v4539
        %v4604 = vmul.f32 %v4204, %v4540
        %v4605 = vmul.f32 %v4206, %v4541
        %v4606 = vmul.f32 %v4208, %v4542
        %v4607 = vmul.f32 %v4210, %v4543
        %v4608 = vmul.f32 %v4212, %v4544
        %v4609 = vmul.f32 %v4214, %v4545
        %v4610 = vmul.f32 %v4216, %v4546
        %v4611 = vmul.f32 %v4218, %v4547
        %v4612 = vmul.f32 %v4220, %v4548
        %v4613 = vmul.f32 %v4222, %v4549
        %v4614 = vmul.f32 %v4224, %v4550
        %v4615 = vmul.f32 %v4226, %v4551
        %v4616 = vmul.f32 %v4228, %v4552
        %v4617 = vmul.f32 %v4230, %v4553
        %v4618 = vmul.f32 %v4232, %v4554
        %v4619 = vmul.f32 %v4234, %v4555
        %v4620 = vmul.f32 %v4236, %v4556
        %v4621 = vmul.f32 %v4238, %v4557
        %v4622 = vmul.f32 %v4240, %v4558
        %v4623 = vmul.f32 %v4242, %v4559
        %v4624 = vmul.f32 %v4244, %v4560
        %v4625 = vmul.f32 %v4246, %v4561
        %v4626 = vmul.f32 %v4248, %v4562
        %v4627 = vmul.f32 %v4250, %v4563
        %v4628 = vmul.f32 %v4252, %v4564
        %v4629 = vmul.f32 %v4254, %v4565
        %v4630 = vmul.f32 %v4256, %v4566
        %v4631 = vmul.f32 %v4258, %v4567
        %v4632 = vmul.f32 %v4260, %v4568
        %v4633 = vmul.f32 %v4262, %v4569
        %v4634 = vmul.f32 %v4264, %v4570
        %v4635 = vmul.f32 %v4266, %v4571
        %v4636 = vmul.f32 %v4268, %v4572
        %v4637 = vmul.f32 %v4270, %v4573
        %v4638 = vmul.f32 %v4272, %v4574
        %v4639 = vmul.f32 %v4274, %v4575
        %v4640 = vmul.f32 %v4276, %v4576
        %v4641 = vmul.f32 %v4278, %v4577
        %v4642 = vmul.f32 %v4280, %v4578
        %v4643 = vmul.f32 %v4282, %v4579
        %v4644 = vmul.f32 %v4284, %v4580
        %v4645 = vmul.f32 %v4286, %v4581
        %v4646 = vmul.f32 %v4288, %v4582
        %v4647 = vmul.f32 %v4290, %v4583
        %v4648 = vmul.f32 %v4292, %v4584
        %v4649 = vmul.f32 %v4294, %v4585
        %v4650 = vsel %vm3846, %v4586, %v3781
        %v4651 = vsel %vm3846, %v4587, %v3782
        %v4652 = vsel %vm3846, %v4588, %v3783
        %v4653 = vsel %vm3846, %v4589, %v3784
        %v4654 = vsel %vm3846, %v4590, %v3785
        %v4655 = vsel %vm3846, %v4591, %v3786
        %v4656 = vsel %vm3846, %v4592, %v3787
        %v4657 = vsel %vm3846, %v4593, %v3788
        %v4658 = vsel %vm3846, %v4594, %v3789
        %v4659 = vsel %vm3846, %v4595, %v3790
        %v4660 = vsel %vm3846, %v4596, %v3791
        %v4661 = vsel %vm3846, %v4597, %v3792
        %v4662 = vsel %vm3846, %v4598, %v3793
        %v4663 = vsel %vm3846, %v4599, %v3794
        %v4664 = vsel %vm3846, %v4600, %v3795
        %v4665 = vsel %vm3846, %v4601, %v3796
        %v4666 = vsel %vm3846, %v4602, %v3797
        %v4667 = vsel %vm3846, %v4603, %v3798
        %v4668 = vsel %vm3846, %v4604, %v3799
        %v4669 = vsel %vm3846, %v4605, %v3800
        %v4670 = vsel %vm3846, %v4606, %v3801
        %v4671 = vsel %vm3846, %v4607, %v3802
        %v4672 = vsel %vm3846, %v4608, %v3803
        %v4673 = vsel %vm3846, %v4609, %v3804
        %v4674 = vsel %vm3846, %v4610, %v3805
        %v4675 = vsel %vm3846, %v4611, %v3806
        %v4676 = vsel %vm3846, %v4612, %v3807
        %v4677 = vsel %vm3846, %v4613, %v3808
        %v4678 = vsel %vm3846, %v4614, %v3809
        %v4679 = vsel %vm3846, %v4615, %v3810
        %v4680 = vsel %vm3846, %v4616, %v3811
        %v4681 = vsel %vm3846, %v4617, %v3812
        %v4682 = vsel %vm3846, %v4618, %v3813
        %v4683 = vsel %vm3846, %v4619, %v3814
        %v4684 = vsel %vm3846, %v4620, %v3815
        %v4685 = vsel %vm3846, %v4621, %v3816
        %v4686 = vsel %vm3846, %v4622, %v3817
        %v4687 = vsel %vm3846, %v4623, %v3818
        %v4688 = vsel %vm3846, %v4624, %v3819
        %v4689 = vsel %vm3846, %v4625, %v3820
        %v4690 = vsel %vm3846, %v4626, %v3821
        %v4691 = vsel %vm3846, %v4627, %v3822
        %v4692 = vsel %vm3846, %v4628, %v3823
        %v4693 = vsel %vm3846, %v4629, %v3824
        %v4694 = vsel %vm3846, %v4630, %v3825
        %v4695 = vsel %vm3846, %v4631, %v3826
        %v4696 = vsel %vm3846, %v4632, %v3827
        %v4697 = vsel %vm3846, %v4633, %v3828
        %v4698 = vsel %vm3846, %v4634, %v3829
        %v4699 = vsel %vm3846, %v4635, %v3830
        %v4700 = vsel %vm3846, %v4636, %v3831
        %v4701 = vsel %vm3846, %v4637, %v3832
        %v4702 = vsel %vm3846, %v4638, %v3833
        %v4703 = vsel %vm3846, %v4639, %v3834
        %v4704 = vsel %vm3846, %v4640, %v3835
        %v4705 = vsel %vm3846, %v4641, %v3836
        %v4706 = vsel %vm3846, %v4642, %v3837
        %v4707 = vsel %vm3846, %v4643, %v3838
        %v4708 = vsel %vm3846, %v4644, %v3839
        %v4709 = vsel %vm3846, %v4645, %v3840
        %v4710 = vsel %vm3846, %v4646, %v3841
        %v4711 = vsel %vm3846, %v4647, %v3842
        %v4712 = vsel %vm3846, %v4648, %v3843
        %v4713 = vsel %vm3846, %v4649, %v3844
        %v4714 = vpack.c.bf16 %v4650, %v4650
        %v4715 = vpack.c.bf16 %v4651, %v4651
        %v4716 = vpack.c.bf16 %v4652, %v4652
        %v4717 = vpack.c.bf16 %v4653, %v4653
        %v4718 = vpack.c.bf16 %v4654, %v4654
        %v4719 = vpack.c.bf16 %v4655, %v4655
        %v4720 = vpack.c.bf16 %v4656, %v4656
        %v4721 = vpack.c.bf16 %v4657, %v4657
        %v4722 = vpack.c.bf16 %v4658, %v4658
        %v4723 = vpack.c.bf16 %v4659, %v4659
        %v4724 = vpack.c.bf16 %v4660, %v4660
        %v4725 = vpack.c.bf16 %v4661, %v4661
        %v4726 = vpack.c.bf16 %v4662, %v4662
        %v4727 = vpack.c.bf16 %v4663, %v4663
        %v4728 = vpack.c.bf16 %v4664, %v4664
        %v4729 = vpack.c.bf16 %v4665, %v4665
        %v4730 = vpack.c.bf16 %v4666, %v4666
        %v4731 = vpack.c.bf16 %v4667, %v4667
        %v4732 = vpack.c.bf16 %v4668, %v4668
        %v4733 = vpack.c.bf16 %v4669, %v4669
        %v4734 = vpack.c.bf16 %v4670, %v4670
        %v4735 = vpack.c.bf16 %v4671, %v4671
        %v4736 = vpack.c.bf16 %v4672, %v4672
        %v4737 = vpack.c.bf16 %v4673, %v4673
        %v4738 = vpack.c.bf16 %v4674, %v4674
        %v4739 = vpack.c.bf16 %v4675, %v4675
        %v4740 = vpack.c.bf16 %v4676, %v4676
        %v4741 = vpack.c.bf16 %v4677, %v4677
        %v4742 = vpack.c.bf16 %v4678, %v4678
        %v4743 = vpack.c.bf16 %v4679, %v4679
        %v4744 = vpack.c.bf16 %v4680, %v4680
        %v4745 = vpack.c.bf16 %v4681, %v4681
        %v4746 = vpack.c.bf16 %v4682, %v4682
        %v4747 = vpack.c.bf16 %v4683, %v4683
        %v4748 = vpack.c.bf16 %v4684, %v4684
        %v4749 = vpack.c.bf16 %v4685, %v4685
        %v4750 = vpack.c.bf16 %v4686, %v4686
        %v4751 = vpack.c.bf16 %v4687, %v4687
        %v4752 = vpack.c.bf16 %v4688, %v4688
        %v4753 = vpack.c.bf16 %v4689, %v4689
        %v4754 = vpack.c.bf16 %v4690, %v4690
        %v4755 = vpack.c.bf16 %v4691, %v4691
        %v4756 = vpack.c.bf16 %v4692, %v4692
        %v4757 = vpack.c.bf16 %v4693, %v4693
        %v4758 = vpack.c.bf16 %v4694, %v4694
        %v4759 = vpack.c.bf16 %v4695, %v4695
        %v4760 = vpack.c.bf16 %v4696, %v4696
        %v4761 = vpack.c.bf16 %v4697, %v4697
        %v4762 = vpack.c.bf16 %v4698, %v4698
        %v4763 = vpack.c.bf16 %v4699, %v4699
        %v4764 = vpack.c.bf16 %v4700, %v4700
        %v4765 = vpack.c.bf16 %v4701, %v4701
        %v4766 = vpack.c.bf16 %v4702, %v4702
        %v4767 = vpack.c.bf16 %v4703, %v4703
        %v4768 = vpack.c.bf16 %v4704, %v4704
        %v4769 = vpack.c.bf16 %v4705, %v4705
        %v4770 = vpack.c.bf16 %v4706, %v4706
        %v4771 = vpack.c.bf16 %v4707, %v4707
        %v4772 = vpack.c.bf16 %v4708, %v4708
        %v4773 = vpack.c.bf16 %v4709, %v4709
        %v4774 = vpack.c.bf16 %v4710, %v4710
        %v4775 = vpack.c.bf16 %v4711, %v4711
        %v4776 = vpack.c.bf16 %v4712, %v4712
        %v4777 = vpack.c.bf16 %v4713, %v4713
        %4778 = vst [vmem:[%s229] sm:$0xf] %v4714
        %4779 = vst [vmem:[%s229 + $0x4] sm:$0xf] %v4715
        %4780 = vst [vmem:[%s229 + $0x8] sm:$0xf] %v4716
        %4781 = vst [vmem:[%s229 + $0xc] sm:$0xf] %v4717
        %4782 = vst [vmem:[%s229 + $0x10] sm:$0xf] %v4718
        %4783 = vst [vmem:[%s229 + $0x14] sm:$0xf] %v4719
        %4784 = vst [vmem:[%s229 + $0x18] sm:$0xf] %v4720
        %4785 = vst [vmem:[%s229 + $0x1c] sm:$0xf] %v4721
        %4786 = vst [vmem:[%s229 + $0x20] sm:$0xf] %v4722
        %4787 = vst [vmem:[%s229 + $0x24] sm:$0xf] %v4723
        %4788 = vst [vmem:[%s229 + $0x28] sm:$0xf] %v4724
        %4789 = vst [vmem:[%s229 + $0x2c] sm:$0xf] %v4725
        %4790 = vst [vmem:[%s229 + $0x30] sm:$0xf] %v4726
        %4791 = vst [vmem:[%s229 + $0x34] sm:$0xf] %v4727
        %4792 = vst [vmem:[%s229 + $0x38] sm:$0xf] %v4728
        %4793 = vst [vmem:[%s229 + $0x3c] sm:$0xf] %v4729
        %4794 = vst [vmem:[%s229 + $0x40] sm:$0xf] %v4730
        %4795 = vst [vmem:[%s229 + $0x44] sm:$0xf] %v4731
        %4796 = vst [vmem:[%s229 + $0x48] sm:$0xf] %v4732
        %4797 = vst [vmem:[%s229 + $0x4c] sm:$0xf] %v4733
        %4798 = vst [vmem:[%s229 + $0x50] sm:$0xf] %v4734
        %4799 = vst [vmem:[%s229 + $0x54] sm:$0xf] %v4735
        %4800 = vst [vmem:[%s229 + $0x58] sm:$0xf] %v4736
        %4801 = vst [vmem:[%s229 + $0x5c] sm:$0xf] %v4737
        %4802 = vst [vmem:[%s229 + $0x60] sm:$0xf] %v4738
        %4803 = vst [vmem:[%s229 + $0x64] sm:$0xf] %v4739
        %4804 = vst [vmem:[%s229 + $0x68] sm:$0xf] %v4740
        %4805 = vst [vmem:[%s229 + $0x6c] sm:$0xf] %v4741
        %4806 = vst [vmem:[%s229 + $0x70] sm:$0xf] %v4742
        %4807 = vst [vmem:[%s229 + $0x74] sm:$0xf] %v4743
        %4808 = vst [vmem:[%s229 + $0x78] sm:$0xf] %v4744
        %4809 = vst [vmem:[%s229 + $0x7c] sm:$0xf] %v4745
        %4810 = vst [vmem:[%s229 + $0x80] sm:$0xf] %v4746
        %4811 = vst [vmem:[%s229 + $0x84] sm:$0xf] %v4747
        %4812 = vst [vmem:[%s229 + $0x88] sm:$0xf] %v4748
        %4813 = vst [vmem:[%s229 + $0x8c] sm:$0xf] %v4749
        %4814 = vst [vmem:[%s229 + $0x90] sm:$0xf] %v4750
        %4815 = vst [vmem:[%s229 + $0x94] sm:$0xf] %v4751
        %4816 = vst [vmem:[%s229 + $0x98] sm:$0xf] %v4752
        %4817 = vst [vmem:[%s229 + $0x9c] sm:$0xf] %v4753
        %4818 = vst [vmem:[%s229 + $0xa0] sm:$0xf] %v4754
        %4819 = vst [vmem:[%s229 + $0xa4] sm:$0xf] %v4755
        %4820 = vst [vmem:[%s229 + $0xa8] sm:$0xf] %v4756
        %4821 = vst [vmem:[%s229 + $0xac] sm:$0xf] %v4757
        %4822 = vst [vmem:[%s229 + $0xb0] sm:$0xf] %v4758
        %4823 = vst [vmem:[%s229 + $0xb4] sm:$0xf] %v4759
        %4824 = vst [vmem:[%s229 + $0xb8] sm:$0xf] %v4760
        %4825 = vst [vmem:[%s229 + $0xbc] sm:$0xf] %v4761
        %4826 = vst [vmem:[%s229 + $0xc0] sm:$0xf] %v4762
        %4827 = vst [vmem:[%s229 + $0xc4] sm:$0xf] %v4763
        %4828 = vst [vmem:[%s229 + $0xc8] sm:$0xf] %v4764
        %4829 = vst [vmem:[%s229 + $0xcc] sm:$0xf] %v4765
        %4830 = vst [vmem:[%s229 + $0xd0] sm:$0xf] %v4766
        %4831 = vst [vmem:[%s229 + $0xd4] sm:$0xf] %v4767
        %4832 = vst [vmem:[%s229 + $0xd8] sm:$0xf] %v4768
        %4833 = vst [vmem:[%s229 + $0xdc] sm:$0xf] %v4769
        %4834 = vst [vmem:[%s229 + $0xe0] sm:$0xf] %v4770
        %4835 = vst [vmem:[%s229 + $0xe4] sm:$0xf] %v4771
        %4836 = vst [vmem:[%s229 + $0xe8] sm:$0xf] %v4772
        %4837 = vst [vmem:[%s229 + $0xec] sm:$0xf] %v4773
        %4838 = vst [vmem:[%s229 + $0xf0] sm:$0xf] %v4774
        %4839 = vst [vmem:[%s229 + $0xf4] sm:$0xf] %v4775
        %4840 = vst [vmem:[%s229 + $0xf8] sm:$0xf] %v4776
        %4841 = vst [vmem:[%s229 + $0xfc] sm:$0xf] %v4777
        %s4842 = sand.u32 %s120, 1
        %s4843 = scalar_lea.sflag [#allocation3], %s4842
        %s4844 = sand.u32 %s120, 1
        %s4845 = smul.addr %s4844, 256
        %s4846 = scalar_lea.vmem [#allocation2], %s4845
        %s4847 = sand.u32 %s146, 1
        %s4848 = scalar_lea.sflag [#allocation5], %s4847
        %s4849 = sand.u32 %s146, 1
        %s4850 = smul.addr %s4849, 256
        %s4851 = scalar_lea.vmem [#allocation4], %s4850
        // Predicated region
        $region37: #{tpu_custom_call.1} parent=35 // pred_check
          %p4852 = pneg %p130
        $region38: #{tpu_custom_call.1} parent=35 // pred_check_branch
          %4854 = sbr.rel (%p4852) target = $region40
        $region39: #{tpu_custom_call.1} parent=35 // pred_region
          %s4855 = smul.u32 64, %s23
          %4857 = vsyncadd %s4843, 0
          %s4858 = smul.addr %s4855, 4
          %s4859 = scalar_lea.hbm %s4, %s4858
          %s4860 = sshll.u32 %s4846, 4
          %s4861 = int_to_ptr.vmem [resolvable:$true] %s4860
          %s4862 = sshll.u32 %s4859, 4
          %s4863 = int_to_ptr.hbm [resolvable:$true] %s4862
          %4868 = dma.vmem_to_hbm [thread:$0]  %s4861, 4096, %s4863, %s4843, 64, 64, 4
        $region40: #{tpu_custom_call.1} parent=35 // pred_fallthru
          _
        // Predicated region
        $region41: #{tpu_custom_call.1} parent=35 // pred_check
          %p4869 = pneg %p156
        $region42: #{tpu_custom_call.1} parent=35 // pred_check_branch
          %4871 = sbr.rel (%p4869) target = $region44
        $region43: #{tpu_custom_call.1} parent=35 // pred_region
          %s4872 = smul.u32 64, %s23
          %4874 = vsyncadd %s4848, 0
          %s4875 = smul.addr %s4872, 4
          %s4876 = scalar_lea.hbm %s5, %s4875
          %s4877 = sshll.u32 %s4851, 4
          %s4878 = int_to_ptr.vmem [resolvable:$true] %s4877
          %s4879 = sshll.u32 %s4876, 4
          %s4880 = int_to_ptr.hbm [resolvable:$true] %s4879
          %4885 = dma.vmem_to_hbm [thread:$0]  %s4878, 4096, %s4880, %s4848, 64, 64, 4
        $region44: #{tpu_custom_call.1} parent=35 // pred_fallthru
          _
      $region36: #{tpu_custom_call.1} parent=5 // pred_fallthru
        _
      %p4886 = scmp.le.s32.totalorder 2, %s18
      // Predicated region
      $region45: #{tpu_custom_call.1} parent=5 // pred_check
        %p4887 = pneg %p4886
      $region46: #{tpu_custom_call.1} parent=5 // pred_check_branch
        %4889 = sbr.rel (%p4887) target = $region48
      $region47: #{tpu_custom_call.1} parent=5 // pred_region
        %s4890 = ssub.s32 %s18, 2
        // Predicated region
        $region49: #{tpu_custom_call.1} parent=47 // pred_check
          %p4891 = pneg %p136
        $region50: #{tpu_custom_call.1} parent=47 // pred_check_branch
          %4893 = sbr.rel (%p4891) target = $region52
        $region51: #{tpu_custom_call.1} parent=47 // pred_region
          %s4894 = sand.u32 %s121, 1
          %s4895 = scalar_lea.sflag [#allocation3], %s4894
          %s4896 = sand.u32 %s121, 1
          %s4897 = smul.addr %s4896, 256
          %s4898 = scalar_lea.vmem [#allocation2], %s4897
          %4900 = dma.done %s4895, 4096
        $region52: #{tpu_custom_call.1} parent=47 // pred_fallthru
          _
        // Predicated region
        $region53: #{tpu_custom_call.1} parent=47 // pred_check
          %p4901 = pneg %p162
        $region54: #{tpu_custom_call.1} parent=47 // pred_check_branch
          %4903 = sbr.rel (%p4901) target = $region56
        $region55: #{tpu_custom_call.1} parent=47 // pred_region
          %s4904 = sand.u32 %s147, 1
          %s4905 = scalar_lea.sflag [#allocation5], %s4904
          %s4906 = sand.u32 %s147, 1
          %s4907 = smul.addr %s4906, 256
          %s4908 = scalar_lea.vmem [#allocation4], %s4907
          %4910 = dma.done %s4905, 4096
        $region56: #{tpu_custom_call.1} parent=47 // pred_fallthru
          _
      $region48: #{tpu_custom_call.1} parent=5 // pred_fallthru
        _
    $region6: #{tpu_custom_call.1} parent=1 // loop_footer
      %s22 = sadd.s32 1, %s18
    $region7: #{tpu_custom_call.1} parent=1 // loop_footer_branch
      %17 = sbr.rel target = $region3
    $region8: #{tpu_custom_call.1} parent=1 // loop_exit
      _
    %4911 = vsyncpa [#allocation3], 1
    %s4912 = scalar_lea.sflag [#allocation3], 1
    %4913 = vsyncpa %s4912, 1
    %4914 = vsyncpa [#allocation5], 1
    %s4915 = scalar_lea.sflag [#allocation5], 1
    %4916 = vsyncpa %s4915, 1

</llo_original>
